<compile_context>
chip_gen: v6e
topology: v6e:2x2x1
jax: 0.10.0
libtpu: 0.0.40
codegen_flags: <defaults>
</compile_context>

<pallas_src>
import jax
import jax.numpy as jnp
from jax.experimental import pallas as pl
from jax.experimental.pallas import tpu as pltpu


def _round_up(n, m):
    return ((n + m - 1) // m) * m


# ----------------------------------------------------------------------------
# Fused kernel: L-layer LSTM wavefront (time x layer, statically unrolled,
# lane/sublane-aligned) followed by the relu -> fc_1 -> relu -> fc head.
# ----------------------------------------------------------------------------
def _make_fused_kernel(T, Bp, Hp, L):
    """Build the fused kernel for static (T, Bp, Hp, L). All dims pre-padded."""

    def kernel(*refs):
        # refs = [x_flat] + [w_ih, w_hh, b]*L + [w1, b1, w2, b2] + [out_ref]
        x_ref = refs[0]
        lstm_refs = refs[1:1 + 3 * L]
        w1_ref, b1_ref, w2_ref, b2_ref = refs[1 + 3 * L:5 + 3 * L]
        out_ref = refs[5 + 3 * L]

        w_ih = [lstm_refs[3 * l][...] for l in range(L)]      # (Kp, 4*Hp)
        w_hh = [lstm_refs[3 * l + 1][...] for l in range(L)]  # (Hp, 4*Hp)
        bias = [lstm_refs[3 * l + 2][...] for l in range(L)]  # (1, 4*Hp)

        # Hoisted layer-0 input projection: ONE batched MXU matmul.
        gx0 = jnp.dot(x_ref[...], w_ih[0],
                      preferred_element_type=jnp.float32) + bias[0]   # (T*Bp, 4*Hp)

        h = [jnp.zeros((Bp, Hp), jnp.float32) for _ in range(L)]
        c = [jnp.zeros((Bp, Hp), jnp.float32) for _ in range(L)]
        hn = [None] * L

        # Wavefront: wave w runs layer l at timestep t = w - l.  All active
        # (layer, t) pairs inside one wave are independent.
        for w in range(T + L - 1):
            new_h = list(h)
            new_c = list(c)
            for l in range(L):
                t = w - l
                if not (0 <= t < T):
                    continue
                if l == 0:
                    gx = gx0[t * Bp:(t + 1) * Bp, :]          # sublane-aligned slice
                else:
                    # Per-step projection of the previous layer's h at timestep t
                    # (computed in the previous wave) -- off the serial chain.
                    gx = jnp.dot(h[l - 1], w_ih[l],
                                 preferred_element_type=jnp.float32) + bias[l]
                gates = gx + jnp.dot(h[l], w_hh[l],
                                     preferred_element_type=jnp.float32)  # (Bp, 4*Hp)
                # PyTorch gate order: input, forget, cell(g), output.
                # Each slice is a full 128-lane vreg (gate blocks lane-padded).
                i = jax.nn.sigmoid(gates[:, 0 * Hp:1 * Hp])
                f = jax.nn.sigmoid(gates[:, 1 * Hp:2 * Hp])
                g = jnp.tanh(gates[:, 2 * Hp:3 * Hp])
                o = jax.nn.sigmoid(gates[:, 3 * Hp:4 * Hp])
                cc = f * c[l] + i * g
                hh = o * jnp.tanh(cc)
                new_h[l] = hh
                new_c[l] = cc
                if t == T - 1:
                    hn[l] = hh                                 # last hidden of layer l
            h, c = new_h, new_c

        # Fused MLP head on hn.view(-1, H):  fc(relu(fc_1(relu(hn))))
        hn_cat = jnp.concatenate(hn, axis=0)                   # (L*Bp, Hp)
        z = jnp.maximum(hn_cat, 0.0)
        z = jnp.dot(z, w1_ref[...], preferred_element_type=jnp.float32) + b1_ref[...]
        z = jnp.maximum(z, 0.0)
        out = jnp.dot(z, w2_ref[...], preferred_element_type=jnp.float32) + b2_ref[...]
        out_ref[...] = out.astype(out_ref.dtype)               # full (L*Bp, 128) store

    return kernel


# ----------------------------------------------------------------------------
# Full LSTM1 forward (single pallas_call)
# ----------------------------------------------------------------------------
def lstm1_forward(x_btd, params):
    """x_btd: (B, T, input_size) — PyTorch batch_first layout."""
    B, T, D = x_btd.shape
    L = len(params["lstm"])
    H = params["lstm"][0][1].shape[0]       # w_hh: (H, 4H)
    F1 = params["w1"].shape[1]
    C = params["w2"].shape[1]

    SUB, LANE = 8, 128
    Bp = _round_up(B, SUB)                  # batch -> sublane multiple
    Hp = _round_up(H, LANE)                 # per-gate width -> lane multiple
    Dp = _round_up(D, LANE)                 # input features -> lane multiple
    F1p = _round_up(F1, LANE)
    Cp = _round_up(C, LANE)

    # Time-major, batch padded to sublane width, features padded to lane width:
    # (T*Bp, Dp) so per-step slices start on 8-sublane tile boundaries.
    x_tbd = jnp.transpose(x_btd, (1, 0, 2))                    # (T, B, D)
    x_tbd = jnp.pad(x_tbd, ((0, 0), (0, Bp - B), (0, Dp - D)))
    x_flat = x_tbd.reshape(T * Bp, Dp)

    def pad_gate_w(w, kp):
        # (K, 4H) -> (Kp, 4*Hp): zero rows for padded K, each gate block
        # zero-padded to 128 lanes (zeros keep padded lanes inert).
        k = w.shape[0]
        w4 = w.reshape(k, 4, H)
        w4 = jnp.pad(w4, ((0, kp - k), (0, 0), (0, Hp - H)))
        return w4.reshape(kp, 4 * Hp)

    def pad_gate_b(b):
        b4 = b.reshape(1, 4, H)
        b4 = jnp.pad(b4, ((0, 0), (0, 0), (0, Hp - H)))        # padded lanes = 0
        return b4.reshape(1, 4 * Hp)

    args = [x_flat]
    for layer, (w_ih, w_hh, bias) in enumerate(params["lstm"]):
        kp = Dp if layer == 0 else Hp
        args += [pad_gate_w(w_ih, kp), pad_gate_w(w_hh, Hp), pad_gate_b(bias)]

    # Zero-pad head weights to lane-dense widths (zeros preserve the math).
    w1p = jnp.pad(params["w1"], ((0, Hp - H), (0, F1p - F1)))
    b1p = jnp.pad(params["b1"], ((0, 0), (0, F1p - F1)))
    w2p = jnp.pad(params["w2"], ((0, F1p - F1), (0, Cp - C)))
    b2p = jnp.pad(params["b2"], ((0, 0), (0, Cp - C)))
    args += [w1p, b1p, w2p, b2p]

    # Advisory cost estimate for the XLA scheduler around the custom call.
    flops = 2 * (T * Bp) * Dp * 4 * Hp                          # hoisted layer-0 proj
    flops += L * 2 * T * Bp * Hp * 4 * Hp                       # recurrent matmuls
    flops += (L - 1) * 2 * T * Bp * Hp * 4 * Hp                 # per-step layer>=1 proj
    flops += 2 * (L * Bp) * Hp * F1p + 2 * (L * Bp) * F1p * Cp  # MLP head
    transcendentals = 5 * T * Bp * Hp * L                       # 3 sigmoid + 2 tanh / step
    bytes_accessed = 4 * (sum(int(a.size) for a in args) + L * Bp * Cp)

    kernel = _make_fused_kernel(T, Bp, Hp, L)
    out_padded = pl.pallas_call(
        kernel,
        out_shape=jax.ShapeDtypeStruct((L * Bp, Cp), jnp.float32),
        compiler_params=pltpu.CompilerParams(vmem_limit_bytes=32 * 1024 * 1024),
        cost_estimate=pl.CostEstimate(flops=flops,
                                      transcendentals=transcendentals,
                                      bytes_accessed=bytes_accessed),
    )(*args)

    # Slice padding back off: real batch rows per layer, real class columns.
    out = out_padded.reshape(L, Bp, Cp)[:, :B, :C].reshape(L * B, C)
    return out


# ----------------------------------------------------------------------------
# Deterministic parameter init (PyTorch-style, uniform(-k, k), k = 1/sqrt(H))
# ----------------------------------------------------------------------------
def init_params(key, num_classes, input_size, hidden_size, num_layers):
    k = 1.0 / jnp.sqrt(hidden_size)
    keys = jax.random.split(key, num_layers * 4 + 4)
    ki = iter(keys)

    lstm_params = []
    for layer in range(num_layers):
        d_in = input_size if layer == 0 else hidden_size
        # PyTorch stores weight_ih_l{k}: (4H, D); we keep the transpose (D, 4H).
        w_ih = jax.random.uniform(next(ki), (d_in, 4 * hidden_size), jnp.float32, -k, k)
        w_hh = jax.random.uniform(next(ki), (hidden_size, 4 * hidden_size), jnp.float32, -k, k)
        b_ih = jax.random.uniform(next(ki), (4 * hidden_size,), jnp.float32, -k, k)
        b_hh = jax.random.uniform(next(ki), (4 * hidden_size,), jnp.float32, -k, k)
        lstm_params.append((w_ih, w_hh, (b_ih + b_hh).reshape(1, -1)))

    k1 = 1.0 / jnp.sqrt(hidden_size)
    w1 = jax.random.uniform(next(ki), (hidden_size, 100), jnp.float32, -k1, k1)
    b1 = jax.random.uniform(next(ki), (1, 100), jnp.float32, -k1, k1)
    k2 = 1.0 / jnp.sqrt(100.0)
    w2 = jax.random.uniform(next(ki), (100, num_classes), jnp.float32, -k2, k2)
    b2 = jax.random.uniform(next(ki), (1, num_classes), jnp.float32, -k2, k2)

    return {"lstm": lstm_params, "w1": w1, "b1": b1, "w2": w2, "b2": b2}


# ----------------------------------------------------------------------------
# Pure-JAX reference (lax.scan) for the correctness check
# ----------------------------------------------------------------------------
def lstm1_reference(x_btd, params):
    B = x_btd.shape[0]
    inp = jnp.transpose(x_btd, (1, 0, 2))  # (T, B, D)
    h_lasts = []
    for (w_ih, w_hh, bias) in params["lstm"]:
        H = w_hh.shape[0]

        def step(carry, x_t):
            h, c = carry
            gates = x_t @ w_ih + h @ w_hh + bias
            i = jax.nn.sigmoid(gates[:, 0 * H:1 * H])
            f = jax.nn.sigmoid(gates[:, 1 * H:2 * H])
            g = jnp.tanh(gates[:, 2 * H:3 * H])
            o = jax.nn.sigmoid(gates[:, 3 * H:4 * H])
            c = f * c + i * g
            h = o * jnp.tanh(c)
            return (h, c), h

        (h_f, _), ys = jax.lax.scan(step,
                                    (jnp.zeros((B, H), jnp.float32),
                                     jnp.zeros((B, H), jnp.float32)),
                                    inp)
        inp = ys
        h_lasts.append(h_f)
    hn = jnp.concatenate(h_lasts, axis=0)
    z = jnp.maximum(jnp.maximum(hn, 0.0) @ params["w1"] + params["b1"], 0.0)
    return z @ params["w2"] + params["b2"]


if __name__ == "__main__":
    # Small config: LSTM1(num_classes=10, input_size=16, hidden_size=32,
    #                     num_layers=2, seq_length=8), batch=2
    num_classes, input_size, hidden_size, num_layers, seq_length, batch = 10, 16, 32, 2, 8, 2

    key = jax.random.PRNGKey(0)
    pkey, xkey = jax.random.split(key)
    params = init_params(pkey, num_classes, input_size, hidden_size, num_layers)

    x = jax.random.normal(xkey, (batch, seq_length, input_size), dtype=jnp.float32)

    fwd = jax.jit(lstm1_forward)
    out = jax.block_until_ready(fwd(x, params))
    ref = jax.block_until_ready(lstm1_reference(x, params))

    assert out.shape == (num_layers * batch, num_classes), out.shape
    assert jnp.allclose(out, ref, atol=1e-4, rtol=1e-4), "mismatch vs reference"

    print("KERNEL_OK")
</pallas_src>

<mosaic_0001>
module attributes {stable_mosaic.version = 11 : i64} {
  func.func @kernel(%arg0: memref<64x128xf32, #tpu.memory_space<vmem>>, %arg1: memref<128x512xf32, #tpu.memory_space<vmem>>, %arg2: memref<128x512xf32, #tpu.memory_space<vmem>>, %arg3: memref<1x512xf32, #tpu.memory_space<vmem>>, %arg4: memref<128x512xf32, #tpu.memory_space<vmem>>, %arg5: memref<128x512xf32, #tpu.memory_space<vmem>>, %arg6: memref<1x512xf32, #tpu.memory_space<vmem>>, %arg7: memref<128x128xf32, #tpu.memory_space<vmem>>, %arg8: memref<1x128xf32, #tpu.memory_space<vmem>>, %arg9: memref<128x128xf32, #tpu.memory_space<vmem>>, %arg10: memref<1x128xf32, #tpu.memory_space<vmem>>, %arg11: memref<16x128xf32, #tpu.memory_space<vmem>>) attributes {dimension_semantics = [], scalar_prefetch = 0 : i64, scratch_operands = 0 : i64, tpu.core_type = #tpu.core_type<tc>} {
    %c0 = arith.constant 0 : index
    %c0_0 = arith.constant 0 : index
    %0 = vector.load %arg1[%c0, %c0_0] : memref<128x512xf32, #tpu.memory_space<vmem>>, vector<128x512xf32>
    %c0_1 = arith.constant 0 : index
    %c0_2 = arith.constant 0 : index
    %1 = vector.load %arg4[%c0_1, %c0_2] : memref<128x512xf32, #tpu.memory_space<vmem>>, vector<128x512xf32>
    %c0_3 = arith.constant 0 : index
    %c0_4 = arith.constant 0 : index
    %2 = vector.load %arg2[%c0_3, %c0_4] : memref<128x512xf32, #tpu.memory_space<vmem>>, vector<128x512xf32>
    %c0_5 = arith.constant 0 : index
    %c0_6 = arith.constant 0 : index
    %3 = vector.load %arg5[%c0_5, %c0_6] : memref<128x512xf32, #tpu.memory_space<vmem>>, vector<128x512xf32>
    %c0_7 = arith.constant 0 : index
    %c0_8 = arith.constant 0 : index
    %4 = vector.load %arg3[%c0_7, %c0_8] : memref<1x512xf32, #tpu.memory_space<vmem>>, vector<1x512xf32>
    %c0_9 = arith.constant 0 : index
    %c0_10 = arith.constant 0 : index
    %5 = vector.load %arg6[%c0_9, %c0_10] : memref<1x512xf32, #tpu.memory_space<vmem>>, vector<1x512xf32>
    %c0_11 = arith.constant 0 : index
    %c0_12 = arith.constant 0 : index
    %6 = vector.load %arg0[%c0_11, %c0_12] : memref<64x128xf32, #tpu.memory_space<vmem>>, vector<64x128xf32>
    %cst = arith.constant dense<0.000000e+00> : vector<64x512xf32>
    %7 = tpu.matmul %6, %0, %cst {dimension_numbers = #tpu.dot_dimension_numbers<[1], [0], [0], [1], [0, 0, 1, 1], [], []>} : vector<64x128xf32>, vector<128x512xf32>, vector<64x512xf32> -> vector<64x512xf32>
    %8 = vector.broadcast %4 : vector<1x512xf32> to vector<64x512xf32>
    %9 = arith.addf %7, %8 : vector<64x512xf32>
    %cst_13 = arith.constant 0.000000e+00 : f32
    %10 = vector.broadcast %cst_13 : f32 to vector<8x128xf32>
    %cst_14 = arith.constant 0.000000e+00 : f32
    %11 = vector.broadcast %cst_14 : f32 to vector<8x128xf32>
    %cst_15 = arith.constant 0.000000e+00 : f32
    %12 = vector.broadcast %cst_15 : f32 to vector<8x128xf32>
    %cst_16 = arith.constant 0.000000e+00 : f32
    %13 = vector.broadcast %cst_16 : f32 to vector<8x128xf32>
    %14 = vector.extract_strided_slice %9 {offsets = [0, 0], sizes = [8, 512], strides = [1, 1]} : vector<64x512xf32> to vector<8x512xf32>
    %cst_17 = arith.constant dense<0.000000e+00> : vector<8x512xf32>
    %15 = tpu.matmul %10, %2, %cst_17 {dimension_numbers = #tpu.dot_dimension_numbers<[1], [0], [0], [1], [0, 0, 1, 1], [], []>} : vector<8x128xf32>, vector<128x512xf32>, vector<8x512xf32> -> vector<8x512xf32>
    %16 = arith.addf %14, %15 : vector<8x512xf32>
    %17 = vector.extract_strided_slice %16 {offsets = [0, 0], sizes = [8, 128], strides = [1, 1]} : vector<8x512xf32> to vector<8x128xf32>
    %18 = arith.negf %17 : vector<8x128xf32>
    %19 = math.exp %18 : vector<8x128xf32>
    %cst_18 = arith.constant 1.000000e+00 : f32
    %20 = vector.broadcast %cst_18 : f32 to vector<8x128xf32>
    %21 = arith.addf %20, %19 : vector<8x128xf32>
    %22 = arith.divf %20, %21 : vector<8x128xf32>
    %23 = vector.extract_strided_slice %16 {offsets = [0, 128], sizes = [8, 128], strides = [1, 1]} : vector<8x512xf32> to vector<8x128xf32>
    %24 = arith.negf %23 : vector<8x128xf32>
    %25 = math.exp %24 : vector<8x128xf32>
    %cst_19 = arith.constant 1.000000e+00 : f32
    %26 = vector.broadcast %cst_19 : f32 to vector<8x128xf32>
    %27 = arith.addf %26, %25 : vector<8x128xf32>
    %28 = arith.divf %26, %27 : vector<8x128xf32>
    %29 = vector.extract_strided_slice %16 {offsets = [0, 256], sizes = [8, 128], strides = [1, 1]} : vector<8x512xf32> to vector<8x128xf32>
    %30 = math.tanh %29 : vector<8x128xf32>
    %31 = vector.extract_strided_slice %16 {offsets = [0, 384], sizes = [8, 128], strides = [1, 1]} : vector<8x512xf32> to vector<8x128xf32>
    %32 = arith.negf %31 : vector<8x128xf32>
    %33 = math.exp %32 : vector<8x128xf32>
    %cst_20 = arith.constant 1.000000e+00 : f32
    %34 = vector.broadcast %cst_20 : f32 to vector<8x128xf32>
    %35 = arith.addf %34, %33 : vector<8x128xf32>
    %36 = arith.divf %34, %35 : vector<8x128xf32>
    %37 = arith.mulf %28, %12 : vector<8x128xf32>
    %38 = arith.mulf %22, %30 : vector<8x128xf32>
    %39 = arith.addf %37, %38 : vector<8x128xf32>
    %40 = math.tanh %39 : vector<8x128xf32>
    %41 = arith.mulf %36, %40 : vector<8x128xf32>
    %42 = vector.extract_strided_slice %9 {offsets = [8, 0], sizes = [8, 512], strides = [1, 1]} : vector<64x512xf32> to vector<8x512xf32>
    %cst_21 = arith.constant dense<0.000000e+00> : vector<8x512xf32>
    %43 = tpu.matmul %41, %2, %cst_21 {dimension_numbers = #tpu.dot_dimension_numbers<[1], [0], [0], [1], [0, 0, 1, 1], [], []>} : vector<8x128xf32>, vector<128x512xf32>, vector<8x512xf32> -> vector<8x512xf32>
    %44 = arith.addf %42, %43 : vector<8x512xf32>
    %45 = vector.extract_strided_slice %44 {offsets = [0, 0], sizes = [8, 128], strides = [1, 1]} : vector<8x512xf32> to vector<8x128xf32>
    %46 = arith.negf %45 : vector<8x128xf32>
    %47 = math.exp %46 : vector<8x128xf32>
    %cst_22 = arith.constant 1.000000e+00 : f32
    %48 = vector.broadcast %cst_22 : f32 to vector<8x128xf32>
    %49 = arith.addf %48, %47 : vector<8x128xf32>
    %50 = arith.divf %48, %49 : vector<8x128xf32>
    %51 = vector.extract_strided_slice %44 {offsets = [0, 128], sizes = [8, 128], strides = [1, 1]} : vector<8x512xf32> to vector<8x128xf32>
    %52 = arith.negf %51 : vector<8x128xf32>
    %53 = math.exp %52 : vector<8x128xf32>
    %cst_23 = arith.constant 1.000000e+00 : f32
    %54 = vector.broadcast %cst_23 : f32 to vector<8x128xf32>
    %55 = arith.addf %54, %53 : vector<8x128xf32>
    %56 = arith.divf %54, %55 : vector<8x128xf32>
    %57 = vector.extract_strided_slice %44 {offsets = [0, 256], sizes = [8, 128], strides = [1, 1]} : vector<8x512xf32> to vector<8x128xf32>
    %58 = math.tanh %57 : vector<8x128xf32>
    %59 = vector.extract_strided_slice %44 {offsets = [0, 384], sizes = [8, 128], strides = [1, 1]} : vector<8x512xf32> to vector<8x128xf32>
    %60 = arith.negf %59 : vector<8x128xf32>
    %61 = math.exp %60 : vector<8x128xf32>
    %cst_24 = arith.constant 1.000000e+00 : f32
    %62 = vector.broadcast %cst_24 : f32 to vector<8x128xf32>
    %63 = arith.addf %62, %61 : vector<8x128xf32>
    %64 = arith.divf %62, %63 : vector<8x128xf32>
    %65 = arith.mulf %56, %39 : vector<8x128xf32>
    %66 = arith.mulf %50, %58 : vector<8x128xf32>
    %67 = arith.addf %65, %66 : vector<8x128xf32>
    %68 = math.tanh %67 : vector<8x128xf32>
    %69 = arith.mulf %64, %68 : vector<8x128xf32>
    %cst_25 = arith.constant dense<0.000000e+00> : vector<8x512xf32>
    %70 = tpu.matmul %41, %1, %cst_25 {dimension_numbers = #tpu.dot_dimension_numbers<[1], [0], [0], [1], [0, 0, 1, 1], [], []>} : vector<8x128xf32>, vector<128x512xf32>, vector<8x512xf32> -> vector<8x512xf32>
    %71 = vector.broadcast %5 : vector<1x512xf32> to vector<8x512xf32>
    %72 = arith.addf %70, %71 : vector<8x512xf32>
    %cst_26 = arith.constant dense<0.000000e+00> : vector<8x512xf32>
    %73 = tpu.matmul %11, %3, %cst_26 {dimension_numbers = #tpu.dot_dimension_numbers<[1], [0], [0], [1], [0, 0, 1, 1], [], []>} : vector<8x128xf32>, vector<128x512xf32>, vector<8x512xf32> -> vector<8x512xf32>
    %74 = arith.addf %72, %73 : vector<8x512xf32>
    %75 = vector.extract_strided_slice %74 {offsets = [0, 0], sizes = [8, 128], strides = [1, 1]} : vector<8x512xf32> to vector<8x128xf32>
    %76 = arith.negf %75 : vector<8x128xf32>
    %77 = math.exp %76 : vector<8x128xf32>
    %cst_27 = arith.constant 1.000000e+00 : f32
    %78 = vector.broadcast %cst_27 : f32 to vector<8x128xf32>
    %79 = arith.addf %78, %77 : vector<8x128xf32>
    %80 = arith.divf %78, %79 : vector<8x128xf32>
    %81 = vector.extract_strided_slice %74 {offsets = [0, 128], sizes = [8, 128], strides = [1, 1]} : vector<8x512xf32> to vector<8x128xf32>
    %82 = arith.negf %81 : vector<8x128xf32>
    %83 = math.exp %82 : vector<8x128xf32>
    %cst_28 = arith.constant 1.000000e+00 : f32
    %84 = vector.broadcast %cst_28 : f32 to vector<8x128xf32>
    %85 = arith.addf %84, %83 : vector<8x128xf32>
    %86 = arith.divf %84, %85 : vector<8x128xf32>
    %87 = vector.extract_strided_slice %74 {offsets = [0, 256], sizes = [8, 128], strides = [1, 1]} : vector<8x512xf32> to vector<8x128xf32>
    %88 = math.tanh %87 : vector<8x128xf32>
    %89 = vector.extract_strided_slice %74 {offsets = [0, 384], sizes = [8, 128], strides = [1, 1]} : vector<8x512xf32> to vector<8x128xf32>
    %90 = arith.negf %89 : vector<8x128xf32>
    %91 = math.exp %90 : vector<8x128xf32>
    %cst_29 = arith.constant 1.000000e+00 : f32
    %92 = vector.broadcast %cst_29 : f32 to vector<8x128xf32>
    %93 = arith.addf %92, %91 : vector<8x128xf32>
    %94 = arith.divf %92, %93 : vector<8x128xf32>
    %95 = arith.mulf %86, %13 : vector<8x128xf32>
    %96 = arith.mulf %80, %88 : vector<8x128xf32>
    %97 = arith.addf %95, %96 : vector<8x128xf32>
    %98 = math.tanh %97 : vector<8x128xf32>
    %99 = arith.mulf %94, %98 : vector<8x128xf32>
    %100 = vector.extract_strided_slice %9 {offsets = [16, 0], sizes = [8, 512], strides = [1, 1]} : vector<64x512xf32> to vector<8x512xf32>
    %cst_30 = arith.constant dense<0.000000e+00> : vector<8x512xf32>
    %101 = tpu.matmul %69, %2, %cst_30 {dimension_numbers = #tpu.dot_dimension_numbers<[1], [0], [0], [1], [0, 0, 1, 1], [], []>} : vector<8x128xf32>, vector<128x512xf32>, vector<8x512xf32> -> vector<8x512xf32>
    %102 = arith.addf %100, %101 : vector<8x512xf32>
    %103 = vector.extract_strided_slice %102 {offsets = [0, 0], sizes = [8, 128], strides = [1, 1]} : vector<8x512xf32> to vector<8x128xf32>
    %104 = arith.negf %103 : vector<8x128xf32>
    %105 = math.exp %104 : vector<8x128xf32>
    %cst_31 = arith.constant 1.000000e+00 : f32
    %106 = vector.broadcast %cst_31 : f32 to vector<8x128xf32>
    %107 = arith.addf %106, %105 : vector<8x128xf32>
    %108 = arith.divf %106, %107 : vector<8x128xf32>
    %109 = vector.extract_strided_slice %102 {offsets = [0, 128], sizes = [8, 128], strides = [1, 1]} : vector<8x512xf32> to vector<8x128xf32>
    %110 = arith.negf %109 : vector<8x128xf32>
    %111 = math.exp %110 : vector<8x128xf32>
    %cst_32 = arith.constant 1.000000e+00 : f32
    %112 = vector.broadcast %cst_32 : f32 to vector<8x128xf32>
    %113 = arith.addf %112, %111 : vector<8x128xf32>
    %114 = arith.divf %112, %113 : vector<8x128xf32>
    %115 = vector.extract_strided_slice %102 {offsets = [0, 256], sizes = [8, 128], strides = [1, 1]} : vector<8x512xf32> to vector<8x128xf32>
    %116 = math.tanh %115 : vector<8x128xf32>
    %117 = vector.extract_strided_slice %102 {offsets = [0, 384], sizes = [8, 128], strides = [1, 1]} : vector<8x512xf32> to vector<8x128xf32>
    %118 = arith.negf %117 : vector<8x128xf32>
    %119 = math.exp %118 : vector<8x128xf32>
    %cst_33 = arith.constant 1.000000e+00 : f32
    %120 = vector.broadcast %cst_33 : f32 to vector<8x128xf32>
    %121 = arith.addf %120, %119 : vector<8x128xf32>
    %122 = arith.divf %120, %121 : vector<8x128xf32>
    %123 = arith.mulf %114, %67 : vector<8x128xf32>
    %124 = arith.mulf %108, %116 : vector<8x128xf32>
    %125 = arith.addf %123, %124 : vector<8x128xf32>
    %126 = math.tanh %125 : vector<8x128xf32>
    %127 = arith.mulf %122, %126 : vector<8x128xf32>
    %cst_34 = arith.constant dense<0.000000e+00> : vector<8x512xf32>
    %128 = tpu.matmul %69, %1, %cst_34 {dimension_numbers = #tpu.dot_dimension_numbers<[1], [0], [0], [1], [0, 0, 1, 1], [], []>} : vector<8x128xf32>, vector<128x512xf32>, vector<8x512xf32> -> vector<8x512xf32>
    %129 = vector.broadcast %5 : vector<1x512xf32> to vector<8x512xf32>
    %130 = arith.addf %128, %129 : vector<8x512xf32>
    %cst_35 = arith.constant dense<0.000000e+00> : vector<8x512xf32>
    %131 = tpu.matmul %99, %3, %cst_35 {dimension_numbers = #tpu.dot_dimension_numbers<[1], [0], [0], [1], [0, 0, 1, 1], [], []>} : vector<8x128xf32>, vector<128x512xf32>, vector<8x512xf32> -> vector<8x512xf32>
    %132 = arith.addf %130, %131 : vector<8x512xf32>
    %133 = vector.extract_strided_slice %132 {offsets = [0, 0], sizes = [8, 128], strides = [1, 1]} : vector<8x512xf32> to vector<8x128xf32>
    %134 = arith.negf %133 : vector<8x128xf32>
    %135 = math.exp %134 : vector<8x128xf32>
    %cst_36 = arith.constant 1.000000e+00 : f32
    %136 = vector.broadcast %cst_36 : f32 to vector<8x128xf32>
    %137 = arith.addf %136, %135 : vector<8x128xf32>
    %138 = arith.divf %136, %137 : vector<8x128xf32>
    %139 = vector.extract_strided_slice %132 {offsets = [0, 128], sizes = [8, 128], strides = [1, 1]} : vector<8x512xf32> to vector<8x128xf32>
    %140 = arith.negf %139 : vector<8x128xf32>
    %141 = math.exp %140 : vector<8x128xf32>
    %cst_37 = arith.constant 1.000000e+00 : f32
    %142 = vector.broadcast %cst_37 : f32 to vector<8x128xf32>
    %143 = arith.addf %142, %141 : vector<8x128xf32>
    %144 = arith.divf %142, %143 : vector<8x128xf32>
    %145 = vector.extract_strided_slice %132 {offsets = [0, 256], sizes = [8, 128], strides = [1, 1]} : vector<8x512xf32> to vector<8x128xf32>
    %146 = math.tanh %145 : vector<8x128xf32>
    %147 = vector.extract_strided_slice %132 {offsets = [0, 384], sizes = [8, 128], strides = [1, 1]} : vector<8x512xf32> to vector<8x128xf32>
    %148 = arith.negf %147 : vector<8x128xf32>
    %149 = math.exp %148 : vector<8x128xf32>
    %cst_38 = arith.constant 1.000000e+00 : f32
    %150 = vector.broadcast %cst_38 : f32 to vector<8x128xf32>
    %151 = arith.addf %150, %149 : vector<8x128xf32>
    %152 = arith.divf %150, %151 : vector<8x128xf32>
    %153 = arith.mulf %144, %97 : vector<8x128xf32>
    %154 = arith.mulf %138, %146 : vector<8x128xf32>
    %155 = arith.addf %153, %154 : vector<8x128xf32>
    %156 = math.tanh %155 : vector<8x128xf32>
    %157 = arith.mulf %152, %156 : vector<8x128xf32>
    %158 = vector.extract_strided_slice %9 {offsets = [24, 0], sizes = [8, 512], strides = [1, 1]} : vector<64x512xf32> to vector<8x512xf32>
    %cst_39 = arith.constant dense<0.000000e+00> : vector<8x512xf32>
    %159 = tpu.matmul %127, %2, %cst_39 {dimension_numbers = #tpu.dot_dimension_numbers<[1], [0], [0], [1], [0, 0, 1, 1], [], []>} : vector<8x128xf32>, vector<128x512xf32>, vector<8x512xf32> -> vector<8x512xf32>
    %160 = arith.addf %158, %159 : vector<8x512xf32>
    %161 = vector.extract_strided_slice %160 {offsets = [0, 0], sizes = [8, 128], strides = [1, 1]} : vector<8x512xf32> to vector<8x128xf32>
    %162 = arith.negf %161 : vector<8x128xf32>
    %163 = math.exp %162 : vector<8x128xf32>
    %cst_40 = arith.constant 1.000000e+00 : f32
    %164 = vector.broadcast %cst_40 : f32 to vector<8x128xf32>
    %165 = arith.addf %164, %163 : vector<8x128xf32>
    %166 = arith.divf %164, %165 : vector<8x128xf32>
    %167 = vector.extract_strided_slice %160 {offsets = [0, 128], sizes = [8, 128], strides = [1, 1]} : vector<8x512xf32> to vector<8x128xf32>
    %168 = arith.negf %167 : vector<8x128xf32>
    %169 = math.exp %168 : vector<8x128xf32>
    %cst_41 = arith.constant 1.000000e+00 : f32
    %170 = vector.broadcast %cst_41 : f32 to vector<8x128xf32>
    %171 = arith.addf %170, %169 : vector<8x128xf32>
    %172 = arith.divf %170, %171 : vector<8x128xf32>
    %173 = vector.extract_strided_slice %160 {offsets = [0, 256], sizes = [8, 128], strides = [1, 1]} : vector<8x512xf32> to vector<8x128xf32>
    %174 = math.tanh %173 : vector<8x128xf32>
    %175 = vector.extract_strided_slice %160 {offsets = [0, 384], sizes = [8, 128], strides = [1, 1]} : vector<8x512xf32> to vector<8x128xf32>
    %176 = arith.negf %175 : vector<8x128xf32>
    %177 = math.exp %176 : vector<8x128xf32>
    %cst_42 = arith.constant 1.000000e+00 : f32
    %178 = vector.broadcast %cst_42 : f32 to vector<8x128xf32>
    %179 = arith.addf %178, %177 : vector<8x128xf32>
    %180 = arith.divf %178, %179 : vector<8x128xf32>
    %181 = arith.mulf %172, %125 : vector<8x128xf32>
    %182 = arith.mulf %166, %174 : vector<8x128xf32>
    %183 = arith.addf %181, %182 : vector<8x128xf32>
    %184 = math.tanh %183 : vector<8x128xf32>
    %185 = arith.mulf %180, %184 : vector<8x128xf32>
    %cst_43 = arith.constant dense<0.000000e+00> : vector<8x512xf32>
    %186 = tpu.matmul %127, %1, %cst_43 {dimension_numbers = #tpu.dot_dimension_numbers<[1], [0], [0], [1], [0, 0, 1, 1], [], []>} : vector<8x128xf32>, vector<128x512xf32>, vector<8x512xf32> -> vector<8x512xf32>
    %187 = vector.broadcast %5 : vector<1x512xf32> to vector<8x512xf32>
    %188 = arith.addf %186, %187 : vector<8x512xf32>
    %cst_44 = arith.constant dense<0.000000e+00> : vector<8x512xf32>
    %189 = tpu.matmul %157, %3, %cst_44 {dimension_numbers = #tpu.dot_dimension_numbers<[1], [0], [0], [1], [0, 0, 1, 1], [], []>} : vector<8x128xf32>, vector<128x512xf32>, vector<8x512xf32> -> vector<8x512xf32>
    %190 = arith.addf %188, %189 : vector<8x512xf32>
    %191 = vector.extract_strided_slice %190 {offsets = [0, 0], sizes = [8, 128], strides = [1, 1]} : vector<8x512xf32> to vector<8x128xf32>
    %192 = arith.negf %191 : vector<8x128xf32>
    %193 = math.exp %192 : vector<8x128xf32>
    %cst_45 = arith.constant 1.000000e+00 : f32
    %194 = vector.broadcast %cst_45 : f32 to vector<8x128xf32>
    %195 = arith.addf %194, %193 : vector<8x128xf32>
    %196 = arith.divf %194, %195 : vector<8x128xf32>
    %197 = vector.extract_strided_slice %190 {offsets = [0, 128], sizes = [8, 128], strides = [1, 1]} : vector<8x512xf32> to vector<8x128xf32>
    %198 = arith.negf %197 : vector<8x128xf32>
    %199 = math.exp %198 : vector<8x128xf32>
    %cst_46 = arith.constant 1.000000e+00 : f32
    %200 = vector.broadcast %cst_46 : f32 to vector<8x128xf32>
    %201 = arith.addf %200, %199 : vector<8x128xf32>
    %202 = arith.divf %200, %201 : vector<8x128xf32>
    %203 = vector.extract_strided_slice %190 {offsets = [0, 256], sizes = [8, 128], strides = [1, 1]} : vector<8x512xf32> to vector<8x128xf32>
    %204 = math.tanh %203 : vector<8x128xf32>
    %205 = vector.extract_strided_slice %190 {offsets = [0, 384], sizes = [8, 128], strides = [1, 1]} : vector<8x512xf32> to vector<8x128xf32>
    %206 = arith.negf %205 : vector<8x128xf32>
    %207 = math.exp %206 : vector<8x128xf32>
    %cst_47 = arith.constant 1.000000e+00 : f32
    %208 = vector.broadcast %cst_47 : f32 to vector<8x128xf32>
    %209 = arith.addf %208, %207 : vector<8x128xf32>
    %210 = arith.divf %208, %209 : vector<8x128xf32>
    %211 = arith.mulf %202, %155 : vector<8x128xf32>
    %212 = arith.mulf %196, %204 : vector<8x128xf32>
    %213 = arith.addf %211, %212 : vector<8x128xf32>
    %214 = math.tanh %213 : vector<8x128xf32>
    %215 = arith.mulf %210, %214 : vector<8x128xf32>
    %216 = vector.extract_strided_slice %9 {offsets = [32, 0], sizes = [8, 512], strides = [1, 1]} : vector<64x512xf32> to vector<8x512xf32>
    %cst_48 = arith.constant dense<0.000000e+00> : vector<8x512xf32>
    %217 = tpu.matmul %185, %2, %cst_48 {dimension_numbers = #tpu.dot_dimension_numbers<[1], [0], [0], [1], [0, 0, 1, 1], [], []>} : vector<8x128xf32>, vector<128x512xf32>, vector<8x512xf32> -> vector<8x512xf32>
    %218 = arith.addf %216, %217 : vector<8x512xf32>
    %219 = vector.extract_strided_slice %218 {offsets = [0, 0], sizes = [8, 128], strides = [1, 1]} : vector<8x512xf32> to vector<8x128xf32>
    %220 = arith.negf %219 : vector<8x128xf32>
    %221 = math.exp %220 : vector<8x128xf32>
    %cst_49 = arith.constant 1.000000e+00 : f32
    %222 = vector.broadcast %cst_49 : f32 to vector<8x128xf32>
    %223 = arith.addf %222, %221 : vector<8x128xf32>
    %224 = arith.divf %222, %223 : vector<8x128xf32>
    %225 = vector.extract_strided_slice %218 {offsets = [0, 128], sizes = [8, 128], strides = [1, 1]} : vector<8x512xf32> to vector<8x128xf32>
    %226 = arith.negf %225 : vector<8x128xf32>
    %227 = math.exp %226 : vector<8x128xf32>
    %cst_50 = arith.constant 1.000000e+00 : f32
    %228 = vector.broadcast %cst_50 : f32 to vector<8x128xf32>
    %229 = arith.addf %228, %227 : vector<8x128xf32>
    %230 = arith.divf %228, %229 : vector<8x128xf32>
    %231 = vector.extract_strided_slice %218 {offsets = [0, 256], sizes = [8, 128], strides = [1, 1]} : vector<8x512xf32> to vector<8x128xf32>
    %232 = math.tanh %231 : vector<8x128xf32>
    %233 = vector.extract_strided_slice %218 {offsets = [0, 384], sizes = [8, 128], strides = [1, 1]} : vector<8x512xf32> to vector<8x128xf32>
    %234 = arith.negf %233 : vector<8x128xf32>
    %235 = math.exp %234 : vector<8x128xf32>
    %cst_51 = arith.constant 1.000000e+00 : f32
    %236 = vector.broadcast %cst_51 : f32 to vector<8x128xf32>
    %237 = arith.addf %236, %235 : vector<8x128xf32>
    %238 = arith.divf %236, %237 : vector<8x128xf32>
    %239 = arith.mulf %230, %183 : vector<8x128xf32>
    %240 = arith.mulf %224, %232 : vector<8x128xf32>
    %241 = arith.addf %239, %240 : vector<8x128xf32>
    %242 = math.tanh %241 : vector<8x128xf32>
    %243 = arith.mulf %238, %242 : vector<8x128xf32>
    %cst_52 = arith.constant dense<0.000000e+00> : vector<8x512xf32>
    %244 = tpu.matmul %185, %1, %cst_52 {dimension_numbers = #tpu.dot_dimension_numbers<[1], [0], [0], [1], [0, 0, 1, 1], [], []>} : vector<8x128xf32>, vector<128x512xf32>, vector<8x512xf32> -> vector<8x512xf32>
    %245 = vector.broadcast %5 : vector<1x512xf32> to vector<8x512xf32>
    %246 = arith.addf %244, %245 : vector<8x512xf32>
    %cst_53 = arith.constant dense<0.000000e+00> : vector<8x512xf32>
    %247 = tpu.matmul %215, %3, %cst_53 {dimension_numbers = #tpu.dot_dimension_numbers<[1], [0], [0], [1], [0, 0, 1, 1], [], []>} : vector<8x128xf32>, vector<128x512xf32>, vector<8x512xf32> -> vector<8x512xf32>
    %248 = arith.addf %246, %247 : vector<8x512xf32>
    %249 = vector.extract_strided_slice %248 {offsets = [0, 0], sizes = [8, 128], strides = [1, 1]} : vector<8x512xf32> to vector<8x128xf32>
    %250 = arith.negf %249 : vector<8x128xf32>
    %251 = math.exp %250 : vector<8x128xf32>
    %cst_54 = arith.constant 1.000000e+00 : f32
    %252 = vector.broadcast %cst_54 : f32 to vector<8x128xf32>
    %253 = arith.addf %252, %251 : vector<8x128xf32>
    %254 = arith.divf %252, %253 : vector<8x128xf32>
    %255 = vector.extract_strided_slice %248 {offsets = [0, 128], sizes = [8, 128], strides = [1, 1]} : vector<8x512xf32> to vector<8x128xf32>
    %256 = arith.negf %255 : vector<8x128xf32>
    %257 = math.exp %256 : vector<8x128xf32>
    %cst_55 = arith.constant 1.000000e+00 : f32
    %258 = vector.broadcast %cst_55 : f32 to vector<8x128xf32>
    %259 = arith.addf %258, %257 : vector<8x128xf32>
    %260 = arith.divf %258, %259 : vector<8x128xf32>
    %261 = vector.extract_strided_slice %248 {offsets = [0, 256], sizes = [8, 128], strides = [1, 1]} : vector<8x512xf32> to vector<8x128xf32>
    %262 = math.tanh %261 : vector<8x128xf32>
    %263 = vector.extract_strided_slice %248 {offsets = [0, 384], sizes = [8, 128], strides = [1, 1]} : vector<8x512xf32> to vector<8x128xf32>
    %264 = arith.negf %263 : vector<8x128xf32>
    %265 = math.exp %264 : vector<8x128xf32>
    %cst_56 = arith.constant 1.000000e+00 : f32
    %266 = vector.broadcast %cst_56 : f32 to vector<8x128xf32>
    %267 = arith.addf %266, %265 : vector<8x128xf32>
    %268 = arith.divf %266, %267 : vector<8x128xf32>
    %269 = arith.mulf %260, %213 : vector<8x128xf32>
    %270 = arith.mulf %254, %262 : vector<8x128xf32>
    %271 = arith.addf %269, %270 : vector<8x128xf32>
    %272 = math.tanh %271 : vector<8x128xf32>
    %273 = arith.mulf %268, %272 : vector<8x128xf32>
    %274 = vector.extract_strided_slice %9 {offsets = [40, 0], sizes = [8, 512], strides = [1, 1]} : vector<64x512xf32> to vector<8x512xf32>
    %cst_57 = arith.constant dense<0.000000e+00> : vector<8x512xf32>
    %275 = tpu.matmul %243, %2, %cst_57 {dimension_numbers = #tpu.dot_dimension_numbers<[1], [0], [0], [1], [0, 0, 1, 1], [], []>} : vector<8x128xf32>, vector<128x512xf32>, vector<8x512xf32> -> vector<8x512xf32>
    %276 = arith.addf %274, %275 : vector<8x512xf32>
    %277 = vector.extract_strided_slice %276 {offsets = [0, 0], sizes = [8, 128], strides = [1, 1]} : vector<8x512xf32> to vector<8x128xf32>
    %278 = arith.negf %277 : vector<8x128xf32>
    %279 = math.exp %278 : vector<8x128xf32>
    %cst_58 = arith.constant 1.000000e+00 : f32
    %280 = vector.broadcast %cst_58 : f32 to vector<8x128xf32>
    %281 = arith.addf %280, %279 : vector<8x128xf32>
    %282 = arith.divf %280, %281 : vector<8x128xf32>
    %283 = vector.extract_strided_slice %276 {offsets = [0, 128], sizes = [8, 128], strides = [1, 1]} : vector<8x512xf32> to vector<8x128xf32>
    %284 = arith.negf %283 : vector<8x128xf32>
    %285 = math.exp %284 : vector<8x128xf32>
    %cst_59 = arith.constant 1.000000e+00 : f32
    %286 = vector.broadcast %cst_59 : f32 to vector<8x128xf32>
    %287 = arith.addf %286, %285 : vector<8x128xf32>
    %288 = arith.divf %286, %287 : vector<8x128xf32>
    %289 = vector.extract_strided_slice %276 {offsets = [0, 256], sizes = [8, 128], strides = [1, 1]} : vector<8x512xf32> to vector<8x128xf32>
    %290 = math.tanh %289 : vector<8x128xf32>
    %291 = vector.extract_strided_slice %276 {offsets = [0, 384], sizes = [8, 128], strides = [1, 1]} : vector<8x512xf32> to vector<8x128xf32>
    %292 = arith.negf %291 : vector<8x128xf32>
    %293 = math.exp %292 : vector<8x128xf32>
    %cst_60 = arith.constant 1.000000e+00 : f32
    %294 = vector.broadcast %cst_60 : f32 to vector<8x128xf32>
    %295 = arith.addf %294, %293 : vector<8x128xf32>
    %296 = arith.divf %294, %295 : vector<8x128xf32>
    %297 = arith.mulf %288, %241 : vector<8x128xf32>
    %298 = arith.mulf %282, %290 : vector<8x128xf32>
    %299 = arith.addf %297, %298 : vector<8x128xf32>
    %300 = math.tanh %299 : vector<8x128xf32>
    %301 = arith.mulf %296, %300 : vector<8x128xf32>
    %cst_61 = arith.constant dense<0.000000e+00> : vector<8x512xf32>
    %302 = tpu.matmul %243, %1, %cst_61 {dimension_numbers = #tpu.dot_dimension_numbers<[1], [0], [0], [1], [0, 0, 1, 1], [], []>} : vector<8x128xf32>, vector<128x512xf32>, vector<8x512xf32> -> vector<8x512xf32>
    %303 = vector.broadcast %5 : vector<1x512xf32> to vector<8x512xf32>
    %304 = arith.addf %302, %303 : vector<8x512xf32>
    %cst_62 = arith.constant dense<0.000000e+00> : vector<8x512xf32>
    %305 = tpu.matmul %273, %3, %cst_62 {dimension_numbers = #tpu.dot_dimension_numbers<[1], [0], [0], [1], [0, 0, 1, 1], [], []>} : vector<8x128xf32>, vector<128x512xf32>, vector<8x512xf32> -> vector<8x512xf32>
    %306 = arith.addf %304, %305 : vector<8x512xf32>
    %307 = vector.extract_strided_slice %306 {offsets = [0, 0], sizes = [8, 128], strides = [1, 1]} : vector<8x512xf32> to vector<8x128xf32>
    %308 = arith.negf %307 : vector<8x128xf32>
    %309 = math.exp %308 : vector<8x128xf32>
    %cst_63 = arith.constant 1.000000e+00 : f32
    %310 = vector.broadcast %cst_63 : f32 to vector<8x128xf32>
    %311 = arith.addf %310, %309 : vector<8x128xf32>
    %312 = arith.divf %310, %311 : vector<8x128xf32>
    %313 = vector.extract_strided_slice %306 {offsets = [0, 128], sizes = [8, 128], strides = [1, 1]} : vector<8x512xf32> to vector<8x128xf32>
    %314 = arith.negf %313 : vector<8x128xf32>
    %315 = math.exp %314 : vector<8x128xf32>
    %cst_64 = arith.constant 1.000000e+00 : f32
    %316 = vector.broadcast %cst_64 : f32 to vector<8x128xf32>
    %317 = arith.addf %316, %315 : vector<8x128xf32>
    %318 = arith.divf %316, %317 : vector<8x128xf32>
    %319 = vector.extract_strided_slice %306 {offsets = [0, 256], sizes = [8, 128], strides = [1, 1]} : vector<8x512xf32> to vector<8x128xf32>
    %320 = math.tanh %319 : vector<8x128xf32>
    %321 = vector.extract_strided_slice %306 {offsets = [0, 384], sizes = [8, 128], strides = [1, 1]} : vector<8x512xf32> to vector<8x128xf32>
    %322 = arith.negf %321 : vector<8x128xf32>
    %323 = math.exp %322 : vector<8x128xf32>
    %cst_65 = arith.constant 1.000000e+00 : f32
    %324 = vector.broadcast %cst_65 : f32 to vector<8x128xf32>
    %325 = arith.addf %324, %323 : vector<8x128xf32>
    %326 = arith.divf %324, %325 : vector<8x128xf32>
    %327 = arith.mulf %318, %271 : vector<8x128xf32>
    %328 = arith.mulf %312, %320 : vector<8x128xf32>
    %329 = arith.addf %327, %328 : vector<8x128xf32>
    %330 = math.tanh %329 : vector<8x128xf32>
    %331 = arith.mulf %326, %330 : vector<8x128xf32>
    %332 = vector.extract_strided_slice %9 {offsets = [48, 0], sizes = [8, 512], strides = [1, 1]} : vector<64x512xf32> to vector<8x512xf32>
    %cst_66 = arith.constant dense<0.000000e+00> : vector<8x512xf32>
    %333 = tpu.matmul %301, %2, %cst_66 {dimension_numbers = #tpu.dot_dimension_numbers<[1], [0], [0], [1], [0, 0, 1, 1], [], []>} : vector<8x128xf32>, vector<128x512xf32>, vector<8x512xf32> -> vector<8x512xf32>
    %334 = arith.addf %332, %333 : vector<8x512xf32>
    %335 = vector.extract_strided_slice %334 {offsets = [0, 0], sizes = [8, 128], strides = [1, 1]} : vector<8x512xf32> to vector<8x128xf32>
    %336 = arith.negf %335 : vector<8x128xf32>
    %337 = math.exp %336 : vector<8x128xf32>
    %cst_67 = arith.constant 1.000000e+00 : f32
    %338 = vector.broadcast %cst_67 : f32 to vector<8x128xf32>
    %339 = arith.addf %338, %337 : vector<8x128xf32>
    %340 = arith.divf %338, %339 : vector<8x128xf32>
    %341 = vector.extract_strided_slice %334 {offsets = [0, 128], sizes = [8, 128], strides = [1, 1]} : vector<8x512xf32> to vector<8x128xf32>
    %342 = arith.negf %341 : vector<8x128xf32>
    %343 = math.exp %342 : vector<8x128xf32>
    %cst_68 = arith.constant 1.000000e+00 : f32
    %344 = vector.broadcast %cst_68 : f32 to vector<8x128xf32>
    %345 = arith.addf %344, %343 : vector<8x128xf32>
    %346 = arith.divf %344, %345 : vector<8x128xf32>
    %347 = vector.extract_strided_slice %334 {offsets = [0, 256], sizes = [8, 128], strides = [1, 1]} : vector<8x512xf32> to vector<8x128xf32>
    %348 = math.tanh %347 : vector<8x128xf32>
    %349 = vector.extract_strided_slice %334 {offsets = [0, 384], sizes = [8, 128], strides = [1, 1]} : vector<8x512xf32> to vector<8x128xf32>
    %350 = arith.negf %349 : vector<8x128xf32>
    %351 = math.exp %350 : vector<8x128xf32>
    %cst_69 = arith.constant 1.000000e+00 : f32
    %352 = vector.broadcast %cst_69 : f32 to vector<8x128xf32>
    %353 = arith.addf %352, %351 : vector<8x128xf32>
    %354 = arith.divf %352, %353 : vector<8x128xf32>
    %355 = arith.mulf %346, %299 : vector<8x128xf32>
    %356 = arith.mulf %340, %348 : vector<8x128xf32>
    %357 = arith.addf %355, %356 : vector<8x128xf32>
    %358 = math.tanh %357 : vector<8x128xf32>
    %359 = arith.mulf %354, %358 : vector<8x128xf32>
    %cst_70 = arith.constant dense<0.000000e+00> : vector<8x512xf32>
    %360 = tpu.matmul %301, %1, %cst_70 {dimension_numbers = #tpu.dot_dimension_numbers<[1], [0], [0], [1], [0, 0, 1, 1], [], []>} : vector<8x128xf32>, vector<128x512xf32>, vector<8x512xf32> -> vector<8x512xf32>
    %361 = vector.broadcast %5 : vector<1x512xf32> to vector<8x512xf32>
    %362 = arith.addf %360, %361 : vector<8x512xf32>
    %cst_71 = arith.constant dense<0.000000e+00> : vector<8x512xf32>
    %363 = tpu.matmul %331, %3, %cst_71 {dimension_numbers = #tpu.dot_dimension_numbers<[1], [0], [0], [1], [0, 0, 1, 1], [], []>} : vector<8x128xf32>, vector<128x512xf32>, vector<8x512xf32> -> vector<8x512xf32>
    %364 = arith.addf %362, %363 : vector<8x512xf32>
    %365 = vector.extract_strided_slice %364 {offsets = [0, 0], sizes = [8, 128], strides = [1, 1]} : vector<8x512xf32> to vector<8x128xf32>
    %366 = arith.negf %365 : vector<8x128xf32>
    %367 = math.exp %366 : vector<8x128xf32>
    %cst_72 = arith.constant 1.000000e+00 : f32
    %368 = vector.broadcast %cst_72 : f32 to vector<8x128xf32>
    %369 = arith.addf %368, %367 : vector<8x128xf32>
    %370 = arith.divf %368, %369 : vector<8x128xf32>
    %371 = vector.extract_strided_slice %364 {offsets = [0, 128], sizes = [8, 128], strides = [1, 1]} : vector<8x512xf32> to vector<8x128xf32>
    %372 = arith.negf %371 : vector<8x128xf32>
    %373 = math.exp %372 : vector<8x128xf32>
    %cst_73 = arith.constant 1.000000e+00 : f32
    %374 = vector.broadcast %cst_73 : f32 to vector<8x128xf32>
    %375 = arith.addf %374, %373 : vector<8x128xf32>
    %376 = arith.divf %374, %375 : vector<8x128xf32>
    %377 = vector.extract_strided_slice %364 {offsets = [0, 256], sizes = [8, 128], strides = [1, 1]} : vector<8x512xf32> to vector<8x128xf32>
    %378 = math.tanh %377 : vector<8x128xf32>
    %379 = vector.extract_strided_slice %364 {offsets = [0, 384], sizes = [8, 128], strides = [1, 1]} : vector<8x512xf32> to vector<8x128xf32>
    %380 = arith.negf %379 : vector<8x128xf32>
    %381 = math.exp %380 : vector<8x128xf32>
    %cst_74 = arith.constant 1.000000e+00 : f32
    %382 = vector.broadcast %cst_74 : f32 to vector<8x128xf32>
    %383 = arith.addf %382, %381 : vector<8x128xf32>
    %384 = arith.divf %382, %383 : vector<8x128xf32>
    %385 = arith.mulf %376, %329 : vector<8x128xf32>
    %386 = arith.mulf %370, %378 : vector<8x128xf32>
    %387 = arith.addf %385, %386 : vector<8x128xf32>
    %388 = math.tanh %387 : vector<8x128xf32>
    %389 = arith.mulf %384, %388 : vector<8x128xf32>
    %390 = vector.extract_strided_slice %9 {offsets = [56, 0], sizes = [8, 512], strides = [1, 1]} : vector<64x512xf32> to vector<8x512xf32>
    %cst_75 = arith.constant dense<0.000000e+00> : vector<8x512xf32>
    %391 = tpu.matmul %359, %2, %cst_75 {dimension_numbers = #tpu.dot_dimension_numbers<[1], [0], [0], [1], [0, 0, 1, 1], [], []>} : vector<8x128xf32>, vector<128x512xf32>, vector<8x512xf32> -> vector<8x512xf32>
    %392 = arith.addf %390, %391 : vector<8x512xf32>
    %393 = vector.extract_strided_slice %392 {offsets = [0, 0], sizes = [8, 128], strides = [1, 1]} : vector<8x512xf32> to vector<8x128xf32>
    %394 = arith.negf %393 : vector<8x128xf32>
    %395 = math.exp %394 : vector<8x128xf32>
    %cst_76 = arith.constant 1.000000e+00 : f32
    %396 = vector.broadcast %cst_76 : f32 to vector<8x128xf32>
    %397 = arith.addf %396, %395 : vector<8x128xf32>
    %398 = arith.divf %396, %397 : vector<8x128xf32>
    %399 = vector.extract_strided_slice %392 {offsets = [0, 128], sizes = [8, 128], strides = [1, 1]} : vector<8x512xf32> to vector<8x128xf32>
    %400 = arith.negf %399 : vector<8x128xf32>
    %401 = math.exp %400 : vector<8x128xf32>
    %cst_77 = arith.constant 1.000000e+00 : f32
    %402 = vector.broadcast %cst_77 : f32 to vector<8x128xf32>
    %403 = arith.addf %402, %401 : vector<8x128xf32>
    %404 = arith.divf %402, %403 : vector<8x128xf32>
    %405 = vector.extract_strided_slice %392 {offsets = [0, 256], sizes = [8, 128], strides = [1, 1]} : vector<8x512xf32> to vector<8x128xf32>
    %406 = math.tanh %405 : vector<8x128xf32>
    %407 = vector.extract_strided_slice %392 {offsets = [0, 384], sizes = [8, 128], strides = [1, 1]} : vector<8x512xf32> to vector<8x128xf32>
    %408 = arith.negf %407 : vector<8x128xf32>
    %409 = math.exp %408 : vector<8x128xf32>
    %cst_78 = arith.constant 1.000000e+00 : f32
    %410 = vector.broadcast %cst_78 : f32 to vector<8x128xf32>
    %411 = arith.addf %410, %409 : vector<8x128xf32>
    %412 = arith.divf %410, %411 : vector<8x128xf32>
    %413 = arith.mulf %404, %357 : vector<8x128xf32>
    %414 = arith.mulf %398, %406 : vector<8x128xf32>
    %415 = arith.addf %413, %414 : vector<8x128xf32>
    %416 = math.tanh %415 : vector<8x128xf32>
    %417 = arith.mulf %412, %416 : vector<8x128xf32>
    %cst_79 = arith.constant dense<0.000000e+00> : vector<8x512xf32>
    %418 = tpu.matmul %359, %1, %cst_79 {dimension_numbers = #tpu.dot_dimension_numbers<[1], [0], [0], [1], [0, 0, 1, 1], [], []>} : vector<8x128xf32>, vector<128x512xf32>, vector<8x512xf32> -> vector<8x512xf32>
    %419 = vector.broadcast %5 : vector<1x512xf32> to vector<8x512xf32>
    %420 = arith.addf %418, %419 : vector<8x512xf32>
    %cst_80 = arith.constant dense<0.000000e+00> : vector<8x512xf32>
    %421 = tpu.matmul %389, %3, %cst_80 {dimension_numbers = #tpu.dot_dimension_numbers<[1], [0], [0], [1], [0, 0, 1, 1], [], []>} : vector<8x128xf32>, vector<128x512xf32>, vector<8x512xf32> -> vector<8x512xf32>
    %422 = arith.addf %420, %421 : vector<8x512xf32>
    %423 = vector.extract_strided_slice %422 {offsets = [0, 0], sizes = [8, 128], strides = [1, 1]} : vector<8x512xf32> to vector<8x128xf32>
    %424 = arith.negf %423 : vector<8x128xf32>
    %425 = math.exp %424 : vector<8x128xf32>
    %cst_81 = arith.constant 1.000000e+00 : f32
    %426 = vector.broadcast %cst_81 : f32 to vector<8x128xf32>
    %427 = arith.addf %426, %425 : vector<8x128xf32>
    %428 = arith.divf %426, %427 : vector<8x128xf32>
    %429 = vector.extract_strided_slice %422 {offsets = [0, 128], sizes = [8, 128], strides = [1, 1]} : vector<8x512xf32> to vector<8x128xf32>
    %430 = arith.negf %429 : vector<8x128xf32>
    %431 = math.exp %430 : vector<8x128xf32>
    %cst_82 = arith.constant 1.000000e+00 : f32
    %432 = vector.broadcast %cst_82 : f32 to vector<8x128xf32>
    %433 = arith.addf %432, %431 : vector<8x128xf32>
    %434 = arith.divf %432, %433 : vector<8x128xf32>
    %435 = vector.extract_strided_slice %422 {offsets = [0, 256], sizes = [8, 128], strides = [1, 1]} : vector<8x512xf32> to vector<8x128xf32>
    %436 = math.tanh %435 : vector<8x128xf32>
    %437 = vector.extract_strided_slice %422 {offsets = [0, 384], sizes = [8, 128], strides = [1, 1]} : vector<8x512xf32> to vector<8x128xf32>
    %438 = arith.negf %437 : vector<8x128xf32>
    %439 = math.exp %438 : vector<8x128xf32>
    %cst_83 = arith.constant 1.000000e+00 : f32
    %440 = vector.broadcast %cst_83 : f32 to vector<8x128xf32>
    %441 = arith.addf %440, %439 : vector<8x128xf32>
    %442 = arith.divf %440, %441 : vector<8x128xf32>
    %443 = arith.mulf %434, %387 : vector<8x128xf32>
    %444 = arith.mulf %428, %436 : vector<8x128xf32>
    %445 = arith.addf %443, %444 : vector<8x128xf32>
    %446 = math.tanh %445 : vector<8x128xf32>
    %447 = arith.mulf %442, %446 : vector<8x128xf32>
    %cst_84 = arith.constant dense<0.000000e+00> : vector<8x512xf32>
    %448 = tpu.matmul %417, %1, %cst_84 {dimension_numbers = #tpu.dot_dimension_numbers<[1], [0], [0], [1], [0, 0, 1, 1], [], []>} : vector<8x128xf32>, vector<128x512xf32>, vector<8x512xf32> -> vector<8x512xf32>
    %449 = vector.broadcast %5 : vector<1x512xf32> to vector<8x512xf32>
    %450 = arith.addf %448, %449 : vector<8x512xf32>
    %cst_85 = arith.constant dense<0.000000e+00> : vector<8x512xf32>
    %451 = tpu.matmul %447, %3, %cst_85 {dimension_numbers = #tpu.dot_dimension_numbers<[1], [0], [0], [1], [0, 0, 1, 1], [], []>} : vector<8x128xf32>, vector<128x512xf32>, vector<8x512xf32> -> vector<8x512xf32>
    %452 = arith.addf %450, %451 : vector<8x512xf32>
    %453 = vector.extract_strided_slice %452 {offsets = [0, 0], sizes = [8, 128], strides = [1, 1]} : vector<8x512xf32> to vector<8x128xf32>
    %454 = arith.negf %453 : vector<8x128xf32>
    %455 = math.exp %454 : vector<8x128xf32>
    %cst_86 = arith.constant 1.000000e+00 : f32
    %456 = vector.broadcast %cst_86 : f32 to vector<8x128xf32>
    %457 = arith.addf %456, %455 : vector<8x128xf32>
    %458 = arith.divf %456, %457 : vector<8x128xf32>
    %459 = vector.extract_strided_slice %452 {offsets = [0, 128], sizes = [8, 128], strides = [1, 1]} : vector<8x512xf32> to vector<8x128xf32>
    %460 = arith.negf %459 : vector<8x128xf32>
    %461 = math.exp %460 : vector<8x128xf32>
    %cst_87 = arith.constant 1.000000e+00 : f32
    %462 = vector.broadcast %cst_87 : f32 to vector<8x128xf32>
    %463 = arith.addf %462, %461 : vector<8x128xf32>
    %464 = arith.divf %462, %463 : vector<8x128xf32>
    %465 = vector.extract_strided_slice %452 {offsets = [0, 256], sizes = [8, 128], strides = [1, 1]} : vector<8x512xf32> to vector<8x128xf32>
    %466 = math.tanh %465 : vector<8x128xf32>
    %467 = vector.extract_strided_slice %452 {offsets = [0, 384], sizes = [8, 128], strides = [1, 1]} : vector<8x512xf32> to vector<8x128xf32>
    %468 = arith.negf %467 : vector<8x128xf32>
    %469 = math.exp %468 : vector<8x128xf32>
    %cst_88 = arith.constant 1.000000e+00 : f32
    %470 = vector.broadcast %cst_88 : f32 to vector<8x128xf32>
    %471 = arith.addf %470, %469 : vector<8x128xf32>
    %472 = arith.divf %470, %471 : vector<8x128xf32>
    %473 = arith.mulf %464, %445 : vector<8x128xf32>
    %474 = arith.mulf %458, %466 : vector<8x128xf32>
    %475 = arith.addf %473, %474 : vector<8x128xf32>
    %476 = math.tanh %475 : vector<8x128xf32>
    %477 = arith.mulf %472, %476 : vector<8x128xf32>
    %478 = tpu.concatenate %417, %477 in 0 : vector<8x128xf32>, vector<8x128xf32> -> vector<16x128xf32>
    %cst_89 = arith.constant 0.000000e+00 : f32
    %479 = vector.broadcast %cst_89 : f32 to vector<16x128xf32>
    %480 = arith.maximumf %478, %479 : vector<16x128xf32>
    %c0_90 = arith.constant 0 : index
    %c0_91 = arith.constant 0 : index
    %481 = vector.load %arg7[%c0_90, %c0_91] : memref<128x128xf32, #tpu.memory_space<vmem>>, vector<128x128xf32>
    %cst_92 = arith.constant dense<0.000000e+00> : vector<16x128xf32>
    %482 = tpu.matmul %480, %481, %cst_92 {dimension_numbers = #tpu.dot_dimension_numbers<[1], [0], [0], [1], [0, 0, 1, 1], [], []>} : vector<16x128xf32>, vector<128x128xf32>, vector<16x128xf32> -> vector<16x128xf32>
    %c0_93 = arith.constant 0 : index
    %c0_94 = arith.constant 0 : index
    %483 = vector.load %arg8[%c0_93, %c0_94] : memref<1x128xf32, #tpu.memory_space<vmem>>, vector<1x128xf32>
    %484 = vector.broadcast %483 : vector<1x128xf32> to vector<16x128xf32>
    %485 = arith.addf %482, %484 : vector<16x128xf32>
    %cst_95 = arith.constant 0.000000e+00 : f32
    %486 = vector.broadcast %cst_95 : f32 to vector<16x128xf32>
    %487 = arith.maximumf %485, %486 : vector<16x128xf32>
    %c0_96 = arith.constant 0 : index
    %c0_97 = arith.constant 0 : index
    %488 = vector.load %arg9[%c0_96, %c0_97] : memref<128x128xf32, #tpu.memory_space<vmem>>, vector<128x128xf32>
    %cst_98 = arith.constant dense<0.000000e+00> : vector<16x128xf32>
    %489 = tpu.matmul %487, %488, %cst_98 {dimension_numbers = #tpu.dot_dimension_numbers<[1], [0], [0], [1], [0, 0, 1, 1], [], []>} : vector<16x128xf32>, vector<128x128xf32>, vector<16x128xf32> -> vector<16x128xf32>
    %c0_99 = arith.constant 0 : index
    %c0_100 = arith.constant 0 : index
    %490 = vector.load %arg10[%c0_99, %c0_100] : memref<1x128xf32, #tpu.memory_space<vmem>>, vector<1x128xf32>
    %491 = vector.broadcast %490 : vector<1x128xf32> to vector<16x128xf32>
    %492 = arith.addf %489, %491 : vector<16x128xf32>
    %c0_101 = arith.constant 0 : index
    %c0_102 = arith.constant 0 : index
    %493 = vector.load %arg11[%c0_101, %c0_102] : memref<16x128xf32, #tpu.memory_space<vmem>>, vector<16x128xf32>
    tpu.vector_store %arg11[%c0_101, %c0_102], %492 {strides = array<i32>} : memref<16x128xf32, #tpu.memory_space<vmem>>, vector<16x128xf32>,
    return
  }
}

</mosaic_0001>

<llo_original>
// kernel: lstm1_forward.1
$region0: #{lstm1_forward.1}
  #allocation0 [shape = 'u32[]', space=smem, size = 0x4, offset = 0x4, fixed_abs, tag = 'smem constant byte address 0x4 - core index']
  #allocation1 [shape = 'u32[144,128]{1,0:T(1,128)}', space=vmem, size = 0x12000, scoped, tag = 'internal scratch']
  %s0 = inlined_call_operand.vmem [shape: f32[64,128], index: 0, kind: input, shape index: {}]
  %s1 = inlined_call_operand.vmem [shape: f32[128,512], index: 1, kind: input, shape index: {}]
  %s2 = inlined_call_operand.vmem [shape: f32[128,512], index: 2, kind: input, shape index: {}]
  %s3 = inlined_call_operand.vmem [shape: f32[1,512], index: 3, kind: input, shape index: {}]
  %s4 = inlined_call_operand.vmem [shape: f32[128,512], index: 4, kind: input, shape index: {}]
  %s5 = inlined_call_operand.vmem [shape: f32[128,512], index: 5, kind: input, shape index: {}]
  %s6 = inlined_call_operand.vmem [shape: f32[1,512], index: 6, kind: input, shape index: {}]
  %s7 = inlined_call_operand.vmem [shape: f32[128,128], index: 7, kind: input, shape index: {}]
  %s8 = inlined_call_operand.vmem [shape: f32[1,128], index: 8, kind: input, shape index: {}]
  %s9 = inlined_call_operand.vmem [shape: f32[128,128], index: 9, kind: input, shape index: {}]
  %s10 = inlined_call_operand.vmem [shape: f32[1,128], index: 10, kind: input, shape index: {}]
  %s11 = inlined_call_operand.vmem [shape: f32[16,128], index: 11, kind: output, shape index: {}]
  %s12 = sld [smem:[#allocation0]]
  $region54: #{lstm1_forward.1} parent=0
    _
  %s14 = ssub.s32 1, %s12
  %s15 = scalar_select 0, %s14, %s12
  // Predicated region
  $region2: #{lstm1_forward.1} parent=0 // pred_check
    _
  $region3: #{lstm1_forward.1} parent=0 // pred_check_branch
    %17 = sbr.rel (0) target = $region5
  $region4: #{lstm1_forward.1} parent=0 // pred_region
    _
  $region5: #{lstm1_forward.1} parent=0 // pred_fallthru
    _
  // Predicated region
  $region6: #{lstm1_forward.1} parent=0 // pred_check
    _
  $region7: #{lstm1_forward.1} parent=0 // pred_check_branch
    %19 = sbr.rel (0) target = $region9
  $region8: #{lstm1_forward.1} parent=0 // pred_region
    _
  $region9: #{lstm1_forward.1} parent=0 // pred_fallthru
    _
  // Predicated region
  $region10: #{lstm1_forward.1} parent=0 // pred_check
    _
  $region11: #{lstm1_forward.1} parent=0 // pred_check_branch
    %21 = sbr.rel (0) target = $region13
  $region12: #{lstm1_forward.1} parent=0 // pred_region
    _
  $region13: #{lstm1_forward.1} parent=0 // pred_fallthru
    _
  // Predicated region
  $region14: #{lstm1_forward.1} parent=0 // pred_check
    _
  $region15: #{lstm1_forward.1} parent=0 // pred_check_branch
    %23 = sbr.rel (0) target = $region17
  $region16: #{lstm1_forward.1} parent=0 // pred_region
    _
  $region17: #{lstm1_forward.1} parent=0 // pred_fallthru
    _
  // Predicated region
  $region18: #{lstm1_forward.1} parent=0 // pred_check
    _
  $region19: #{lstm1_forward.1} parent=0 // pred_check_branch
    %25 = sbr.rel (0) target = $region21
  $region20: #{lstm1_forward.1} parent=0 // pred_region
    _
  $region21: #{lstm1_forward.1} parent=0 // pred_fallthru
    _
  // Predicated region
  $region22: #{lstm1_forward.1} parent=0 // pred_check
    _
  $region23: #{lstm1_forward.1} parent=0 // pred_check_branch
    %27 = sbr.rel (0) target = $region25
  $region24: #{lstm1_forward.1} parent=0 // pred_region
    _
  $region25: #{lstm1_forward.1} parent=0 // pred_fallthru
    _
  // Predicated region
  $region26: #{lstm1_forward.1} parent=0 // pred_check
    _
  $region27: #{lstm1_forward.1} parent=0 // pred_check_branch
    %29 = sbr.rel (0) target = $region29
  $region28: #{lstm1_forward.1} parent=0 // pred_region
    _
  $region29: #{lstm1_forward.1} parent=0 // pred_fallthru
    _
  // Predicated region
  $region30: #{lstm1_forward.1} parent=0 // pred_check
    _
  $region31: #{lstm1_forward.1} parent=0 // pred_check_branch
    %31 = sbr.rel (0) target = $region33
  $region32: #{lstm1_forward.1} parent=0 // pred_region
    _
  $region33: #{lstm1_forward.1} parent=0 // pred_fallthru
    _
  // Predicated region
  $region34: #{lstm1_forward.1} parent=0 // pred_check
    _
  $region35: #{lstm1_forward.1} parent=0 // pred_check_branch
    %33 = sbr.rel (0) target = $region37
  $region36: #{lstm1_forward.1} parent=0 // pred_region
    _
  $region37: #{lstm1_forward.1} parent=0 // pred_fallthru
    _
  // Predicated region
  $region38: #{lstm1_forward.1} parent=0 // pred_check
    _
  $region39: #{lstm1_forward.1} parent=0 // pred_check_branch
    %35 = sbr.rel (0) target = $region41
  $region40: #{lstm1_forward.1} parent=0 // pred_region
    _
  $region41: #{lstm1_forward.1} parent=0 // pred_fallthru
    _
  // Predicated region
  $region42: #{lstm1_forward.1} parent=0 // pred_check
    _
  $region43: #{lstm1_forward.1} parent=0 // pred_check_branch
    %37 = sbr.rel (0) target = $region45
  $region44: #{lstm1_forward.1} parent=0 // pred_region
    _
  $region45: #{lstm1_forward.1} parent=0 // pred_fallthru
    _
  %v38 = vld [vmem:[%s1] sm:$0xff]
  %v39 = vld [vmem:[%s1 + $0x8] sm:$0xff]
  %v40 = vld [vmem:[%s1 + $0x10] sm:$0xff]
  %v41 = vld [vmem:[%s1 + $0x18] sm:$0xff]
  %v42 = vld [vmem:[%s1 + $0x20] sm:$0xff]
  %v43 = vld [vmem:[%s1 + $0x28] sm:$0xff]
  %v44 = vld [vmem:[%s1 + $0x30] sm:$0xff]
  %v45 = vld [vmem:[%s1 + $0x38] sm:$0xff]
  %v46 = vld [vmem:[%s1 + $0x40] sm:$0xff]
  %v47 = vld [vmem:[%s1 + $0x48] sm:$0xff]
  %v48 = vld [vmem:[%s1 + $0x50] sm:$0xff]
  %v49 = vld [vmem:[%s1 + $0x58] sm:$0xff]
  %v50 = vld [vmem:[%s1 + $0x60] sm:$0xff]
  %v51 = vld [vmem:[%s1 + $0x68] sm:$0xff]
  %v52 = vld [vmem:[%s1 + $0x70] sm:$0xff]
  %v53 = vld [vmem:[%s1 + $0x78] sm:$0xff]
  %v54 = vld [vmem:[%s1 + $0x80] sm:$0xff]
  %v55 = vld [vmem:[%s1 + $0x88] sm:$0xff]
  %v56 = vld [vmem:[%s1 + $0x90] sm:$0xff]
  %v57 = vld [vmem:[%s1 + $0x98] sm:$0xff]
  %v58 = vld [vmem:[%s1 + $0xa0] sm:$0xff]
  %v59 = vld [vmem:[%s1 + $0xa8] sm:$0xff]
  %v60 = vld [vmem:[%s1 + $0xb0] sm:$0xff]
  %v61 = vld [vmem:[%s1 + $0xb8] sm:$0xff]
  %v62 = vld [vmem:[%s1 + $0xc0] sm:$0xff]
  %v63 = vld [vmem:[%s1 + $0xc8] sm:$0xff]
  %v64 = vld [vmem:[%s1 + $0xd0] sm:$0xff]
  %v65 = vld [vmem:[%s1 + $0xd8] sm:$0xff]
  %v66 = vld [vmem:[%s1 + $0xe0] sm:$0xff]
  %v67 = vld [vmem:[%s1 + $0xe8] sm:$0xff]
  %v68 = vld [vmem:[%s1 + $0xf0] sm:$0xff]
  %v69 = vld [vmem:[%s1 + $0xf8] sm:$0xff]
  %v70 = vld [vmem:[%s1 + $0x100] sm:$0xff]
  %v71 = vld [vmem:[%s1 + $0x108] sm:$0xff]
  %v72 = vld [vmem:[%s1 + $0x110] sm:$0xff]
  %v73 = vld [vmem:[%s1 + $0x118] sm:$0xff]
  %v74 = vld [vmem:[%s1 + $0x120] sm:$0xff]
  %v75 = vld [vmem:[%s1 + $0x128] sm:$0xff]
  %v76 = vld [vmem:[%s1 + $0x130] sm:$0xff]
  %v77 = vld [vmem:[%s1 + $0x138] sm:$0xff]
  %v78 = vld [vmem:[%s1 + $0x140] sm:$0xff]
  %v79 = vld [vmem:[%s1 + $0x148] sm:$0xff]
  %v80 = vld [vmem:[%s1 + $0x150] sm:$0xff]
  %v81 = vld [vmem:[%s1 + $0x158] sm:$0xff]
  %v82 = vld [vmem:[%s1 + $0x160] sm:$0xff]
  %v83 = vld [vmem:[%s1 + $0x168] sm:$0xff]
  %v84 = vld [vmem:[%s1 + $0x170] sm:$0xff]
  %v85 = vld [vmem:[%s1 + $0x178] sm:$0xff]
  %v86 = vld [vmem:[%s1 + $0x180] sm:$0xff]
  %v87 = vld [vmem:[%s1 + $0x188] sm:$0xff]
  %v88 = vld [vmem:[%s1 + $0x190] sm:$0xff]
  %v89 = vld [vmem:[%s1 + $0x198] sm:$0xff]
  %v90 = vld [vmem:[%s1 + $0x1a0] sm:$0xff]
  %v91 = vld [vmem:[%s1 + $0x1a8] sm:$0xff]
  %v92 = vld [vmem:[%s1 + $0x1b0] sm:$0xff]
  %v93 = vld [vmem:[%s1 + $0x1b8] sm:$0xff]
  %v94 = vld [vmem:[%s1 + $0x1c0] sm:$0xff]
  %v95 = vld [vmem:[%s1 + $0x1c8] sm:$0xff]
  %v96 = vld [vmem:[%s1 + $0x1d0] sm:$0xff]
  %v97 = vld [vmem:[%s1 + $0x1d8] sm:$0xff]
  %v98 = vld [vmem:[%s1 + $0x1e0] sm:$0xff]
  %v99 = vld [vmem:[%s1 + $0x1e8] sm:$0xff]
  %v100 = vld [vmem:[%s1 + $0x1f0] sm:$0xff]
  %v101 = vld [vmem:[%s1 + $0x1f8] sm:$0xff]
  %v102 = vld [vmem:[%s4] sm:$0xff]
  %v103 = vld [vmem:[%s4 + $0x8] sm:$0xff]
  %v104 = vld [vmem:[%s4 + $0x10] sm:$0xff]
  %v105 = vld [vmem:[%s4 + $0x18] sm:$0xff]
  %v106 = vld [vmem:[%s4 + $0x20] sm:$0xff]
  %v107 = vld [vmem:[%s4 + $0x28] sm:$0xff]
  %v108 = vld [vmem:[%s4 + $0x30] sm:$0xff]
  %v109 = vld [vmem:[%s4 + $0x38] sm:$0xff]
  %v110 = vld [vmem:[%s4 + $0x40] sm:$0xff]
  %v111 = vld [vmem:[%s4 + $0x48] sm:$0xff]
  %v112 = vld [vmem:[%s4 + $0x50] sm:$0xff]
  %v113 = vld [vmem:[%s4 + $0x58] sm:$0xff]
  %v114 = vld [vmem:[%s4 + $0x60] sm:$0xff]
  %v115 = vld [vmem:[%s4 + $0x68] sm:$0xff]
  %v116 = vld [vmem:[%s4 + $0x70] sm:$0xff]
  %v117 = vld [vmem:[%s4 + $0x78] sm:$0xff]
  %v118 = vld [vmem:[%s4 + $0x80] sm:$0xff]
  %v119 = vld [vmem:[%s4 + $0x88] sm:$0xff]
  %v120 = vld [vmem:[%s4 + $0x90] sm:$0xff]
  %v121 = vld [vmem:[%s4 + $0x98] sm:$0xff]
  %v122 = vld [vmem:[%s4 + $0xa0] sm:$0xff]
  %v123 = vld [vmem:[%s4 + $0xa8] sm:$0xff]
  %v124 = vld [vmem:[%s4 + $0xb0] sm:$0xff]
  %v125 = vld [vmem:[%s4 + $0xb8] sm:$0xff]
  %v126 = vld [vmem:[%s4 + $0xc0] sm:$0xff]
  %v127 = vld [vmem:[%s4 + $0xc8] sm:$0xff]
  %v128 = vld [vmem:[%s4 + $0xd0] sm:$0xff]
  %v129 = vld [vmem:[%s4 + $0xd8] sm:$0xff]
  %v130 = vld [vmem:[%s4 + $0xe0] sm:$0xff]
  %v131 = vld [vmem:[%s4 + $0xe8] sm:$0xff]
  %v132 = vld [vmem:[%s4 + $0xf0] sm:$0xff]
  %v133 = vld [vmem:[%s4 + $0xf8] sm:$0xff]
  %v134 = vld [vmem:[%s4 + $0x100] sm:$0xff]
  %v135 = vld [vmem:[%s4 + $0x108] sm:$0xff]
  %v136 = vld [vmem:[%s4 + $0x110] sm:$0xff]
  %v137 = vld [vmem:[%s4 + $0x118] sm:$0xff]
  %v138 = vld [vmem:[%s4 + $0x120] sm:$0xff]
  %v139 = vld [vmem:[%s4 + $0x128] sm:$0xff]
  %v140 = vld [vmem:[%s4 + $0x130] sm:$0xff]
  %v141 = vld [vmem:[%s4 + $0x138] sm:$0xff]
  %v142 = vld [vmem:[%s4 + $0x140] sm:$0xff]
  %v143 = vld [vmem:[%s4 + $0x148] sm:$0xff]
  %v144 = vld [vmem:[%s4 + $0x150] sm:$0xff]
  %v145 = vld [vmem:[%s4 + $0x158] sm:$0xff]
  %v146 = vld [vmem:[%s4 + $0x160] sm:$0xff]
  %v147 = vld [vmem:[%s4 + $0x168] sm:$0xff]
  %v148 = vld [vmem:[%s4 + $0x170] sm:$0xff]
  %v149 = vld [vmem:[%s4 + $0x178] sm:$0xff]
  %v150 = vld [vmem:[%s4 + $0x180] sm:$0xff]
  %v151 = vld [vmem:[%s4 + $0x188] sm:$0xff]
  %v152 = vld [vmem:[%s4 + $0x190] sm:$0xff]
  %v153 = vld [vmem:[%s4 + $0x198] sm:$0xff]
  %v154 = vld [vmem:[%s4 + $0x1a0] sm:$0xff]
  %v155 = vld [vmem:[%s4 + $0x1a8] sm:$0xff]
  %v156 = vld [vmem:[%s4 + $0x1b0] sm:$0xff]
  %v157 = vld [vmem:[%s4 + $0x1b8] sm:$0xff]
  %v158 = vld [vmem:[%s4 + $0x1c0] sm:$0xff]
  %v159 = vld [vmem:[%s4 + $0x1c8] sm:$0xff]
  %v160 = vld [vmem:[%s4 + $0x1d0] sm:$0xff]
  %v161 = vld [vmem:[%s4 + $0x1d8] sm:$0xff]
  %v162 = vld [vmem:[%s4 + $0x1e0] sm:$0xff]
  %v163 = vld [vmem:[%s4 + $0x1e8] sm:$0xff]
  %v164 = vld [vmem:[%s4 + $0x1f0] sm:$0xff]
  %v165 = vld [vmem:[%s4 + $0x1f8] sm:$0xff]
  %v166 = vld [vmem:[%s2] sm:$0xff]
  %v167 = vld [vmem:[%s2 + $0x8] sm:$0xff]
  %v168 = vld [vmem:[%s2 + $0x10] sm:$0xff]
  %v169 = vld [vmem:[%s2 + $0x18] sm:$0xff]
  %v170 = vld [vmem:[%s2 + $0x20] sm:$0xff]
  %v171 = vld [vmem:[%s2 + $0x28] sm:$0xff]
  %v172 = vld [vmem:[%s2 + $0x30] sm:$0xff]
  %v173 = vld [vmem:[%s2 + $0x38] sm:$0xff]
  %v174 = vld [vmem:[%s2 + $0x40] sm:$0xff]
  %v175 = vld [vmem:[%s2 + $0x48] sm:$0xff]
  %v176 = vld [vmem:[%s2 + $0x50] sm:$0xff]
  %v177 = vld [vmem:[%s2 + $0x58] sm:$0xff]
  %v178 = vld [vmem:[%s2 + $0x60] sm:$0xff]
  %v179 = vld [vmem:[%s2 + $0x68] sm:$0xff]
  %v180 = vld [vmem:[%s2 + $0x70] sm:$0xff]
  %v181 = vld [vmem:[%s2 + $0x78] sm:$0xff]
  %v182 = vld [vmem:[%s2 + $0x80] sm:$0xff]
  %v183 = vld [vmem:[%s2 + $0x88] sm:$0xff]
  %v184 = vld [vmem:[%s2 + $0x90] sm:$0xff]
  %v185 = vld [vmem:[%s2 + $0x98] sm:$0xff]
  %v186 = vld [vmem:[%s2 + $0xa0] sm:$0xff]
  %v187 = vld [vmem:[%s2 + $0xa8] sm:$0xff]
  %v188 = vld [vmem:[%s2 + $0xb0] sm:$0xff]
  %v189 = vld [vmem:[%s2 + $0xb8] sm:$0xff]
  %v190 = vld [vmem:[%s2 + $0xc0] sm:$0xff]
  %v191 = vld [vmem:[%s2 + $0xc8] sm:$0xff]
  %v192 = vld [vmem:[%s2 + $0xd0] sm:$0xff]
  %v193 = vld [vmem:[%s2 + $0xd8] sm:$0xff]
  %v194 = vld [vmem:[%s2 + $0xe0] sm:$0xff]
  %v195 = vld [vmem:[%s2 + $0xe8] sm:$0xff]
  %v196 = vld [vmem:[%s2 + $0xf0] sm:$0xff]
  %v197 = vld [vmem:[%s2 + $0xf8] sm:$0xff]
  %v198 = vld [vmem:[%s2 + $0x100] sm:$0xff]
  %v199 = vld [vmem:[%s2 + $0x108] sm:$0xff]
  %v200 = vld [vmem:[%s2 + $0x110] sm:$0xff]
  %v201 = vld [vmem:[%s2 + $0x118] sm:$0xff]
  %v202 = vld [vmem:[%s2 + $0x120] sm:$0xff]
  %v203 = vld [vmem:[%s2 + $0x128] sm:$0xff]
  %v204 = vld [vmem:[%s2 + $0x130] sm:$0xff]
  %v205 = vld [vmem:[%s2 + $0x138] sm:$0xff]
  %v206 = vld [vmem:[%s2 + $0x140] sm:$0xff]
  %v207 = vld [vmem:[%s2 + $0x148] sm:$0xff]
  %v208 = vld [vmem:[%s2 + $0x150] sm:$0xff]
  %v209 = vld [vmem:[%s2 + $0x158] sm:$0xff]
  %v210 = vld [vmem:[%s2 + $0x160] sm:$0xff]
  %v211 = vld [vmem:[%s2 + $0x168] sm:$0xff]
  %v212 = vld [vmem:[%s2 + $0x170] sm:$0xff]
  %v213 = vld [vmem:[%s2 + $0x178] sm:$0xff]
  %v214 = vld [vmem:[%s2 + $0x180] sm:$0xff]
  %v215 = vld [vmem:[%s2 + $0x188] sm:$0xff]
  %v216 = vld [vmem:[%s2 + $0x190] sm:$0xff]
  %v217 = vld [vmem:[%s2 + $0x198] sm:$0xff]
  %v218 = vld [vmem:[%s2 + $0x1a0] sm:$0xff]
  %v219 = vld [vmem:[%s2 + $0x1a8] sm:$0xff]
  %v220 = vld [vmem:[%s2 + $0x1b0] sm:$0xff]
  %v221 = vld [vmem:[%s2 + $0x1b8] sm:$0xff]
  %v222 = vld [vmem:[%s2 + $0x1c0] sm:$0xff]
  %v223 = vld [vmem:[%s2 + $0x1c8] sm:$0xff]
  %v224 = vld [vmem:[%s2 + $0x1d0] sm:$0xff]
  %v225 = vld [vmem:[%s2 + $0x1d8] sm:$0xff]
  %v226 = vld [vmem:[%s2 + $0x1e0] sm:$0xff]
  %v227 = vld [vmem:[%s2 + $0x1e8] sm:$0xff]
  %v228 = vld [vmem:[%s2 + $0x1f0] sm:$0xff]
  %v229 = vld [vmem:[%s2 + $0x1f8] sm:$0xff]
  %v230 = vld [vmem:[%s5] sm:$0xff]
  %v231 = vld [vmem:[%s5 + $0x8] sm:$0xff]
  %v232 = vld [vmem:[%s5 + $0x10] sm:$0xff]
  %v233 = vld [vmem:[%s5 + $0x18] sm:$0xff]
  %v234 = vld [vmem:[%s5 + $0x20] sm:$0xff]
  %v235 = vld [vmem:[%s5 + $0x28] sm:$0xff]
  %v236 = vld [vmem:[%s5 + $0x30] sm:$0xff]
  %v237 = vld [vmem:[%s5 + $0x38] sm:$0xff]
  %v238 = vld [vmem:[%s5 + $0x40] sm:$0xff]
  %v239 = vld [vmem:[%s5 + $0x48] sm:$0xff]
  %v240 = vld [vmem:[%s5 + $0x50] sm:$0xff]
  %v241 = vld [vmem:[%s5 + $0x58] sm:$0xff]
  %v242 = vld [vmem:[%s5 + $0x60] sm:$0xff]
  %v243 = vld [vmem:[%s5 + $0x68] sm:$0xff]
  %v244 = vld [vmem:[%s5 + $0x70] sm:$0xff]
  %v245 = vld [vmem:[%s5 + $0x78] sm:$0xff]
  %v246 = vld [vmem:[%s5 + $0x80] sm:$0xff]
  %v247 = vld [vmem:[%s5 + $0x88] sm:$0xff]
  %v248 = vld [vmem:[%s5 + $0x90] sm:$0xff]
  %v249 = vld [vmem:[%s5 + $0x98] sm:$0xff]
  %v250 = vld [vmem:[%s5 + $0xa0] sm:$0xff]
  %v251 = vld [vmem:[%s5 + $0xa8] sm:$0xff]
  %v252 = vld [vmem:[%s5 + $0xb0] sm:$0xff]
  %v253 = vld [vmem:[%s5 + $0xb8] sm:$0xff]
  %v254 = vld [vmem:[%s5 + $0xc0] sm:$0xff]
  %v255 = vld [vmem:[%s5 + $0xc8] sm:$0xff]
  %v256 = vld [vmem:[%s5 + $0xd0] sm:$0xff]
  %v257 = vld [vmem:[%s5 + $0xd8] sm:$0xff]
  %v258 = vld [vmem:[%s5 + $0xe0] sm:$0xff]
  %v259 = vld [vmem:[%s5 + $0xe8] sm:$0xff]
  %v260 = vld [vmem:[%s5 + $0xf0] sm:$0xff]
  %v261 = vld [vmem:[%s5 + $0xf8] sm:$0xff]
  %v262 = vld [vmem:[%s5 + $0x100] sm:$0xff]
  %v263 = vld [vmem:[%s5 + $0x108] sm:$0xff]
  %v264 = vld [vmem:[%s5 + $0x110] sm:$0xff]
  %v265 = vld [vmem:[%s5 + $0x118] sm:$0xff]
  %v266 = vld [vmem:[%s5 + $0x120] sm:$0xff]
  %v267 = vld [vmem:[%s5 + $0x128] sm:$0xff]
  %v268 = vld [vmem:[%s5 + $0x130] sm:$0xff]
  %v269 = vld [vmem:[%s5 + $0x138] sm:$0xff]
  %v270 = vld [vmem:[%s5 + $0x140] sm:$0xff]
  %v271 = vld [vmem:[%s5 + $0x148] sm:$0xff]
  %v272 = vld [vmem:[%s5 + $0x150] sm:$0xff]
  %v273 = vld [vmem:[%s5 + $0x158] sm:$0xff]
  %v274 = vld [vmem:[%s5 + $0x160] sm:$0xff]
  %v275 = vld [vmem:[%s5 + $0x168] sm:$0xff]
  %v276 = vld [vmem:[%s5 + $0x170] sm:$0xff]
  %v277 = vld [vmem:[%s5 + $0x178] sm:$0xff]
  %v278 = vld [vmem:[%s5 + $0x180] sm:$0xff]
  %v279 = vld [vmem:[%s5 + $0x188] sm:$0xff]
  %v280 = vld [vmem:[%s5 + $0x190] sm:$0xff]
  %v281 = vld [vmem:[%s5 + $0x198] sm:$0xff]
  %v282 = vld [vmem:[%s5 + $0x1a0] sm:$0xff]
  %v283 = vld [vmem:[%s5 + $0x1a8] sm:$0xff]
  %v284 = vld [vmem:[%s5 + $0x1b0] sm:$0xff]
  %v285 = vld [vmem:[%s5 + $0x1b8] sm:$0xff]
  %v286 = vld [vmem:[%s5 + $0x1c0] sm:$0xff]
  %v287 = vld [vmem:[%s5 + $0x1c8] sm:$0xff]
  %v288 = vld [vmem:[%s5 + $0x1d0] sm:$0xff]
  %v289 = vld [vmem:[%s5 + $0x1d8] sm:$0xff]
  %v290 = vld [vmem:[%s5 + $0x1e0] sm:$0xff]
  %v291 = vld [vmem:[%s5 + $0x1e8] sm:$0xff]
  %v292 = vld [vmem:[%s5 + $0x1f0] sm:$0xff]
  %v293 = vld [vmem:[%s5 + $0x1f8] sm:$0xff]
  %v294 = vld [vmem:[%s3] sm:$0xf]
  %v295 = vld [vmem:[%s6] sm:$0xf]
  %v296 = vld [vmem:[%s0] sm:$0xff]
  %v297 = vld [vmem:[%s0 + $0x8] sm:$0xff]
  %v298 = vld [vmem:[%s0 + $0x10] sm:$0xff]
  %v299 = vld [vmem:[%s0 + $0x18] sm:$0xff]
  %v300 = vld [vmem:[%s0 + $0x20] sm:$0xff]
  %v301 = vld [vmem:[%s0 + $0x28] sm:$0xff]
  %v302 = vld [vmem:[%s0 + $0x30] sm:$0xff]
  %v303 = vld [vmem:[%s0 + $0x38] sm:$0xff]
  %v305 = vlaneseq
  %v306 = vshrl.u32 %v305, 7
  %v307 = vsub.s32 0, %v306
  %v308 = vrot.slane %v294, %v307
  %v309 = vlaneseq
  %v310 = vshrl.u32 %v309, 7
  %v311 = vsub.s32 1, %v310
  %v312 = vrot.slane %v294, %v311
  %v313 = vlaneseq
  %v314 = vshrl.u32 %v313, 7
  %v315 = vsub.s32 2, %v314
  %v316 = vrot.slane %v294, %v315
  %v317 = vlaneseq
  %v318 = vshrl.u32 %v317, 7
  %v319 = vsub.s32 3, %v318
  %v320 = vrot.slane %v294, %v319
  %325 = vmatprep.subr.mxu0 %v99
  %326 = vmatpush1.msra.mxu0 %v98
  %327 = vmatprep.subr.mxu0 %v95
  %328 = vmatpush1.msra.mxu0 %v94
  %329 = vmatprep.subr.mxu0 %v91
  %330 = vmatpush1.msra.mxu0 %v90
  %331 = vmatprep.subr.mxu0 %v87
  %332 = vmatpush1.msra.mxu0 %v86
  %333 = vmatprep.subr.mxu0 %v83
  %334 = vmatpush1.msra.mxu0 %v82
  %335 = vmatprep.subr.mxu0 %v79
  %336 = vmatpush1.msra.mxu0 %v78
  %337 = vmatprep.subr.mxu0 %v75
  %338 = vmatpush1.msra.mxu0 %v74
  %339 = vmatprep.subr.mxu0 %v71
  %340 = vmatpush1.msra.mxu0 %v70
  %341 = vmatprep.subr.mxu0 %v67
  %342 = vmatpush1.msra.mxu0 %v66
  %343 = vmatprep.subr.mxu0 %v63
  %344 = vmatpush1.msra.mxu0 %v62
  %345 = vmatprep.subr.mxu0 %v59
  %346 = vmatpush1.msra.mxu0 %v58
  %347 = vmatprep.subr.mxu0 %v55
  %348 = vmatpush1.msra.mxu0 %v54
  %349 = vmatprep.subr.mxu0 %v51
  %350 = vmatpush1.msra.mxu0 %v50
  %351 = vmatprep.subr.mxu0 %v47
  %352 = vmatpush1.msra.mxu0 %v46
  %353 = vmatprep.subr.mxu0 %v43
  %354 = vmatpush1.msra.mxu0 %v42
  %355 = vmatprep.subr.mxu0 %v39
  %356 = vmatpush1.msra.mxu0 %v38
  %357 = vmatprep.subr.mxu0 0.0
  %358 = vmatpush2.msra.mxu0 0.0
  %359 = vmatprep.subr.mxu0 0.0
  %360 = vmatpush2.msra.mxu0 0.0
  %361 = vmatprep.subr.mxu0 0.0
  %362 = vmatpush2.msra.mxu0 0.0
  %363 = vmatprep.subr.mxu0 0.0
  %364 = vmatpush2.msra.mxu0 0.0
  %365 = vmatprep.subr.mxu0 0.0
  %366 = vmatpush2.msra.mxu0 0.0
  %367 = vmatprep.subr.mxu0 0.0
  %368 = vmatpush2.msra.mxu0 0.0
  %369 = vmatprep.subr.mxu0 0.0
  %370 = vmatpush2.msra.mxu0 0.0
  %371 = vmatprep.subr.mxu0 0.0
  %372 = vmatpush2.msra.mxu0 0.0
  %373 = vmatprep.subr.mxu0 0.0
  %374 = vmatpush2.msra.mxu0 0.0
  %375 = vmatprep.subr.mxu0 0.0
  %376 = vmatpush2.msra.mxu0 0.0
  %377 = vmatprep.subr.mxu0 0.0
  %378 = vmatpush2.msra.mxu0 0.0
  %379 = vmatprep.subr.mxu0 0.0
  %380 = vmatpush2.msra.mxu0 0.0
  %381 = vmatprep.subr.mxu0 0.0
  %382 = vmatpush2.msra.mxu0 0.0
  %383 = vmatprep.subr.mxu0 0.0
  %384 = vmatpush2.msra.mxu0 0.0
  %385 = vmatprep.subr.mxu0 0.0
  %386 = vmatpush2.msra.mxu0 0.0
  %387 = vmatprep.subr.mxu0 0.0
  %388 = vmatpush2.msra.mxu0 0.0
  %389 = vmatprep.mubr.f32.mxu0 0.0
  %390 = vmatmul.mubr.f32.gmra.mxu0 %v296
  %v391 = vpop.f32.mrf.mxu0
  %v392 = vadd.f32 %v308, %v391
  %v393 = vpop.f32.mrf.mxu0
  %v394 = vadd.f32 %v312, %v393
  %395 = vmatprep.mubr.f32.mxu0 0.0
  %396 = vmatmul.mubr.f32.gmra.mxu0 %v297
  %v397 = vpop.f32.mrf.mxu0
  %v398 = vadd.f32 %v308, %v397
  %v399 = vpop.f32.mrf.mxu0
  %v400 = vadd.f32 %v312, %v399
  %401 = vmatprep.mubr.f32.mxu0 0.0
  %402 = vmatmul.mubr.f32.gmra.mxu0 %v298
  %v403 = vpop.f32.mrf.mxu0
  %v404 = vadd.f32 %v308, %v403
  %v405 = vpop.f32.mrf.mxu0
  %v406 = vadd.f32 %v312, %v405
  %407 = vmatprep.mubr.f32.mxu0 0.0
  %408 = vmatmul.mubr.f32.gmra.mxu0 %v299
  %v409 = vpop.f32.mrf.mxu0
  %v410 = vadd.f32 %v308, %v409
  %v411 = vpop.f32.mrf.mxu0
  %v412 = vadd.f32 %v312, %v411
  %413 = vmatprep.mubr.f32.mxu0 0.0
  %414 = vmatmul.mubr.f32.gmra.mxu0 %v300
  %v415 = vpop.f32.mrf.mxu0
  %v416 = vadd.f32 %v308, %v415
  %v417 = vpop.f32.mrf.mxu0
  %v418 = vadd.f32 %v312, %v417
  %419 = vmatprep.mubr.f32.mxu0 0.0
  %420 = vmatmul.mubr.f32.gmra.mxu0 %v301
  %v421 = vpop.f32.mrf.mxu0
  %v422 = vadd.f32 %v308, %v421
  %v423 = vpop.f32.mrf.mxu0
  %v424 = vadd.f32 %v312, %v423
  %425 = vmatprep.mubr.f32.mxu0 0.0
  %426 = vmatmul.mubr.f32.gmra.mxu0 %v302
  %v427 = vpop.f32.mrf.mxu0
  %v428 = vadd.f32 %v308, %v427
  %v429 = vpop.f32.mrf.mxu0
  %v430 = vadd.f32 %v312, %v429
  %431 = vmatprep.mubr.f32.mxu0 0.0
  %432 = vmatmul.mubr.f32.gmra.mxu0 %v303
  %v433 = vpop.f32.mrf.mxu0
  %v434 = vadd.f32 %v308, %v433
  %v435 = vpop.f32.mrf.mxu0
  %v436 = vadd.f32 %v312, %v435
  %437 = vdwg.mxu0
  %438 = vmatprep.subr.mxu0 %v101
  %439 = vmatpush1.msra.mxu0 %v100
  %440 = vmatprep.subr.mxu0 %v97
  %441 = vmatpush1.msra.mxu0 %v96
  %442 = vmatprep.subr.mxu0 %v93
  %443 = vmatpush1.msra.mxu0 %v92
  %444 = vmatprep.subr.mxu0 %v89
  %445 = vmatpush1.msra.mxu0 %v88
  %446 = vmatprep.subr.mxu0 %v85
  %447 = vmatpush1.msra.mxu0 %v84
  %448 = vmatprep.subr.mxu0 %v81
  %449 = vmatpush1.msra.mxu0 %v80
  %450 = vmatprep.subr.mxu0 %v77
  %451 = vmatpush1.msra.mxu0 %v76
  %452 = vmatprep.subr.mxu0 %v73
  %453 = vmatpush1.msra.mxu0 %v72
  %454 = vmatprep.subr.mxu0 %v69
  %455 = vmatpush1.msra.mxu0 %v68
  %456 = vmatprep.subr.mxu0 %v65
  %457 = vmatpush1.msra.mxu0 %v64
  %458 = vmatprep.subr.mxu0 %v61
  %459 = vmatpush1.msra.mxu0 %v60
  %460 = vmatprep.subr.mxu0 %v57
  %461 = vmatpush1.msra.mxu0 %v56
  %462 = vmatprep.subr.mxu0 %v53
  %463 = vmatpush1.msra.mxu0 %v52
  %464 = vmatprep.subr.mxu0 %v49
  %465 = vmatpush1.msra.mxu0 %v48
  %466 = vmatprep.subr.mxu0 %v45
  %467 = vmatpush1.msra.mxu0 %v44
  %468 = vmatprep.subr.mxu0 %v41
  %469 = vmatpush1.msra.mxu0 %v40
  %470 = vmatprep.subr.mxu0 0.0
  %471 = vmatpush2.msra.mxu0 0.0
  %472 = vmatprep.subr.mxu0 0.0
  %473 = vmatpush2.msra.mxu0 0.0
  %474 = vmatprep.subr.mxu0 0.0
  %475 = vmatpush2.msra.mxu0 0.0
  %476 = vmatprep.subr.mxu0 0.0
  %477 = vmatpush2.msra.mxu0 0.0
  %478 = vmatprep.subr.mxu0 0.0
  %479 = vmatpush2.msra.mxu0 0.0
  %480 = vmatprep.subr.mxu0 0.0
  %481 = vmatpush2.msra.mxu0 0.0
  %482 = vmatprep.subr.mxu0 0.0
  %483 = vmatpush2.msra.mxu0 0.0
  %484 = vmatprep.subr.mxu0 0.0
  %485 = vmatpush2.msra.mxu0 0.0
  %486 = vmatprep.subr.mxu0 0.0
  %487 = vmatpush2.msra.mxu0 0.0
  %488 = vmatprep.subr.mxu0 0.0
  %489 = vmatpush2.msra.mxu0 0.0
  %490 = vmatprep.subr.mxu0 0.0
  %491 = vmatpush2.msra.mxu0 0.0
  %492 = vmatprep.subr.mxu0 0.0
  %493 = vmatpush2.msra.mxu0 0.0
  %494 = vmatprep.subr.mxu0 0.0
  %495 = vmatpush2.msra.mxu0 0.0
  %496 = vmatprep.subr.mxu0 0.0
  %497 = vmatpush2.msra.mxu0 0.0
  %498 = vmatprep.subr.mxu0 0.0
  %499 = vmatpush2.msra.mxu0 0.0
  %500 = vmatprep.subr.mxu0 0.0
  %501 = vmatpush2.msra.mxu0 0.0
  %502 = vmatprep.mubr.f32.mxu0 0.0
  %503 = vmatmul.mubr.f32.gmra.mxu0 %v296
  %v504 = vpop.f32.mrf.mxu0
  %v505 = vadd.f32 %v316, %v504
  %v506 = vpop.f32.mrf.mxu0
  %v507 = vadd.f32 %v320, %v506
  %508 = vmatprep.mubr.f32.mxu0 0.0
  %509 = vmatmul.mubr.f32.gmra.mxu0 %v297
  %v510 = vpop.f32.mrf.mxu0
  %v511 = vadd.f32 %v316, %v510
  %v512 = vpop.f32.mrf.mxu0
  %v513 = vadd.f32 %v320, %v512
  %514 = vmatprep.mubr.f32.mxu0 0.0
  %515 = vmatmul.mubr.f32.gmra.mxu0 %v298
  %v516 = vpop.f32.mrf.mxu0
  %v517 = vadd.f32 %v316, %v516
  %v518 = vpop.f32.mrf.mxu0
  %v519 = vadd.f32 %v320, %v518
  %520 = vmatprep.mubr.f32.mxu0 0.0
  %521 = vmatmul.mubr.f32.gmra.mxu0 %v299
  %v522 = vpop.f32.mrf.mxu0
  %v523 = vadd.f32 %v316, %v522
  %v524 = vpop.f32.mrf.mxu0
  %v525 = vadd.f32 %v320, %v524
  %526 = vmatprep.mubr.f32.mxu0 0.0
  %527 = vmatmul.mubr.f32.gmra.mxu0 %v300
  %v528 = vpop.f32.mrf.mxu0
  %v529 = vadd.f32 %v316, %v528
  %v530 = vpop.f32.mrf.mxu0
  %v531 = vadd.f32 %v320, %v530
  %532 = vmatprep.mubr.f32.mxu0 0.0
  %533 = vmatmul.mubr.f32.gmra.mxu0 %v301
  %v534 = vpop.f32.mrf.mxu0
  %v535 = vadd.f32 %v316, %v534
  %v536 = vpop.f32.mrf.mxu0
  %v537 = vadd.f32 %v320, %v536
  %538 = vmatprep.mubr.f32.mxu0 0.0
  %539 = vmatmul.mubr.f32.gmra.mxu0 %v302
  %v540 = vpop.f32.mrf.mxu0
  %v541 = vadd.f32 %v316, %v540
  %v542 = vpop.f32.mrf.mxu0
  %v543 = vadd.f32 %v320, %v542
  %544 = vmatprep.mubr.f32.mxu0 0.0
  %545 = vmatmul.mubr.f32.gmra.mxu0 %v303
  %v546 = vpop.f32.mrf.mxu0
  %v547 = vadd.f32 %v316, %v546
  %v548 = vpop.f32.mrf.mxu0
  %v549 = vadd.f32 %v320, %v548
  %550 = vdwg.mxu0
  %551 = vmatprep.subr.mxu0 %v227
  %552 = vmatpush1.msra.mxu0 %v226
  %553 = vmatprep.subr.mxu0 %v223
  %554 = vmatpush1.msra.mxu0 %v222
  %555 = vmatprep.subr.mxu0 %v219
  %556 = vmatpush1.msra.mxu0 %v218
  %557 = vmatprep.subr.mxu0 %v215
  %558 = vmatpush1.msra.mxu0 %v214
  %559 = vmatprep.subr.mxu0 %v211
  %560 = vmatpush1.msra.mxu0 %v210
  %561 = vmatprep.subr.mxu0 %v207
  %562 = vmatpush1.msra.mxu0 %v206
  %563 = vmatprep.subr.mxu0 %v203
  %564 = vmatpush1.msra.mxu0 %v202
  %565 = vmatprep.subr.mxu0 %v199
  %566 = vmatpush1.msra.mxu0 %v198
  %567 = vmatprep.subr.mxu0 %v195
  %568 = vmatpush1.msra.mxu0 %v194
  %569 = vmatprep.subr.mxu0 %v191
  %570 = vmatpush1.msra.mxu0 %v190
  %571 = vmatprep.subr.mxu0 %v187
  %572 = vmatpush1.msra.mxu0 %v186
  %573 = vmatprep.subr.mxu0 %v183
  %574 = vmatpush1.msra.mxu0 %v182
  %575 = vmatprep.subr.mxu0 %v179
  %576 = vmatpush1.msra.mxu0 %v178
  %577 = vmatprep.subr.mxu0 %v175
  %578 = vmatpush1.msra.mxu0 %v174
  %579 = vmatprep.subr.mxu0 %v171
  %580 = vmatpush1.msra.mxu0 %v170
  %581 = vmatprep.subr.mxu0 %v167
  %582 = vmatpush1.msra.mxu0 %v166
  %583 = vmatprep.subr.mxu0 0.0
  %584 = vmatpush2.msra.mxu0 0.0
  %585 = vmatprep.subr.mxu0 0.0
  %586 = vmatpush2.msra.mxu0 0.0
  %587 = vmatprep.subr.mxu0 0.0
  %588 = vmatpush2.msra.mxu0 0.0
  %589 = vmatprep.subr.mxu0 0.0
  %590 = vmatpush2.msra.mxu0 0.0
  %591 = vmatprep.subr.mxu0 0.0
  %592 = vmatpush2.msra.mxu0 0.0
  %593 = vmatprep.subr.mxu0 0.0
  %594 = vmatpush2.msra.mxu0 0.0
  %595 = vmatprep.subr.mxu0 0.0
  %596 = vmatpush2.msra.mxu0 0.0
  %597 = vmatprep.subr.mxu0 0.0
  %598 = vmatpush2.msra.mxu0 0.0
  %599 = vmatprep.subr.mxu0 0.0
  %600 = vmatpush2.msra.mxu0 0.0
  %601 = vmatprep.subr.mxu0 0.0
  %602 = vmatpush2.msra.mxu0 0.0
  %603 = vmatprep.subr.mxu0 0.0
  %604 = vmatpush2.msra.mxu0 0.0
  %605 = vmatprep.subr.mxu0 0.0
  %606 = vmatpush2.msra.mxu0 0.0
  %607 = vmatprep.subr.mxu0 0.0
  %608 = vmatpush2.msra.mxu0 0.0
  %609 = vmatprep.subr.mxu0 0.0
  %610 = vmatpush2.msra.mxu0 0.0
  %611 = vmatprep.subr.mxu0 0.0
  %612 = vmatpush2.msra.mxu0 0.0
  %613 = vmatprep.subr.mxu0 0.0
  %614 = vmatpush2.msra.mxu0 0.0
  %615 = vmatprep.mubr.f32.mxu0 0.0
  %616 = vmatmul.mubr.f32.gmra.mxu0 0.0
  %v617 = vpop.f32.mrf.mxu0
  %v618 = vadd.f32 0.0, %v617
  %v619 = vpop.f32.mrf.mxu0
  %v620 = vadd.f32 0.0, %v619
  %621 = vdwg.mxu0
  %622 = vmatprep.subr.mxu0 %v229
  %623 = vmatpush1.msra.mxu0 %v228
  %624 = vmatprep.subr.mxu0 %v225
  %625 = vmatpush1.msra.mxu0 %v224
  %626 = vmatprep.subr.mxu0 %v221
  %627 = vmatpush1.msra.mxu0 %v220
  %628 = vmatprep.subr.mxu0 %v217
  %629 = vmatpush1.msra.mxu0 %v216
  %630 = vmatprep.subr.mxu0 %v213
  %631 = vmatpush1.msra.mxu0 %v212
  %632 = vmatprep.subr.mxu0 %v209
  %633 = vmatpush1.msra.mxu0 %v208
  %634 = vmatprep.subr.mxu0 %v205
  %635 = vmatpush1.msra.mxu0 %v204
  %636 = vmatprep.subr.mxu0 %v201
  %637 = vmatpush1.msra.mxu0 %v200
  %638 = vmatprep.subr.mxu0 %v197
  %639 = vmatpush1.msra.mxu0 %v196
  %640 = vmatprep.subr.mxu0 %v193
  %641 = vmatpush1.msra.mxu0 %v192
  %642 = vmatprep.subr.mxu0 %v189
  %643 = vmatpush1.msra.mxu0 %v188
  %644 = vmatprep.subr.mxu0 %v185
  %645 = vmatpush1.msra.mxu0 %v184
  %646 = vmatprep.subr.mxu0 %v181
  %647 = vmatpush1.msra.mxu0 %v180
  %648 = vmatprep.subr.mxu0 %v177
  %649 = vmatpush1.msra.mxu0 %v176
  %650 = vmatprep.subr.mxu0 %v173
  %651 = vmatpush1.msra.mxu0 %v172
  %652 = vmatprep.subr.mxu0 %v169
  %653 = vmatpush1.msra.mxu0 %v168
  %654 = vmatprep.subr.mxu0 0.0
  %655 = vmatpush2.msra.mxu0 0.0
  %656 = vmatprep.subr.mxu0 0.0
  %657 = vmatpush2.msra.mxu0 0.0
  %658 = vmatprep.subr.mxu0 0.0
  %659 = vmatpush2.msra.mxu0 0.0
  %660 = vmatprep.subr.mxu0 0.0
  %661 = vmatpush2.msra.mxu0 0.0
  %662 = vmatprep.subr.mxu0 0.0
  %663 = vmatpush2.msra.mxu0 0.0
  %664 = vmatprep.subr.mxu0 0.0
  %665 = vmatpush2.msra.mxu0 0.0
  %666 = vmatprep.subr.mxu0 0.0
  %667 = vmatpush2.msra.mxu0 0.0
  %668 = vmatprep.subr.mxu0 0.0
  %669 = vmatpush2.msra.mxu0 0.0
  %670 = vmatprep.subr.mxu0 0.0
  %671 = vmatpush2.msra.mxu0 0.0
  %672 = vmatprep.subr.mxu0 0.0
  %673 = vmatpush2.msra.mxu0 0.0
  %674 = vmatprep.subr.mxu0 0.0
  %675 = vmatpush2.msra.mxu0 0.0
  %676 = vmatprep.subr.mxu0 0.0
  %677 = vmatpush2.msra.mxu0 0.0
  %678 = vmatprep.subr.mxu0 0.0
  %679 = vmatpush2.msra.mxu0 0.0
  %680 = vmatprep.subr.mxu0 0.0
  %681 = vmatpush2.msra.mxu0 0.0
  %682 = vmatprep.subr.mxu0 0.0
  %683 = vmatpush2.msra.mxu0 0.0
  %684 = vmatprep.subr.mxu0 0.0
  %685 = vmatpush2.msra.mxu0 0.0
  %686 = vmatprep.mubr.f32.mxu0 0.0
  %687 = vmatmul.mubr.f32.gmra.mxu0 0.0
  %v688 = vpop.f32.mrf.mxu0
  %v689 = vadd.f32 0.0, %v688
  %v690 = vpop.f32.mrf.mxu0
  %v691 = vadd.f32 0.0, %v690
  %692 = vdwg.mxu0
  %v693 = vadd.f32 %v392, %v618
  %v694 = vadd.f32 %v394, %v620
  %v695 = vadd.f32 %v505, %v689
  %v696 = vadd.f32 %v507, %v691
  %v697 = vxor.u32 %v693, 2147483648
  %v698 = vmul.f32 %v697, 1.442695
  %v699 = vpow.pop %v698
  %v700 = vadd.f32 %v699, 1.0
  %v701 = vrcp.pop %v700
  %v702 = vmul.f32 1.0, %v701
  %v703 = vxor.u32 %v694, 2147483648
  %v704 = vmul.f32 %v703, 1.442695
  %v705 = vpow.pop %v704
  %v706 = vadd.f32 %v705, 1.0
  %v707 = vrcp.pop %v706
  %v708 = vmul.f32 1.0, %v707
  %v709 = vtanh.pop %v695
  %v710 = vxor.u32 %v696, 2147483648
  %v711 = vmul.f32 %v710, 1.442695
  %v712 = vpow.pop %v711
  %v713 = vadd.f32 %v712, 1.0
  %v714 = vrcp.pop %v713
  %v715 = vmul.f32 1.0, %v714
  %v716 = vmul.f32 %v708, 0.0
  %v717 = vmul.f32 %v702, %v709
  %v718 = vadd.f32 %v716, %v717
  %v719 = vtanh.pop %v718
  %v720 = vmul.f32 %v715, %v719
  %721 = vmatprep.subr.mxu0 %v227
  %722 = vmatpush1.msra.mxu0 %v226
  %723 = vmatprep.subr.mxu0 %v223
  %724 = vmatpush1.msra.mxu0 %v222
  %725 = vmatprep.subr.mxu0 %v219
  %726 = vmatpush1.msra.mxu0 %v218
  %727 = vmatprep.subr.mxu0 %v215
  %728 = vmatpush1.msra.mxu0 %v214
  %729 = vmatprep.subr.mxu0 %v211
  %730 = vmatpush1.msra.mxu0 %v210
  %731 = vmatprep.subr.mxu0 %v207
  %732 = vmatpush1.msra.mxu0 %v206
  %733 = vmatprep.subr.mxu0 %v203
  %734 = vmatpush1.msra.mxu0 %v202
  %735 = vmatprep.subr.mxu0 %v199
  %736 = vmatpush1.msra.mxu0 %v198
  %737 = vmatprep.subr.mxu0 %v195
  %738 = vmatpush1.msra.mxu0 %v194
  %739 = vmatprep.subr.mxu0 %v191
  %740 = vmatpush1.msra.mxu0 %v190
  %741 = vmatprep.subr.mxu0 %v187
  %742 = vmatpush1.msra.mxu0 %v186
  %743 = vmatprep.subr.mxu0 %v183
  %744 = vmatpush1.msra.mxu0 %v182
  %745 = vmatprep.subr.mxu0 %v179
  %746 = vmatpush1.msra.mxu0 %v178
  %747 = vmatprep.subr.mxu0 %v175
  %748 = vmatpush1.msra.mxu0 %v174
  %749 = vmatprep.subr.mxu0 %v171
  %750 = vmatpush1.msra.mxu0 %v170
  %751 = vmatprep.subr.mxu0 %v167
  %752 = vmatpush1.msra.mxu0 %v166
  %753 = vmatprep.subr.mxu0 0.0
  %754 = vmatpush2.msra.mxu0 0.0
  %755 = vmatprep.subr.mxu0 0.0
  %756 = vmatpush2.msra.mxu0 0.0
  %757 = vmatprep.subr.mxu0 0.0
  %758 = vmatpush2.msra.mxu0 0.0
  %759 = vmatprep.subr.mxu0 0.0
  %760 = vmatpush2.msra.mxu0 0.0
  %761 = vmatprep.subr.mxu0 0.0
  %762 = vmatpush2.msra.mxu0 0.0
  %763 = vmatprep.subr.mxu0 0.0
  %764 = vmatpush2.msra.mxu0 0.0
  %765 = vmatprep.subr.mxu0 0.0
  %766 = vmatpush2.msra.mxu0 0.0
  %767 = vmatprep.subr.mxu0 0.0
  %768 = vmatpush2.msra.mxu0 0.0
  %769 = vmatprep.subr.mxu0 0.0
  %770 = vmatpush2.msra.mxu0 0.0
  %771 = vmatprep.subr.mxu0 0.0
  %772 = vmatpush2.msra.mxu0 0.0
  %773 = vmatprep.subr.mxu0 0.0
  %774 = vmatpush2.msra.mxu0 0.0
  %775 = vmatprep.subr.mxu0 0.0
  %776 = vmatpush2.msra.mxu0 0.0
  %777 = vmatprep.subr.mxu0 0.0
  %778 = vmatpush2.msra.mxu0 0.0
  %779 = vmatprep.subr.mxu0 0.0
  %780 = vmatpush2.msra.mxu0 0.0
  %781 = vmatprep.subr.mxu0 0.0
  %782 = vmatpush2.msra.mxu0 0.0
  %783 = vmatprep.subr.mxu0 0.0
  %784 = vmatpush2.msra.mxu0 0.0
  %785 = vmatprep.mubr.f32.mxu0 0.0
  %786 = vmatmul.mubr.f32.gmra.mxu0 %v720
  %v787 = vpop.f32.mrf.mxu0
  %v788 = vadd.f32 0.0, %v787
  %v789 = vpop.f32.mrf.mxu0
  %v790 = vadd.f32 0.0, %v789
  %791 = vdwg.mxu0
  %792 = vmatprep.subr.mxu0 %v229
  %793 = vmatpush1.msra.mxu0 %v228
  %794 = vmatprep.subr.mxu0 %v225
  %795 = vmatpush1.msra.mxu0 %v224
  %796 = vmatprep.subr.mxu0 %v221
  %797 = vmatpush1.msra.mxu0 %v220
  %798 = vmatprep.subr.mxu0 %v217
  %799 = vmatpush1.msra.mxu0 %v216
  %800 = vmatprep.subr.mxu0 %v213
  %801 = vmatpush1.msra.mxu0 %v212
  %802 = vmatprep.subr.mxu0 %v209
  %803 = vmatpush1.msra.mxu0 %v208
  %804 = vmatprep.subr.mxu0 %v205
  %805 = vmatpush1.msra.mxu0 %v204
  %806 = vmatprep.subr.mxu0 %v201
  %807 = vmatpush1.msra.mxu0 %v200
  %808 = vmatprep.subr.mxu0 %v197
  %809 = vmatpush1.msra.mxu0 %v196
  %810 = vmatprep.subr.mxu0 %v193
  %811 = vmatpush1.msra.mxu0 %v192
  %812 = vmatprep.subr.mxu0 %v189
  %813 = vmatpush1.msra.mxu0 %v188
  %814 = vmatprep.subr.mxu0 %v185
  %815 = vmatpush1.msra.mxu0 %v184
  %816 = vmatprep.subr.mxu0 %v181
  %817 = vmatpush1.msra.mxu0 %v180
  %818 = vmatprep.subr.mxu0 %v177
  %819 = vmatpush1.msra.mxu0 %v176
  %820 = vmatprep.subr.mxu0 %v173
  %821 = vmatpush1.msra.mxu0 %v172
  %822 = vmatprep.subr.mxu0 %v169
  %823 = vmatpush1.msra.mxu0 %v168
  %824 = vmatprep.subr.mxu0 0.0
  %825 = vmatpush2.msra.mxu0 0.0
  %826 = vmatprep.subr.mxu0 0.0
  %827 = vmatpush2.msra.mxu0 0.0
  %828 = vmatprep.subr.mxu0 0.0
  %829 = vmatpush2.msra.mxu0 0.0
  %830 = vmatprep.subr.mxu0 0.0
  %831 = vmatpush2.msra.mxu0 0.0
  %832 = vmatprep.subr.mxu0 0.0
  %833 = vmatpush2.msra.mxu0 0.0
  %834 = vmatprep.subr.mxu0 0.0
  %835 = vmatpush2.msra.mxu0 0.0
  %836 = vmatprep.subr.mxu0 0.0
  %837 = vmatpush2.msra.mxu0 0.0
  %838 = vmatprep.subr.mxu0 0.0
  %839 = vmatpush2.msra.mxu0 0.0
  %840 = vmatprep.subr.mxu0 0.0
  %841 = vmatpush2.msra.mxu0 0.0
  %842 = vmatprep.subr.mxu0 0.0
  %843 = vmatpush2.msra.mxu0 0.0
  %844 = vmatprep.subr.mxu0 0.0
  %845 = vmatpush2.msra.mxu0 0.0
  %846 = vmatprep.subr.mxu0 0.0
  %847 = vmatpush2.msra.mxu0 0.0
  %848 = vmatprep.subr.mxu0 0.0
  %849 = vmatpush2.msra.mxu0 0.0
  %850 = vmatprep.subr.mxu0 0.0
  %851 = vmatpush2.msra.mxu0 0.0
  %852 = vmatprep.subr.mxu0 0.0
  %853 = vmatpush2.msra.mxu0 0.0
  %854 = vmatprep.subr.mxu0 0.0
  %855 = vmatpush2.msra.mxu0 0.0
  %856 = vmatprep.mubr.f32.mxu0 0.0
  %857 = vmatmul.mubr.f32.gmra.mxu0 %v720
  %v858 = vpop.f32.mrf.mxu0
  %v859 = vadd.f32 0.0, %v858
  %v860 = vpop.f32.mrf.mxu0
  %v861 = vadd.f32 0.0, %v860
  %862 = vdwg.mxu0
  %v863 = vadd.f32 %v398, %v788
  %v864 = vadd.f32 %v400, %v790
  %v865 = vadd.f32 %v511, %v859
  %v866 = vadd.f32 %v513, %v861
  %v867 = vxor.u32 %v863, 2147483648
  %v868 = vmul.f32 %v867, 1.442695
  %v869 = vpow.pop %v868
  %v870 = vadd.f32 %v869, 1.0
  %v871 = vrcp.pop %v870
  %v872 = vmul.f32 1.0, %v871
  %v873 = vxor.u32 %v864, 2147483648
  %v874 = vmul.f32 %v873, 1.442695
  %v875 = vpow.pop %v874
  %v876 = vadd.f32 %v875, 1.0
  %v877 = vrcp.pop %v876
  %v878 = vmul.f32 1.0, %v877
  %v879 = vtanh.pop %v865
  %v880 = vxor.u32 %v866, 2147483648
  %v881 = vmul.f32 %v880, 1.442695
  %v882 = vpow.pop %v881
  %v883 = vadd.f32 %v882, 1.0
  %v884 = vrcp.pop %v883
  %v885 = vmul.f32 1.0, %v884
  %v886 = vmul.f32 %v878, %v718
  %v887 = vmul.f32 %v872, %v879
  %v888 = vadd.f32 %v886, %v887
  %v889 = vtanh.pop %v888
  %v890 = vmul.f32 %v885, %v889
  %v892 = vlaneseq
  %v893 = vshrl.u32 %v892, 7
  %v894 = vsub.s32 0, %v893
  %v895 = vrot.slane %v295, %v894
  %v896 = vlaneseq
  %v897 = vshrl.u32 %v896, 7
  %v898 = vsub.s32 1, %v897
  %v899 = vrot.slane %v295, %v898
  %v900 = vlaneseq
  %v901 = vshrl.u32 %v900, 7
  %v902 = vsub.s32 2, %v901
  %v903 = vrot.slane %v295, %v902
  %v904 = vlaneseq
  %v905 = vshrl.u32 %v904, 7
  %v906 = vsub.s32 3, %v905
  %v907 = vrot.slane %v295, %v906
  %912 = vmatprep.subr.mxu0 %v163
  %913 = vmatpush1.msra.mxu0 %v162
  %914 = vmatprep.subr.mxu0 %v159
  %915 = vmatpush1.msra.mxu0 %v158
  %916 = vmatprep.subr.mxu0 %v155
  %917 = vmatpush1.msra.mxu0 %v154
  %918 = vmatprep.subr.mxu0 %v151
  %919 = vmatpush1.msra.mxu0 %v150
  %920 = vmatprep.subr.mxu0 %v147
  %921 = vmatpush1.msra.mxu0 %v146
  %922 = vmatprep.subr.mxu0 %v143
  %923 = vmatpush1.msra.mxu0 %v142
  %924 = vmatprep.subr.mxu0 %v139
  %925 = vmatpush1.msra.mxu0 %v138
  %926 = vmatprep.subr.mxu0 %v135
  %927 = vmatpush1.msra.mxu0 %v134
  %928 = vmatprep.subr.mxu0 %v131
  %929 = vmatpush1.msra.mxu0 %v130
  %930 = vmatprep.subr.mxu0 %v127
  %931 = vmatpush1.msra.mxu0 %v126
  %932 = vmatprep.subr.mxu0 %v123
  %933 = vmatpush1.msra.mxu0 %v122
  %934 = vmatprep.subr.mxu0 %v119
  %935 = vmatpush1.msra.mxu0 %v118
  %936 = vmatprep.subr.mxu0 %v115
  %937 = vmatpush1.msra.mxu0 %v114
  %938 = vmatprep.subr.mxu0 %v111
  %939 = vmatpush1.msra.mxu0 %v110
  %940 = vmatprep.subr.mxu0 %v107
  %941 = vmatpush1.msra.mxu0 %v106
  %942 = vmatprep.subr.mxu0 %v103
  %943 = vmatpush1.msra.mxu0 %v102
  %944 = vmatprep.subr.mxu0 0.0
  %945 = vmatpush2.msra.mxu0 0.0
  %946 = vmatprep.subr.mxu0 0.0
  %947 = vmatpush2.msra.mxu0 0.0
  %948 = vmatprep.subr.mxu0 0.0
  %949 = vmatpush2.msra.mxu0 0.0
  %950 = vmatprep.subr.mxu0 0.0
  %951 = vmatpush2.msra.mxu0 0.0
  %952 = vmatprep.subr.mxu0 0.0
  %953 = vmatpush2.msra.mxu0 0.0
  %954 = vmatprep.subr.mxu0 0.0
  %955 = vmatpush2.msra.mxu0 0.0
  %956 = vmatprep.subr.mxu0 0.0
  %957 = vmatpush2.msra.mxu0 0.0
  %958 = vmatprep.subr.mxu0 0.0
  %959 = vmatpush2.msra.mxu0 0.0
  %960 = vmatprep.subr.mxu0 0.0
  %961 = vmatpush2.msra.mxu0 0.0
  %962 = vmatprep.subr.mxu0 0.0
  %963 = vmatpush2.msra.mxu0 0.0
  %964 = vmatprep.subr.mxu0 0.0
  %965 = vmatpush2.msra.mxu0 0.0
  %966 = vmatprep.subr.mxu0 0.0
  %967 = vmatpush2.msra.mxu0 0.0
  %968 = vmatprep.subr.mxu0 0.0
  %969 = vmatpush2.msra.mxu0 0.0
  %970 = vmatprep.subr.mxu0 0.0
  %971 = vmatpush2.msra.mxu0 0.0
  %972 = vmatprep.subr.mxu0 0.0
  %973 = vmatpush2.msra.mxu0 0.0
  %974 = vmatprep.subr.mxu0 0.0
  %975 = vmatpush2.msra.mxu0 0.0
  %976 = vmatprep.mubr.f32.mxu0 0.0
  %977 = vmatmul.mubr.f32.gmra.mxu0 %v720
  %v978 = vpop.f32.mrf.mxu0
  %v979 = vadd.f32 %v895, %v978
  %v980 = vpop.f32.mrf.mxu0
  %v981 = vadd.f32 %v899, %v980
  %982 = vdwg.mxu0
  %983 = vmatprep.subr.mxu0 %v165
  %984 = vmatpush1.msra.mxu0 %v164
  %985 = vmatprep.subr.mxu0 %v161
  %986 = vmatpush1.msra.mxu0 %v160
  %987 = vmatprep.subr.mxu0 %v157
  %988 = vmatpush1.msra.mxu0 %v156
  %989 = vmatprep.subr.mxu0 %v153
  %990 = vmatpush1.msra.mxu0 %v152
  %991 = vmatprep.subr.mxu0 %v149
  %992 = vmatpush1.msra.mxu0 %v148
  %993 = vmatprep.subr.mxu0 %v145
  %994 = vmatpush1.msra.mxu0 %v144
  %995 = vmatprep.subr.mxu0 %v141
  %996 = vmatpush1.msra.mxu0 %v140
  %997 = vmatprep.subr.mxu0 %v137
  %998 = vmatpush1.msra.mxu0 %v136
  %999 = vmatprep.subr.mxu0 %v133
  %1000 = vmatpush1.msra.mxu0 %v132
  %1001 = vmatprep.subr.mxu0 %v129
  %1002 = vmatpush1.msra.mxu0 %v128
  %1003 = vmatprep.subr.mxu0 %v125
  %1004 = vmatpush1.msra.mxu0 %v124
  %1005 = vmatprep.subr.mxu0 %v121
  %1006 = vmatpush1.msra.mxu0 %v120
  %1007 = vmatprep.subr.mxu0 %v117
  %1008 = vmatpush1.msra.mxu0 %v116
  %1009 = vmatprep.subr.mxu0 %v113
  %1010 = vmatpush1.msra.mxu0 %v112
  %1011 = vmatprep.subr.mxu0 %v109
  %1012 = vmatpush1.msra.mxu0 %v108
  %1013 = vmatprep.subr.mxu0 %v105
  %1014 = vmatpush1.msra.mxu0 %v104
  %1015 = vmatprep.subr.mxu0 0.0
  %1016 = vmatpush2.msra.mxu0 0.0
  %1017 = vmatprep.subr.mxu0 0.0
  %1018 = vmatpush2.msra.mxu0 0.0
  %1019 = vmatprep.subr.mxu0 0.0
  %1020 = vmatpush2.msra.mxu0 0.0
  %1021 = vmatprep.subr.mxu0 0.0
  %1022 = vmatpush2.msra.mxu0 0.0
  %1023 = vmatprep.subr.mxu0 0.0
  %1024 = vmatpush2.msra.mxu0 0.0
  %1025 = vmatprep.subr.mxu0 0.0
  %1026 = vmatpush2.msra.mxu0 0.0
  %1027 = vmatprep.subr.mxu0 0.0
  %1028 = vmatpush2.msra.mxu0 0.0
  %1029 = vmatprep.subr.mxu0 0.0
  %1030 = vmatpush2.msra.mxu0 0.0
  %1031 = vmatprep.subr.mxu0 0.0
  %1032 = vmatpush2.msra.mxu0 0.0
  %1033 = vmatprep.subr.mxu0 0.0
  %1034 = vmatpush2.msra.mxu0 0.0
  %1035 = vmatprep.subr.mxu0 0.0
  %1036 = vmatpush2.msra.mxu0 0.0
  %1037 = vmatprep.subr.mxu0 0.0
  %1038 = vmatpush2.msra.mxu0 0.0
  %1039 = vmatprep.subr.mxu0 0.0
  %1040 = vmatpush2.msra.mxu0 0.0
  %1041 = vmatprep.subr.mxu0 0.0
  %1042 = vmatpush2.msra.mxu0 0.0
  %1043 = vmatprep.subr.mxu0 0.0
  %1044 = vmatpush2.msra.mxu0 0.0
  %1045 = vmatprep.subr.mxu0 0.0
  %1046 = vmatpush2.msra.mxu0 0.0
  %1047 = vmatprep.mubr.f32.mxu0 0.0
  %1048 = vmatmul.mubr.f32.gmra.mxu0 %v720
  %v1049 = vpop.f32.mrf.mxu0
  %v1050 = vadd.f32 %v903, %v1049
  %v1051 = vpop.f32.mrf.mxu0
  %v1052 = vadd.f32 %v907, %v1051
  %1053 = vdwg.mxu0
  %1054 = vmatprep.subr.mxu0 %v291
  %1055 = vmatpush1.msra.mxu0 %v290
  %1056 = vmatprep.subr.mxu0 %v287
  %1057 = vmatpush1.msra.mxu0 %v286
  %1058 = vmatprep.subr.mxu0 %v283
  %1059 = vmatpush1.msra.mxu0 %v282
  %1060 = vmatprep.subr.mxu0 %v279
  %1061 = vmatpush1.msra.mxu0 %v278
  %1062 = vmatprep.subr.mxu0 %v275
  %1063 = vmatpush1.msra.mxu0 %v274
  %1064 = vmatprep.subr.mxu0 %v271
  %1065 = vmatpush1.msra.mxu0 %v270
  %1066 = vmatprep.subr.mxu0 %v267
  %1067 = vmatpush1.msra.mxu0 %v266
  %1068 = vmatprep.subr.mxu0 %v263
  %1069 = vmatpush1.msra.mxu0 %v262
  %1070 = vmatprep.subr.mxu0 %v259
  %1071 = vmatpush1.msra.mxu0 %v258
  %1072 = vmatprep.subr.mxu0 %v255
  %1073 = vmatpush1.msra.mxu0 %v254
  %1074 = vmatprep.subr.mxu0 %v251
  %1075 = vmatpush1.msra.mxu0 %v250
  %1076 = vmatprep.subr.mxu0 %v247
  %1077 = vmatpush1.msra.mxu0 %v246
  %1078 = vmatprep.subr.mxu0 %v243
  %1079 = vmatpush1.msra.mxu0 %v242
  %1080 = vmatprep.subr.mxu0 %v239
  %1081 = vmatpush1.msra.mxu0 %v238
  %1082 = vmatprep.subr.mxu0 %v235
  %1083 = vmatpush1.msra.mxu0 %v234
  %1084 = vmatprep.subr.mxu0 %v231
  %1085 = vmatpush1.msra.mxu0 %v230
  %1086 = vmatprep.subr.mxu0 0.0
  %1087 = vmatpush2.msra.mxu0 0.0
  %1088 = vmatprep.subr.mxu0 0.0
  %1089 = vmatpush2.msra.mxu0 0.0
  %1090 = vmatprep.subr.mxu0 0.0
  %1091 = vmatpush2.msra.mxu0 0.0
  %1092 = vmatprep.subr.mxu0 0.0
  %1093 = vmatpush2.msra.mxu0 0.0
  %1094 = vmatprep.subr.mxu0 0.0
  %1095 = vmatpush2.msra.mxu0 0.0
  %1096 = vmatprep.subr.mxu0 0.0
  %1097 = vmatpush2.msra.mxu0 0.0
  %1098 = vmatprep.subr.mxu0 0.0
  %1099 = vmatpush2.msra.mxu0 0.0
  %1100 = vmatprep.subr.mxu0 0.0
  %1101 = vmatpush2.msra.mxu0 0.0
  %1102 = vmatprep.subr.mxu0 0.0
  %1103 = vmatpush2.msra.mxu0 0.0
  %1104 = vmatprep.subr.mxu0 0.0
  %1105 = vmatpush2.msra.mxu0 0.0
  %1106 = vmatprep.subr.mxu0 0.0
  %1107 = vmatpush2.msra.mxu0 0.0
  %1108 = vmatprep.subr.mxu0 0.0
  %1109 = vmatpush2.msra.mxu0 0.0
  %1110 = vmatprep.subr.mxu0 0.0
  %1111 = vmatpush2.msra.mxu0 0.0
  %1112 = vmatprep.subr.mxu0 0.0
  %1113 = vmatpush2.msra.mxu0 0.0
  %1114 = vmatprep.subr.mxu0 0.0
  %1115 = vmatpush2.msra.mxu0 0.0
  %1116 = vmatprep.subr.mxu0 0.0
  %1117 = vmatpush2.msra.mxu0 0.0
  %1118 = vmatprep.mubr.f32.mxu0 0.0
  %1119 = vmatmul.mubr.f32.gmra.mxu0 0.0
  %v1120 = vpop.f32.mrf.mxu0
  %v1121 = vadd.f32 0.0, %v1120
  %v1122 = vpop.f32.mrf.mxu0
  %v1123 = vadd.f32 0.0, %v1122
  %1124 = vdwg.mxu0
  %1125 = vmatprep.subr.mxu0 %v293
  %1126 = vmatpush1.msra.mxu0 %v292
  %1127 = vmatprep.subr.mxu0 %v289
  %1128 = vmatpush1.msra.mxu0 %v288
  %1129 = vmatprep.subr.mxu0 %v285
  %1130 = vmatpush1.msra.mxu0 %v284
  %1131 = vmatprep.subr.mxu0 %v281
  %1132 = vmatpush1.msra.mxu0 %v280
  %1133 = vmatprep.subr.mxu0 %v277
  %1134 = vmatpush1.msra.mxu0 %v276
  %1135 = vmatprep.subr.mxu0 %v273
  %1136 = vmatpush1.msra.mxu0 %v272
  %1137 = vmatprep.subr.mxu0 %v269
  %1138 = vmatpush1.msra.mxu0 %v268
  %1139 = vmatprep.subr.mxu0 %v265
  %1140 = vmatpush1.msra.mxu0 %v264
  %1141 = vmatprep.subr.mxu0 %v261
  %1142 = vmatpush1.msra.mxu0 %v260
  %1143 = vmatprep.subr.mxu0 %v257
  %1144 = vmatpush1.msra.mxu0 %v256
  %1145 = vmatprep.subr.mxu0 %v253
  %1146 = vmatpush1.msra.mxu0 %v252
  %1147 = vmatprep.subr.mxu0 %v249
  %1148 = vmatpush1.msra.mxu0 %v248
  %1149 = vmatprep.subr.mxu0 %v245
  %1150 = vmatpush1.msra.mxu0 %v244
  %1151 = vmatprep.subr.mxu0 %v241
  %1152 = vmatpush1.msra.mxu0 %v240
  %1153 = vmatprep.subr.mxu0 %v237
  %1154 = vmatpush1.msra.mxu0 %v236
  %1155 = vmatprep.subr.mxu0 %v233
  %1156 = vmatpush1.msra.mxu0 %v232
  %1157 = vmatprep.subr.mxu0 0.0
  %1158 = vmatpush2.msra.mxu0 0.0
  %1159 = vmatprep.subr.mxu0 0.0
  %1160 = vmatpush2.msra.mxu0 0.0
  %1161 = vmatprep.subr.mxu0 0.0
  %1162 = vmatpush2.msra.mxu0 0.0
  %1163 = vmatprep.subr.mxu0 0.0
  %1164 = vmatpush2.msra.mxu0 0.0
  %1165 = vmatprep.subr.mxu0 0.0
  %1166 = vmatpush2.msra.mxu0 0.0
  %1167 = vmatprep.subr.mxu0 0.0
  %1168 = vmatpush2.msra.mxu0 0.0
  %1169 = vmatprep.subr.mxu0 0.0
  %1170 = vmatpush2.msra.mxu0 0.0
  %1171 = vmatprep.subr.mxu0 0.0
  %1172 = vmatpush2.msra.mxu0 0.0
  %1173 = vmatprep.subr.mxu0 0.0
  %1174 = vmatpush2.msra.mxu0 0.0
  %1175 = vmatprep.subr.mxu0 0.0
  %1176 = vmatpush2.msra.mxu0 0.0
  %1177 = vmatprep.subr.mxu0 0.0
  %1178 = vmatpush2.msra.mxu0 0.0
  %1179 = vmatprep.subr.mxu0 0.0
  %1180 = vmatpush2.msra.mxu0 0.0
  %1181 = vmatprep.subr.mxu0 0.0
  %1182 = vmatpush2.msra.mxu0 0.0
  %1183 = vmatprep.subr.mxu0 0.0
  %1184 = vmatpush2.msra.mxu0 0.0
  %1185 = vmatprep.subr.mxu0 0.0
  %1186 = vmatpush2.msra.mxu0 0.0
  %1187 = vmatprep.subr.mxu0 0.0
  %1188 = vmatpush2.msra.mxu0 0.0
  %1189 = vmatprep.mubr.f32.mxu0 0.0
  %1190 = vmatmul.mubr.f32.gmra.mxu0 0.0
  %v1191 = vpop.f32.mrf.mxu0
  %v1192 = vadd.f32 0.0, %v1191
  %v1193 = vpop.f32.mrf.mxu0
  %v1194 = vadd.f32 0.0, %v1193
  %1195 = vdwg.mxu0
  %v1196 = vadd.f32 %v979, %v1121
  %v1197 = vadd.f32 %v981, %v1123
  %v1198 = vadd.f32 %v1050, %v1192
  %v1199 = vadd.f32 %v1052, %v1194
  %v1200 = vxor.u32 %v1196, 2147483648
  %v1201 = vmul.f32 %v1200, 1.442695
  %v1202 = vpow.pop %v1201
  %v1203 = vadd.f32 %v1202, 1.0
  %v1204 = vrcp.pop %v1203
  %v1205 = vmul.f32 1.0, %v1204
  %v1206 = vxor.u32 %v1197, 2147483648
  %v1207 = vmul.f32 %v1206, 1.442695
  %v1208 = vpow.pop %v1207
  %v1209 = vadd.f32 %v1208, 1.0
  %v1210 = vrcp.pop %v1209
  %v1211 = vmul.f32 1.0, %v1210
  %v1212 = vtanh.pop %v1198
  %v1213 = vxor.u32 %v1199, 2147483648
  %v1214 = vmul.f32 %v1213, 1.442695
  %v1215 = vpow.pop %v1214
  %v1216 = vadd.f32 %v1215, 1.0
  %v1217 = vrcp.pop %v1216
  %v1218 = vmul.f32 1.0, %v1217
  %v1219 = vmul.f32 %v1211, 0.0
  %v1220 = vmul.f32 %v1205, %v1212
  %v1221 = vadd.f32 %v1219, %v1220
  %v1222 = vtanh.pop %v1221
  %v1223 = vmul.f32 %v1218, %v1222
  %1224 = vmatprep.subr.mxu0 %v227
  %1225 = vmatpush1.msra.mxu0 %v226
  %1226 = vmatprep.subr.mxu0 %v223
  %1227 = vmatpush1.msra.mxu0 %v222
  %1228 = vmatprep.subr.mxu0 %v219
  %1229 = vmatpush1.msra.mxu0 %v218
  %1230 = vmatprep.subr.mxu0 %v215
  %1231 = vmatpush1.msra.mxu0 %v214
  %1232 = vmatprep.subr.mxu0 %v211
  %1233 = vmatpush1.msra.mxu0 %v210
  %1234 = vmatprep.subr.mxu0 %v207
  %1235 = vmatpush1.msra.mxu0 %v206
  %1236 = vmatprep.subr.mxu0 %v203
  %1237 = vmatpush1.msra.mxu0 %v202
  %1238 = vmatprep.subr.mxu0 %v199
  %1239 = vmatpush1.msra.mxu0 %v198
  %1240 = vmatprep.subr.mxu0 %v195
  %1241 = vmatpush1.msra.mxu0 %v194
  %1242 = vmatprep.subr.mxu0 %v191
  %1243 = vmatpush1.msra.mxu0 %v190
  %1244 = vmatprep.subr.mxu0 %v187
  %1245 = vmatpush1.msra.mxu0 %v186
  %1246 = vmatprep.subr.mxu0 %v183
  %1247 = vmatpush1.msra.mxu0 %v182
  %1248 = vmatprep.subr.mxu0 %v179
  %1249 = vmatpush1.msra.mxu0 %v178
  %1250 = vmatprep.subr.mxu0 %v175
  %1251 = vmatpush1.msra.mxu0 %v174
  %1252 = vmatprep.subr.mxu0 %v171
  %1253 = vmatpush1.msra.mxu0 %v170
  %1254 = vmatprep.subr.mxu0 %v167
  %1255 = vmatpush1.msra.mxu0 %v166
  %1256 = vmatprep.subr.mxu0 0.0
  %1257 = vmatpush2.msra.mxu0 0.0
  %1258 = vmatprep.subr.mxu0 0.0
  %1259 = vmatpush2.msra.mxu0 0.0
  %1260 = vmatprep.subr.mxu0 0.0
  %1261 = vmatpush2.msra.mxu0 0.0
  %1262 = vmatprep.subr.mxu0 0.0
  %1263 = vmatpush2.msra.mxu0 0.0
  %1264 = vmatprep.subr.mxu0 0.0
  %1265 = vmatpush2.msra.mxu0 0.0
  %1266 = vmatprep.subr.mxu0 0.0
  %1267 = vmatpush2.msra.mxu0 0.0
  %1268 = vmatprep.subr.mxu0 0.0
  %1269 = vmatpush2.msra.mxu0 0.0
  %1270 = vmatprep.subr.mxu0 0.0
  %1271 = vmatpush2.msra.mxu0 0.0
  %1272 = vmatprep.subr.mxu0 0.0
  %1273 = vmatpush2.msra.mxu0 0.0
  %1274 = vmatprep.subr.mxu0 0.0
  %1275 = vmatpush2.msra.mxu0 0.0
  %1276 = vmatprep.subr.mxu0 0.0
  %1277 = vmatpush2.msra.mxu0 0.0
  %1278 = vmatprep.subr.mxu0 0.0
  %1279 = vmatpush2.msra.mxu0 0.0
  %1280 = vmatprep.subr.mxu0 0.0
  %1281 = vmatpush2.msra.mxu0 0.0
  %1282 = vmatprep.subr.mxu0 0.0
  %1283 = vmatpush2.msra.mxu0 0.0
  %1284 = vmatprep.subr.mxu0 0.0
  %1285 = vmatpush2.msra.mxu0 0.0
  %1286 = vmatprep.subr.mxu0 0.0
  %1287 = vmatpush2.msra.mxu0 0.0
  %1288 = vmatprep.mubr.f32.mxu0 0.0
  %1289 = vmatmul.mubr.f32.gmra.mxu0 %v890
  %v1290 = vpop.f32.mrf.mxu0
  %v1291 = vadd.f32 0.0, %v1290
  %v1292 = vpop.f32.mrf.mxu0
  %v1293 = vadd.f32 0.0, %v1292
  %1294 = vdwg.mxu0
  %1295 = vmatprep.subr.mxu0 %v229
  %1296 = vmatpush1.msra.mxu0 %v228
  %1297 = vmatprep.subr.mxu0 %v225
  %1298 = vmatpush1.msra.mxu0 %v224
  %1299 = vmatprep.subr.mxu0 %v221
  %1300 = vmatpush1.msra.mxu0 %v220
  %1301 = vmatprep.subr.mxu0 %v217
  %1302 = vmatpush1.msra.mxu0 %v216
  %1303 = vmatprep.subr.mxu0 %v213
  %1304 = vmatpush1.msra.mxu0 %v212
  %1305 = vmatprep.subr.mxu0 %v209
  %1306 = vmatpush1.msra.mxu0 %v208
  %1307 = vmatprep.subr.mxu0 %v205
  %1308 = vmatpush1.msra.mxu0 %v204
  %1309 = vmatprep.subr.mxu0 %v201
  %1310 = vmatpush1.msra.mxu0 %v200
  %1311 = vmatprep.subr.mxu0 %v197
  %1312 = vmatpush1.msra.mxu0 %v196
  %1313 = vmatprep.subr.mxu0 %v193
  %1314 = vmatpush1.msra.mxu0 %v192
  %1315 = vmatprep.subr.mxu0 %v189
  %1316 = vmatpush1.msra.mxu0 %v188
  %1317 = vmatprep.subr.mxu0 %v185
  %1318 = vmatpush1.msra.mxu0 %v184
  %1319 = vmatprep.subr.mxu0 %v181
  %1320 = vmatpush1.msra.mxu0 %v180
  %1321 = vmatprep.subr.mxu0 %v177
  %1322 = vmatpush1.msra.mxu0 %v176
  %1323 = vmatprep.subr.mxu0 %v173
  %1324 = vmatpush1.msra.mxu0 %v172
  %1325 = vmatprep.subr.mxu0 %v169
  %1326 = vmatpush1.msra.mxu0 %v168
  %1327 = vmatprep.subr.mxu0 0.0
  %1328 = vmatpush2.msra.mxu0 0.0
  %1329 = vmatprep.subr.mxu0 0.0
  %1330 = vmatpush2.msra.mxu0 0.0
  %1331 = vmatprep.subr.mxu0 0.0
  %1332 = vmatpush2.msra.mxu0 0.0
  %1333 = vmatprep.subr.mxu0 0.0
  %1334 = vmatpush2.msra.mxu0 0.0
  %1335 = vmatprep.subr.mxu0 0.0
  %1336 = vmatpush2.msra.mxu0 0.0
  %1337 = vmatprep.subr.mxu0 0.0
  %1338 = vmatpush2.msra.mxu0 0.0
  %1339 = vmatprep.subr.mxu0 0.0
  %1340 = vmatpush2.msra.mxu0 0.0
  %1341 = vmatprep.subr.mxu0 0.0
  %1342 = vmatpush2.msra.mxu0 0.0
  %1343 = vmatprep.subr.mxu0 0.0
  %1344 = vmatpush2.msra.mxu0 0.0
  %1345 = vmatprep.subr.mxu0 0.0
  %1346 = vmatpush2.msra.mxu0 0.0
  %1347 = vmatprep.subr.mxu0 0.0
  %1348 = vmatpush2.msra.mxu0 0.0
  %1349 = vmatprep.subr.mxu0 0.0
  %1350 = vmatpush2.msra.mxu0 0.0
  %1351 = vmatprep.subr.mxu0 0.0
  %1352 = vmatpush2.msra.mxu0 0.0
  %1353 = vmatprep.subr.mxu0 0.0
  %1354 = vmatpush2.msra.mxu0 0.0
  %1355 = vmatprep.subr.mxu0 0.0
  %1356 = vmatpush2.msra.mxu0 0.0
  %1357 = vmatprep.subr.mxu0 0.0
  %1358 = vmatpush2.msra.mxu0 0.0
  %1359 = vmatprep.mubr.f32.mxu0 0.0
  %1360 = vmatmul.mubr.f32.gmra.mxu0 %v890
  %v1361 = vpop.f32.mrf.mxu0
  %v1362 = vadd.f32 0.0, %v1361
  %v1363 = vpop.f32.mrf.mxu0
  %v1364 = vadd.f32 0.0, %v1363
  %1365 = vdwg.mxu0
  %v1366 = vadd.f32 %v404, %v1291
  %v1367 = vadd.f32 %v406, %v1293
  %v1368 = vadd.f32 %v517, %v1362
  %v1369 = vadd.f32 %v519, %v1364
  %v1370 = vxor.u32 %v1366, 2147483648
  %v1371 = vmul.f32 %v1370, 1.442695
  %v1372 = vpow.pop %v1371
  %v1373 = vadd.f32 %v1372, 1.0
  %v1374 = vrcp.pop %v1373
  %v1375 = vmul.f32 1.0, %v1374
  %v1376 = vxor.u32 %v1367, 2147483648
  %v1377 = vmul.f32 %v1376, 1.442695
  %v1378 = vpow.pop %v1377
  %v1379 = vadd.f32 %v1378, 1.0
  %v1380 = vrcp.pop %v1379
  %v1381 = vmul.f32 1.0, %v1380
  %v1382 = vtanh.pop %v1368
  %v1383 = vxor.u32 %v1369, 2147483648
  %v1384 = vmul.f32 %v1383, 1.442695
  %v1385 = vpow.pop %v1384
  %v1386 = vadd.f32 %v1385, 1.0
  %v1387 = vrcp.pop %v1386
  %v1388 = vmul.f32 1.0, %v1387
  %v1389 = vmul.f32 %v1381, %v888
  %v1390 = vmul.f32 %v1375, %v1382
  %v1391 = vadd.f32 %v1389, %v1390
  %v1392 = vtanh.pop %v1391
  %v1393 = vmul.f32 %v1388, %v1392
  %1394 = vmatprep.subr.mxu0 %v163
  %1395 = vmatpush1.msra.mxu0 %v162
  %1396 = vmatprep.subr.mxu0 %v159
  %1397 = vmatpush1.msra.mxu0 %v158
  %1398 = vmatprep.subr.mxu0 %v155
  %1399 = vmatpush1.msra.mxu0 %v154
  %1400 = vmatprep.subr.mxu0 %v151
  %1401 = vmatpush1.msra.mxu0 %v150
  %1402 = vmatprep.subr.mxu0 %v147
  %1403 = vmatpush1.msra.mxu0 %v146
  %1404 = vmatprep.subr.mxu0 %v143
  %1405 = vmatpush1.msra.mxu0 %v142
  %1406 = vmatprep.subr.mxu0 %v139
  %1407 = vmatpush1.msra.mxu0 %v138
  %1408 = vmatprep.subr.mxu0 %v135
  %1409 = vmatpush1.msra.mxu0 %v134
  %1410 = vmatprep.subr.mxu0 %v131
  %1411 = vmatpush1.msra.mxu0 %v130
  %1412 = vmatprep.subr.mxu0 %v127
  %1413 = vmatpush1.msra.mxu0 %v126
  %1414 = vmatprep.subr.mxu0 %v123
  %1415 = vmatpush1.msra.mxu0 %v122
  %1416 = vmatprep.subr.mxu0 %v119
  %1417 = vmatpush1.msra.mxu0 %v118
  %1418 = vmatprep.subr.mxu0 %v115
  %1419 = vmatpush1.msra.mxu0 %v114
  %1420 = vmatprep.subr.mxu0 %v111
  %1421 = vmatpush1.msra.mxu0 %v110
  %1422 = vmatprep.subr.mxu0 %v107
  %1423 = vmatpush1.msra.mxu0 %v106
  %1424 = vmatprep.subr.mxu0 %v103
  %1425 = vmatpush1.msra.mxu0 %v102
  %1426 = vmatprep.subr.mxu0 0.0
  %1427 = vmatpush2.msra.mxu0 0.0
  %1428 = vmatprep.subr.mxu0 0.0
  %1429 = vmatpush2.msra.mxu0 0.0
  %1430 = vmatprep.subr.mxu0 0.0
  %1431 = vmatpush2.msra.mxu0 0.0
  %1432 = vmatprep.subr.mxu0 0.0
  %1433 = vmatpush2.msra.mxu0 0.0
  %1434 = vmatprep.subr.mxu0 0.0
  %1435 = vmatpush2.msra.mxu0 0.0
  %1436 = vmatprep.subr.mxu0 0.0
  %1437 = vmatpush2.msra.mxu0 0.0
  %1438 = vmatprep.subr.mxu0 0.0
  %1439 = vmatpush2.msra.mxu0 0.0
  %1440 = vmatprep.subr.mxu0 0.0
  %1441 = vmatpush2.msra.mxu0 0.0
  %1442 = vmatprep.subr.mxu0 0.0
  %1443 = vmatpush2.msra.mxu0 0.0
  %1444 = vmatprep.subr.mxu0 0.0
  %1445 = vmatpush2.msra.mxu0 0.0
  %1446 = vmatprep.subr.mxu0 0.0
  %1447 = vmatpush2.msra.mxu0 0.0
  %1448 = vmatprep.subr.mxu0 0.0
  %1449 = vmatpush2.msra.mxu0 0.0
  %1450 = vmatprep.subr.mxu0 0.0
  %1451 = vmatpush2.msra.mxu0 0.0
  %1452 = vmatprep.subr.mxu0 0.0
  %1453 = vmatpush2.msra.mxu0 0.0
  %1454 = vmatprep.subr.mxu0 0.0
  %1455 = vmatpush2.msra.mxu0 0.0
  %1456 = vmatprep.subr.mxu0 0.0
  %1457 = vmatpush2.msra.mxu0 0.0
  %1458 = vmatprep.mubr.f32.mxu0 0.0
  %1459 = vmatmul.mubr.f32.gmra.mxu0 %v890
  %v1460 = vpop.f32.mrf.mxu0
  %v1461 = vadd.f32 %v895, %v1460
  %v1462 = vpop.f32.mrf.mxu0
  %v1463 = vadd.f32 %v899, %v1462
  %1464 = vdwg.mxu0
  %1465 = vmatprep.subr.mxu0 %v165
  %1466 = vmatpush1.msra.mxu0 %v164
  %1467 = vmatprep.subr.mxu0 %v161
  %1468 = vmatpush1.msra.mxu0 %v160
  %1469 = vmatprep.subr.mxu0 %v157
  %1470 = vmatpush1.msra.mxu0 %v156
  %1471 = vmatprep.subr.mxu0 %v153
  %1472 = vmatpush1.msra.mxu0 %v152
  %1473 = vmatprep.subr.mxu0 %v149
  %1474 = vmatpush1.msra.mxu0 %v148
  %1475 = vmatprep.subr.mxu0 %v145
  %1476 = vmatpush1.msra.mxu0 %v144
  %1477 = vmatprep.subr.mxu0 %v141
  %1478 = vmatpush1.msra.mxu0 %v140
  %1479 = vmatprep.subr.mxu0 %v137
  %1480 = vmatpush1.msra.mxu0 %v136
  %1481 = vmatprep.subr.mxu0 %v133
  %1482 = vmatpush1.msra.mxu0 %v132
  %1483 = vmatprep.subr.mxu0 %v129
  %1484 = vmatpush1.msra.mxu0 %v128
  %1485 = vmatprep.subr.mxu0 %v125
  %1486 = vmatpush1.msra.mxu0 %v124
  %1487 = vmatprep.subr.mxu0 %v121
  %1488 = vmatpush1.msra.mxu0 %v120
  %1489 = vmatprep.subr.mxu0 %v117
  %1490 = vmatpush1.msra.mxu0 %v116
  %1491 = vmatprep.subr.mxu0 %v113
  %1492 = vmatpush1.msra.mxu0 %v112
  %1493 = vmatprep.subr.mxu0 %v109
  %1494 = vmatpush1.msra.mxu0 %v108
  %1495 = vmatprep.subr.mxu0 %v105
  %1496 = vmatpush1.msra.mxu0 %v104
  %1497 = vmatprep.subr.mxu0 0.0
  %1498 = vmatpush2.msra.mxu0 0.0
  %1499 = vmatprep.subr.mxu0 0.0
  %1500 = vmatpush2.msra.mxu0 0.0
  %1501 = vmatprep.subr.mxu0 0.0
  %1502 = vmatpush2.msra.mxu0 0.0
  %1503 = vmatprep.subr.mxu0 0.0
  %1504 = vmatpush2.msra.mxu0 0.0
  %1505 = vmatprep.subr.mxu0 0.0
  %1506 = vmatpush2.msra.mxu0 0.0
  %1507 = vmatprep.subr.mxu0 0.0
  %1508 = vmatpush2.msra.mxu0 0.0
  %1509 = vmatprep.subr.mxu0 0.0
  %1510 = vmatpush2.msra.mxu0 0.0
  %1511 = vmatprep.subr.mxu0 0.0
  %1512 = vmatpush2.msra.mxu0 0.0
  %1513 = vmatprep.subr.mxu0 0.0
  %1514 = vmatpush2.msra.mxu0 0.0
  %1515 = vmatprep.subr.mxu0 0.0
  %1516 = vmatpush2.msra.mxu0 0.0
  %1517 = vmatprep.subr.mxu0 0.0
  %1518 = vmatpush2.msra.mxu0 0.0
  %1519 = vmatprep.subr.mxu0 0.0
  %1520 = vmatpush2.msra.mxu0 0.0
  %1521 = vmatprep.subr.mxu0 0.0
  %1522 = vmatpush2.msra.mxu0 0.0
  %1523 = vmatprep.subr.mxu0 0.0
  %1524 = vmatpush2.msra.mxu0 0.0
  %1525 = vmatprep.subr.mxu0 0.0
  %1526 = vmatpush2.msra.mxu0 0.0
  %1527 = vmatprep.subr.mxu0 0.0
  %1528 = vmatpush2.msra.mxu0 0.0
  %1529 = vmatprep.mubr.f32.mxu0 0.0
  %1530 = vmatmul.mubr.f32.gmra.mxu0 %v890
  %v1531 = vpop.f32.mrf.mxu0
  %v1532 = vadd.f32 %v903, %v1531
  %v1533 = vpop.f32.mrf.mxu0
  %v1534 = vadd.f32 %v907, %v1533
  %1535 = vdwg.mxu0
  %1536 = vmatprep.subr.mxu0 %v291
  %1537 = vmatpush1.msra.mxu0 %v290
  %1538 = vmatprep.subr.mxu0 %v287
  %1539 = vmatpush1.msra.mxu0 %v286
  %1540 = vmatprep.subr.mxu0 %v283
  %1541 = vmatpush1.msra.mxu0 %v282
  %1542 = vmatprep.subr.mxu0 %v279
  %1543 = vmatpush1.msra.mxu0 %v278
  %1544 = vmatprep.subr.mxu0 %v275
  %1545 = vmatpush1.msra.mxu0 %v274
  %1546 = vmatprep.subr.mxu0 %v271
  %1547 = vmatpush1.msra.mxu0 %v270
  %1548 = vmatprep.subr.mxu0 %v267
  %1549 = vmatpush1.msra.mxu0 %v266
  %1550 = vmatprep.subr.mxu0 %v263
  %1551 = vmatpush1.msra.mxu0 %v262
  %1552 = vmatprep.subr.mxu0 %v259
  %1553 = vmatpush1.msra.mxu0 %v258
  %1554 = vmatprep.subr.mxu0 %v255
  %1555 = vmatpush1.msra.mxu0 %v254
  %1556 = vmatprep.subr.mxu0 %v251
  %1557 = vmatpush1.msra.mxu0 %v250
  %1558 = vmatprep.subr.mxu0 %v247
  %1559 = vmatpush1.msra.mxu0 %v246
  %1560 = vmatprep.subr.mxu0 %v243
  %1561 = vmatpush1.msra.mxu0 %v242
  %1562 = vmatprep.subr.mxu0 %v239
  %1563 = vmatpush1.msra.mxu0 %v238
  %1564 = vmatprep.subr.mxu0 %v235
  %1565 = vmatpush1.msra.mxu0 %v234
  %1566 = vmatprep.subr.mxu0 %v231
  %1567 = vmatpush1.msra.mxu0 %v230
  %1568 = vmatprep.subr.mxu0 0.0
  %1569 = vmatpush2.msra.mxu0 0.0
  %1570 = vmatprep.subr.mxu0 0.0
  %1571 = vmatpush2.msra.mxu0 0.0
  %1572 = vmatprep.subr.mxu0 0.0
  %1573 = vmatpush2.msra.mxu0 0.0
  %1574 = vmatprep.subr.mxu0 0.0
  %1575 = vmatpush2.msra.mxu0 0.0
  %1576 = vmatprep.subr.mxu0 0.0
  %1577 = vmatpush2.msra.mxu0 0.0
  %1578 = vmatprep.subr.mxu0 0.0
  %1579 = vmatpush2.msra.mxu0 0.0
  %1580 = vmatprep.subr.mxu0 0.0
  %1581 = vmatpush2.msra.mxu0 0.0
  %1582 = vmatprep.subr.mxu0 0.0
  %1583 = vmatpush2.msra.mxu0 0.0
  %1584 = vmatprep.subr.mxu0 0.0
  %1585 = vmatpush2.msra.mxu0 0.0
  %1586 = vmatprep.subr.mxu0 0.0
  %1587 = vmatpush2.msra.mxu0 0.0
  %1588 = vmatprep.subr.mxu0 0.0
  %1589 = vmatpush2.msra.mxu0 0.0
  %1590 = vmatprep.subr.mxu0 0.0
  %1591 = vmatpush2.msra.mxu0 0.0
  %1592 = vmatprep.subr.mxu0 0.0
  %1593 = vmatpush2.msra.mxu0 0.0
  %1594 = vmatprep.subr.mxu0 0.0
  %1595 = vmatpush2.msra.mxu0 0.0
  %1596 = vmatprep.subr.mxu0 0.0
  %1597 = vmatpush2.msra.mxu0 0.0
  %1598 = vmatprep.subr.mxu0 0.0
  %1599 = vmatpush2.msra.mxu0 0.0
  %1600 = vmatprep.mubr.f32.mxu0 0.0
  %1601 = vmatmul.mubr.f32.gmra.mxu0 %v1223
  %v1602 = vpop.f32.mrf.mxu0
  %v1603 = vadd.f32 0.0, %v1602
  %v1604 = vpop.f32.mrf.mxu0
  %v1605 = vadd.f32 0.0, %v1604
  %1606 = vdwg.mxu0
  %1607 = vmatprep.subr.mxu0 %v293
  %1608 = vmatpush1.msra.mxu0 %v292
  %1609 = vmatprep.subr.mxu0 %v289
  %1610 = vmatpush1.msra.mxu0 %v288
  %1611 = vmatprep.subr.mxu0 %v285
  %1612 = vmatpush1.msra.mxu0 %v284
  %1613 = vmatprep.subr.mxu0 %v281
  %1614 = vmatpush1.msra.mxu0 %v280
  %1615 = vmatprep.subr.mxu0 %v277
  %1616 = vmatpush1.msra.mxu0 %v276
  %1617 = vmatprep.subr.mxu0 %v273
  %1618 = vmatpush1.msra.mxu0 %v272
  %1619 = vmatprep.subr.mxu0 %v269
  %1620 = vmatpush1.msra.mxu0 %v268
  %1621 = vmatprep.subr.mxu0 %v265
  %1622 = vmatpush1.msra.mxu0 %v264
  %1623 = vmatprep.subr.mxu0 %v261
  %1624 = vmatpush1.msra.mxu0 %v260
  %1625 = vmatprep.subr.mxu0 %v257
  %1626 = vmatpush1.msra.mxu0 %v256
  %1627 = vmatprep.subr.mxu0 %v253
  %1628 = vmatpush1.msra.mxu0 %v252
  %1629 = vmatprep.subr.mxu0 %v249
  %1630 = vmatpush1.msra.mxu0 %v248
  %1631 = vmatprep.subr.mxu0 %v245
  %1632 = vmatpush1.msra.mxu0 %v244
  %1633 = vmatprep.subr.mxu0 %v241
  %1634 = vmatpush1.msra.mxu0 %v240
  %1635 = vmatprep.subr.mxu0 %v237
  %1636 = vmatpush1.msra.mxu0 %v236
  %1637 = vmatprep.subr.mxu0 %v233
  %1638 = vmatpush1.msra.mxu0 %v232
  %1639 = vmatprep.subr.mxu0 0.0
  %1640 = vmatpush2.msra.mxu0 0.0
  %1641 = vmatprep.subr.mxu0 0.0
  %1642 = vmatpush2.msra.mxu0 0.0
  %1643 = vmatprep.subr.mxu0 0.0
  %1644 = vmatpush2.msra.mxu0 0.0
  %1645 = vmatprep.subr.mxu0 0.0
  %1646 = vmatpush2.msra.mxu0 0.0
  %1647 = vmatprep.subr.mxu0 0.0
  %1648 = vmatpush2.msra.mxu0 0.0
  %1649 = vmatprep.subr.mxu0 0.0
  %1650 = vmatpush2.msra.mxu0 0.0
  %1651 = vmatprep.subr.mxu0 0.0
  %1652 = vmatpush2.msra.mxu0 0.0
  %1653 = vmatprep.subr.mxu0 0.0
  %1654 = vmatpush2.msra.mxu0 0.0
  %1655 = vmatprep.subr.mxu0 0.0
  %1656 = vmatpush2.msra.mxu0 0.0
  %1657 = vmatprep.subr.mxu0 0.0
  %1658 = vmatpush2.msra.mxu0 0.0
  %1659 = vmatprep.subr.mxu0 0.0
  %1660 = vmatpush2.msra.mxu0 0.0
  %1661 = vmatprep.subr.mxu0 0.0
  %1662 = vmatpush2.msra.mxu0 0.0
  %1663 = vmatprep.subr.mxu0 0.0
  %1664 = vmatpush2.msra.mxu0 0.0
  %1665 = vmatprep.subr.mxu0 0.0
  %1666 = vmatpush2.msra.mxu0 0.0
  %1667 = vmatprep.subr.mxu0 0.0
  %1668 = vmatpush2.msra.mxu0 0.0
  %1669 = vmatprep.subr.mxu0 0.0
  %1670 = vmatpush2.msra.mxu0 0.0
  %1671 = vmatprep.mubr.f32.mxu0 0.0
  %1672 = vmatmul.mubr.f32.gmra.mxu0 %v1223
  %v1673 = vpop.f32.mrf.mxu0
  %v1674 = vadd.f32 0.0, %v1673
  %v1675 = vpop.f32.mrf.mxu0
  %v1676 = vadd.f32 0.0, %v1675
  %1677 = vdwg.mxu0
  %v1678 = vadd.f32 %v1461, %v1603
  %v1679 = vadd.f32 %v1463, %v1605
  %v1680 = vadd.f32 %v1532, %v1674
  %v1681 = vadd.f32 %v1534, %v1676
  %v1682 = vxor.u32 %v1678, 2147483648
  %v1683 = vmul.f32 %v1682, 1.442695
  %v1684 = vpow.pop %v1683
  %v1685 = vadd.f32 %v1684, 1.0
  %v1686 = vrcp.pop %v1685
  %v1687 = vmul.f32 1.0, %v1686
  %v1688 = vxor.u32 %v1679, 2147483648
  %v1689 = vmul.f32 %v1688, 1.442695
  %v1690 = vpow.pop %v1689
  %v1691 = vadd.f32 %v1690, 1.0
  %v1692 = vrcp.pop %v1691
  %v1693 = vmul.f32 1.0, %v1692
  %v1694 = vtanh.pop %v1680
  %v1695 = vxor.u32 %v1681, 2147483648
  %v1696 = vmul.f32 %v1695, 1.442695
  %v1697 = vpow.pop %v1696
  %v1698 = vadd.f32 %v1697, 1.0
  %v1699 = vrcp.pop %v1698
  %v1700 = vmul.f32 1.0, %v1699
  %v1701 = vmul.f32 %v1693, %v1221
  %v1702 = vmul.f32 %v1687, %v1694
  %v1703 = vadd.f32 %v1701, %v1702
  %v1704 = vtanh.pop %v1703
  %v1705 = vmul.f32 %v1700, %v1704
  %1706 = vmatprep.subr.mxu0 %v227
  %1707 = vmatpush1.msra.mxu0 %v226
  %1708 = vmatprep.subr.mxu0 %v223
  %1709 = vmatpush1.msra.mxu0 %v222
  %1710 = vmatprep.subr.mxu0 %v219
  %1711 = vmatpush1.msra.mxu0 %v218
  %1712 = vmatprep.subr.mxu0 %v215
  %1713 = vmatpush1.msra.mxu0 %v214
  %1714 = vmatprep.subr.mxu0 %v211
  %1715 = vmatpush1.msra.mxu0 %v210
  %1716 = vmatprep.subr.mxu0 %v207
  %1717 = vmatpush1.msra.mxu0 %v206
  %1718 = vmatprep.subr.mxu0 %v203
  %1719 = vmatpush1.msra.mxu0 %v202
  %1720 = vmatprep.subr.mxu0 %v199
  %1721 = vmatpush1.msra.mxu0 %v198
  %1722 = vmatprep.subr.mxu0 %v195
  %1723 = vmatpush1.msra.mxu0 %v194
  %1724 = vmatprep.subr.mxu0 %v191
  %1725 = vmatpush1.msra.mxu0 %v190
  %1726 = vmatprep.subr.mxu0 %v187
  %1727 = vmatpush1.msra.mxu0 %v186
  %1728 = vmatprep.subr.mxu0 %v183
  %1729 = vmatpush1.msra.mxu0 %v182
  %1730 = vmatprep.subr.mxu0 %v179
  %1731 = vmatpush1.msra.mxu0 %v178
  %1732 = vmatprep.subr.mxu0 %v175
  %1733 = vmatpush1.msra.mxu0 %v174
  %1734 = vmatprep.subr.mxu0 %v171
  %1735 = vmatpush1.msra.mxu0 %v170
  %1736 = vmatprep.subr.mxu0 %v167
  %1737 = vmatpush1.msra.mxu0 %v166
  %1738 = vmatprep.subr.mxu0 0.0
  %1739 = vmatpush2.msra.mxu0 0.0
  %1740 = vmatprep.subr.mxu0 0.0
  %1741 = vmatpush2.msra.mxu0 0.0
  %1742 = vmatprep.subr.mxu0 0.0
  %1743 = vmatpush2.msra.mxu0 0.0
  %1744 = vmatprep.subr.mxu0 0.0
  %1745 = vmatpush2.msra.mxu0 0.0
  %1746 = vmatprep.subr.mxu0 0.0
  %1747 = vmatpush2.msra.mxu0 0.0
  %1748 = vmatprep.subr.mxu0 0.0
  %1749 = vmatpush2.msra.mxu0 0.0
  %1750 = vmatprep.subr.mxu0 0.0
  %1751 = vmatpush2.msra.mxu0 0.0
  %1752 = vmatprep.subr.mxu0 0.0
  %1753 = vmatpush2.msra.mxu0 0.0
  %1754 = vmatprep.subr.mxu0 0.0
  %1755 = vmatpush2.msra.mxu0 0.0
  %1756 = vmatprep.subr.mxu0 0.0
  %1757 = vmatpush2.msra.mxu0 0.0
  %1758 = vmatprep.subr.mxu0 0.0
  %1759 = vmatpush2.msra.mxu0 0.0
  %1760 = vmatprep.subr.mxu0 0.0
  %1761 = vmatpush2.msra.mxu0 0.0
  %1762 = vmatprep.subr.mxu0 0.0
  %1763 = vmatpush2.msra.mxu0 0.0
  %1764 = vmatprep.subr.mxu0 0.0
  %1765 = vmatpush2.msra.mxu0 0.0
  %1766 = vmatprep.subr.mxu0 0.0
  %1767 = vmatpush2.msra.mxu0 0.0
  %1768 = vmatprep.subr.mxu0 0.0
  %1769 = vmatpush2.msra.mxu0 0.0
  %1770 = vmatprep.mubr.f32.mxu0 0.0
  %1771 = vmatmul.mubr.f32.gmra.mxu0 %v1393
  %v1772 = vpop.f32.mrf.mxu0
  %v1773 = vadd.f32 0.0, %v1772
  %v1774 = vpop.f32.mrf.mxu0
  %v1775 = vadd.f32 0.0, %v1774
  %1776 = vdwg.mxu0
  %1777 = vmatprep.subr.mxu0 %v229
  %1778 = vmatpush1.msra.mxu0 %v228
  %1779 = vmatprep.subr.mxu0 %v225
  %1780 = vmatpush1.msra.mxu0 %v224
  %1781 = vmatprep.subr.mxu0 %v221
  %1782 = vmatpush1.msra.mxu0 %v220
  %1783 = vmatprep.subr.mxu0 %v217
  %1784 = vmatpush1.msra.mxu0 %v216
  %1785 = vmatprep.subr.mxu0 %v213
  %1786 = vmatpush1.msra.mxu0 %v212
  %1787 = vmatprep.subr.mxu0 %v209
  %1788 = vmatpush1.msra.mxu0 %v208
  %1789 = vmatprep.subr.mxu0 %v205
  %1790 = vmatpush1.msra.mxu0 %v204
  %1791 = vmatprep.subr.mxu0 %v201
  %1792 = vmatpush1.msra.mxu0 %v200
  %1793 = vmatprep.subr.mxu0 %v197
  %1794 = vmatpush1.msra.mxu0 %v196
  %1795 = vmatprep.subr.mxu0 %v193
  %1796 = vmatpush1.msra.mxu0 %v192
  %1797 = vmatprep.subr.mxu0 %v189
  %1798 = vmatpush1.msra.mxu0 %v188
  %1799 = vmatprep.subr.mxu0 %v185
  %1800 = vmatpush1.msra.mxu0 %v184
  %1801 = vmatprep.subr.mxu0 %v181
  %1802 = vmatpush1.msra.mxu0 %v180
  %1803 = vmatprep.subr.mxu0 %v177
  %1804 = vmatpush1.msra.mxu0 %v176
  %1805 = vmatprep.subr.mxu0 %v173
  %1806 = vmatpush1.msra.mxu0 %v172
  %1807 = vmatprep.subr.mxu0 %v169
  %1808 = vmatpush1.msra.mxu0 %v168
  %1809 = vmatprep.subr.mxu0 0.0
  %1810 = vmatpush2.msra.mxu0 0.0
  %1811 = vmatprep.subr.mxu0 0.0
  %1812 = vmatpush2.msra.mxu0 0.0
  %1813 = vmatprep.subr.mxu0 0.0
  %1814 = vmatpush2.msra.mxu0 0.0
  %1815 = vmatprep.subr.mxu0 0.0
  %1816 = vmatpush2.msra.mxu0 0.0
  %1817 = vmatprep.subr.mxu0 0.0
  %1818 = vmatpush2.msra.mxu0 0.0
  %1819 = vmatprep.subr.mxu0 0.0
  %1820 = vmatpush2.msra.mxu0 0.0
  %1821 = vmatprep.subr.mxu0 0.0
  %1822 = vmatpush2.msra.mxu0 0.0
  %1823 = vmatprep.subr.mxu0 0.0
  %1824 = vmatpush2.msra.mxu0 0.0
  %1825 = vmatprep.subr.mxu0 0.0
  %1826 = vmatpush2.msra.mxu0 0.0
  %1827 = vmatprep.subr.mxu0 0.0
  %1828 = vmatpush2.msra.mxu0 0.0
  %1829 = vmatprep.subr.mxu0 0.0
  %1830 = vmatpush2.msra.mxu0 0.0
  %1831 = vmatprep.subr.mxu0 0.0
  %1832 = vmatpush2.msra.mxu0 0.0
  %1833 = vmatprep.subr.mxu0 0.0
  %1834 = vmatpush2.msra.mxu0 0.0
  %1835 = vmatprep.subr.mxu0 0.0
  %1836 = vmatpush2.msra.mxu0 0.0
  %1837 = vmatprep.subr.mxu0 0.0
  %1838 = vmatpush2.msra.mxu0 0.0
  %1839 = vmatprep.subr.mxu0 0.0
  %1840 = vmatpush2.msra.mxu0 0.0
  %1841 = vmatprep.mubr.f32.mxu0 0.0
  %1842 = vmatmul.mubr.f32.gmra.mxu0 %v1393
  %v1843 = vpop.f32.mrf.mxu0
  %v1844 = vadd.f32 0.0, %v1843
  %v1845 = vpop.f32.mrf.mxu0
  %v1846 = vadd.f32 0.0, %v1845
  %1847 = vdwg.mxu0
  %v1848 = vadd.f32 %v410, %v1773
  %v1849 = vadd.f32 %v412, %v1775
  %v1850 = vadd.f32 %v523, %v1844
  %v1851 = vadd.f32 %v525, %v1846
  %v1852 = vxor.u32 %v1848, 2147483648
  %v1853 = vmul.f32 %v1852, 1.442695
  %v1854 = vpow.pop %v1853
  %v1855 = vadd.f32 %v1854, 1.0
  %v1856 = vrcp.pop %v1855
  %v1857 = vmul.f32 1.0, %v1856
  %v1858 = vxor.u32 %v1849, 2147483648
  %v1859 = vmul.f32 %v1858, 1.442695
  %v1860 = vpow.pop %v1859
  %v1861 = vadd.f32 %v1860, 1.0
  %v1862 = vrcp.pop %v1861
  %v1863 = vmul.f32 1.0, %v1862
  %v1864 = vtanh.pop %v1850
  %v1865 = vxor.u32 %v1851, 2147483648
  %v1866 = vmul.f32 %v1865, 1.442695
  %v1867 = vpow.pop %v1866
  %v1868 = vadd.f32 %v1867, 1.0
  %v1869 = vrcp.pop %v1868
  %v1870 = vmul.f32 1.0, %v1869
  %v1871 = vmul.f32 %v1863, %v1391
  %v1872 = vmul.f32 %v1857, %v1864
  %v1873 = vadd.f32 %v1871, %v1872
  %v1874 = vtanh.pop %v1873
  %v1875 = vmul.f32 %v1870, %v1874
  %1876 = vmatprep.subr.mxu0 %v163
  %1877 = vmatpush1.msra.mxu0 %v162
  %1878 = vmatprep.subr.mxu0 %v159
  %1879 = vmatpush1.msra.mxu0 %v158
  %1880 = vmatprep.subr.mxu0 %v155
  %1881 = vmatpush1.msra.mxu0 %v154
  %1882 = vmatprep.subr.mxu0 %v151
  %1883 = vmatpush1.msra.mxu0 %v150
  %1884 = vmatprep.subr.mxu0 %v147
  %1885 = vmatpush1.msra.mxu0 %v146
  %1886 = vmatprep.subr.mxu0 %v143
  %1887 = vmatpush1.msra.mxu0 %v142
  %1888 = vmatprep.subr.mxu0 %v139
  %1889 = vmatpush1.msra.mxu0 %v138
  %1890 = vmatprep.subr.mxu0 %v135
  %1891 = vmatpush1.msra.mxu0 %v134
  %1892 = vmatprep.subr.mxu0 %v131
  %1893 = vmatpush1.msra.mxu0 %v130
  %1894 = vmatprep.subr.mxu0 %v127
  %1895 = vmatpush1.msra.mxu0 %v126
  %1896 = vmatprep.subr.mxu0 %v123
  %1897 = vmatpush1.msra.mxu0 %v122
  %1898 = vmatprep.subr.mxu0 %v119
  %1899 = vmatpush1.msra.mxu0 %v118
  %1900 = vmatprep.subr.mxu0 %v115
  %1901 = vmatpush1.msra.mxu0 %v114
  %1902 = vmatprep.subr.mxu0 %v111
  %1903 = vmatpush1.msra.mxu0 %v110
  %1904 = vmatprep.subr.mxu0 %v107
  %1905 = vmatpush1.msra.mxu0 %v106
  %1906 = vmatprep.subr.mxu0 %v103
  %1907 = vmatpush1.msra.mxu0 %v102
  %1908 = vmatprep.subr.mxu0 0.0
  %1909 = vmatpush2.msra.mxu0 0.0
  %1910 = vmatprep.subr.mxu0 0.0
  %1911 = vmatpush2.msra.mxu0 0.0
  %1912 = vmatprep.subr.mxu0 0.0
  %1913 = vmatpush2.msra.mxu0 0.0
  %1914 = vmatprep.subr.mxu0 0.0
  %1915 = vmatpush2.msra.mxu0 0.0
  %1916 = vmatprep.subr.mxu0 0.0
  %1917 = vmatpush2.msra.mxu0 0.0
  %1918 = vmatprep.subr.mxu0 0.0
  %1919 = vmatpush2.msra.mxu0 0.0
  %1920 = vmatprep.subr.mxu0 0.0
  %1921 = vmatpush2.msra.mxu0 0.0
  %1922 = vmatprep.subr.mxu0 0.0
  %1923 = vmatpush2.msra.mxu0 0.0
  %1924 = vmatprep.subr.mxu0 0.0
  %1925 = vmatpush2.msra.mxu0 0.0
  %1926 = vmatprep.subr.mxu0 0.0
  %1927 = vmatpush2.msra.mxu0 0.0
  %1928 = vmatprep.subr.mxu0 0.0
  %1929 = vmatpush2.msra.mxu0 0.0
  %1930 = vmatprep.subr.mxu0 0.0
  %1931 = vmatpush2.msra.mxu0 0.0
  %1932 = vmatprep.subr.mxu0 0.0
  %1933 = vmatpush2.msra.mxu0 0.0
  %1934 = vmatprep.subr.mxu0 0.0
  %1935 = vmatpush2.msra.mxu0 0.0
  %1936 = vmatprep.subr.mxu0 0.0
  %1937 = vmatpush2.msra.mxu0 0.0
  %1938 = vmatprep.subr.mxu0 0.0
  %1939 = vmatpush2.msra.mxu0 0.0
  %1940 = vmatprep.mubr.f32.mxu0 0.0
  %1941 = vmatmul.mubr.f32.gmra.mxu0 %v1393
  %v1942 = vpop.f32.mrf.mxu0
  %v1943 = vadd.f32 %v895, %v1942
  %v1944 = vpop.f32.mrf.mxu0
  %v1945 = vadd.f32 %v899, %v1944
  %1946 = vdwg.mxu0
  %1947 = vmatprep.subr.mxu0 %v165
  %1948 = vmatpush1.msra.mxu0 %v164
  %1949 = vmatprep.subr.mxu0 %v161
  %1950 = vmatpush1.msra.mxu0 %v160
  %1951 = vmatprep.subr.mxu0 %v157
  %1952 = vmatpush1.msra.mxu0 %v156
  %1953 = vmatprep.subr.mxu0 %v153
  %1954 = vmatpush1.msra.mxu0 %v152
  %1955 = vmatprep.subr.mxu0 %v149
  %1956 = vmatpush1.msra.mxu0 %v148
  %1957 = vmatprep.subr.mxu0 %v145
  %1958 = vmatpush1.msra.mxu0 %v144
  %1959 = vmatprep.subr.mxu0 %v141
  %1960 = vmatpush1.msra.mxu0 %v140
  %1961 = vmatprep.subr.mxu0 %v137
  %1962 = vmatpush1.msra.mxu0 %v136
  %1963 = vmatprep.subr.mxu0 %v133
  %1964 = vmatpush1.msra.mxu0 %v132
  %1965 = vmatprep.subr.mxu0 %v129
  %1966 = vmatpush1.msra.mxu0 %v128
  %1967 = vmatprep.subr.mxu0 %v125
  %1968 = vmatpush1.msra.mxu0 %v124
  %1969 = vmatprep.subr.mxu0 %v121
  %1970 = vmatpush1.msra.mxu0 %v120
  %1971 = vmatprep.subr.mxu0 %v117
  %1972 = vmatpush1.msra.mxu0 %v116
  %1973 = vmatprep.subr.mxu0 %v113
  %1974 = vmatpush1.msra.mxu0 %v112
  %1975 = vmatprep.subr.mxu0 %v109
  %1976 = vmatpush1.msra.mxu0 %v108
  %1977 = vmatprep.subr.mxu0 %v105
  %1978 = vmatpush1.msra.mxu0 %v104
  %1979 = vmatprep.subr.mxu0 0.0
  %1980 = vmatpush2.msra.mxu0 0.0
  %1981 = vmatprep.subr.mxu0 0.0
  %1982 = vmatpush2.msra.mxu0 0.0
  %1983 = vmatprep.subr.mxu0 0.0
  %1984 = vmatpush2.msra.mxu0 0.0
  %1985 = vmatprep.subr.mxu0 0.0
  %1986 = vmatpush2.msra.mxu0 0.0
  %1987 = vmatprep.subr.mxu0 0.0
  %1988 = vmatpush2.msra.mxu0 0.0
  %1989 = vmatprep.subr.mxu0 0.0
  %1990 = vmatpush2.msra.mxu0 0.0
  %1991 = vmatprep.subr.mxu0 0.0
  %1992 = vmatpush2.msra.mxu0 0.0
  %1993 = vmatprep.subr.mxu0 0.0
  %1994 = vmatpush2.msra.mxu0 0.0
  %1995 = vmatprep.subr.mxu0 0.0
  %1996 = vmatpush2.msra.mxu0 0.0
  %1997 = vmatprep.subr.mxu0 0.0
  %1998 = vmatpush2.msra.mxu0 0.0
  %1999 = vmatprep.subr.mxu0 0.0
  %2000 = vmatpush2.msra.mxu0 0.0
  %2001 = vmatprep.subr.mxu0 0.0
  %2002 = vmatpush2.msra.mxu0 0.0
  %2003 = vmatprep.subr.mxu0 0.0
  %2004 = vmatpush2.msra.mxu0 0.0
  %2005 = vmatprep.subr.mxu0 0.0
  %2006 = vmatpush2.msra.mxu0 0.0
  %2007 = vmatprep.subr.mxu0 0.0
  %2008 = vmatpush2.msra.mxu0 0.0
  %2009 = vmatprep.subr.mxu0 0.0
  %2010 = vmatpush2.msra.mxu0 0.0
  %2011 = vmatprep.mubr.f32.mxu0 0.0
  %2012 = vmatmul.mubr.f32.gmra.mxu0 %v1393
  %v2013 = vpop.f32.mrf.mxu0
  %v2014 = vadd.f32 %v903, %v2013
  %v2015 = vpop.f32.mrf.mxu0
  %v2016 = vadd.f32 %v907, %v2015
  %2017 = vdwg.mxu0
  %2018 = vmatprep.subr.mxu0 %v291
  %2019 = vmatpush1.msra.mxu0 %v290
  %2020 = vmatprep.subr.mxu0 %v287
  %2021 = vmatpush1.msra.mxu0 %v286
  %2022 = vmatprep.subr.mxu0 %v283
  %2023 = vmatpush1.msra.mxu0 %v282
  %2024 = vmatprep.subr.mxu0 %v279
  %2025 = vmatpush1.msra.mxu0 %v278
  %2026 = vmatprep.subr.mxu0 %v275
  %2027 = vmatpush1.msra.mxu0 %v274
  %2028 = vmatprep.subr.mxu0 %v271
  %2029 = vmatpush1.msra.mxu0 %v270
  %2030 = vmatprep.subr.mxu0 %v267
  %2031 = vmatpush1.msra.mxu0 %v266
  %2032 = vmatprep.subr.mxu0 %v263
  %2033 = vmatpush1.msra.mxu0 %v262
  %2034 = vmatprep.subr.mxu0 %v259
  %2035 = vmatpush1.msra.mxu0 %v258
  %2036 = vmatprep.subr.mxu0 %v255
  %2037 = vmatpush1.msra.mxu0 %v254
  %2038 = vmatprep.subr.mxu0 %v251
  %2039 = vmatpush1.msra.mxu0 %v250
  %2040 = vmatprep.subr.mxu0 %v247
  %2041 = vmatpush1.msra.mxu0 %v246
  %2042 = vmatprep.subr.mxu0 %v243
  %2043 = vmatpush1.msra.mxu0 %v242
  %2044 = vmatprep.subr.mxu0 %v239
  %2045 = vmatpush1.msra.mxu0 %v238
  %2046 = vmatprep.subr.mxu0 %v235
  %2047 = vmatpush1.msra.mxu0 %v234
  %2048 = vmatprep.subr.mxu0 %v231
  %2049 = vmatpush1.msra.mxu0 %v230
  %2050 = vmatprep.subr.mxu0 0.0
  %2051 = vmatpush2.msra.mxu0 0.0
  %2052 = vmatprep.subr.mxu0 0.0
  %2053 = vmatpush2.msra.mxu0 0.0
  %2054 = vmatprep.subr.mxu0 0.0
  %2055 = vmatpush2.msra.mxu0 0.0
  %2056 = vmatprep.subr.mxu0 0.0
  %2057 = vmatpush2.msra.mxu0 0.0
  %2058 = vmatprep.subr.mxu0 0.0
  %2059 = vmatpush2.msra.mxu0 0.0
  %2060 = vmatprep.subr.mxu0 0.0
  %2061 = vmatpush2.msra.mxu0 0.0
  %2062 = vmatprep.subr.mxu0 0.0
  %2063 = vmatpush2.msra.mxu0 0.0
  %2064 = vmatprep.subr.mxu0 0.0
  %2065 = vmatpush2.msra.mxu0 0.0
  %2066 = vmatprep.subr.mxu0 0.0
  %2067 = vmatpush2.msra.mxu0 0.0
  %2068 = vmatprep.subr.mxu0 0.0
  %2069 = vmatpush2.msra.mxu0 0.0
  %2070 = vmatprep.subr.mxu0 0.0
  %2071 = vmatpush2.msra.mxu0 0.0
  %2072 = vmatprep.subr.mxu0 0.0
  %2073 = vmatpush2.msra.mxu0 0.0
  %2074 = vmatprep.subr.mxu0 0.0
  %2075 = vmatpush2.msra.mxu0 0.0
  %2076 = vmatprep.subr.mxu0 0.0
  %2077 = vmatpush2.msra.mxu0 0.0
  %2078 = vmatprep.subr.mxu0 0.0
  %2079 = vmatpush2.msra.mxu0 0.0
  %2080 = vmatprep.subr.mxu0 0.0
  %2081 = vmatpush2.msra.mxu0 0.0
  %2082 = vmatprep.mubr.f32.mxu0 0.0
  %2083 = vmatmul.mubr.f32.gmra.mxu0 %v1705
  %v2084 = vpop.f32.mrf.mxu0
  %v2085 = vadd.f32 0.0, %v2084
  %v2086 = vpop.f32.mrf.mxu0
  %v2087 = vadd.f32 0.0, %v2086
  %2088 = vdwg.mxu0
  %2089 = vmatprep.subr.mxu0 %v293
  %2090 = vmatpush1.msra.mxu0 %v292
  %2091 = vmatprep.subr.mxu0 %v289
  %2092 = vmatpush1.msra.mxu0 %v288
  %2093 = vmatprep.subr.mxu0 %v285
  %2094 = vmatpush1.msra.mxu0 %v284
  %2095 = vmatprep.subr.mxu0 %v281
  %2096 = vmatpush1.msra.mxu0 %v280
  %2097 = vmatprep.subr.mxu0 %v277
  %2098 = vmatpush1.msra.mxu0 %v276
  %2099 = vmatprep.subr.mxu0 %v273
  %2100 = vmatpush1.msra.mxu0 %v272
  %2101 = vmatprep.subr.mxu0 %v269
  %2102 = vmatpush1.msra.mxu0 %v268
  %2103 = vmatprep.subr.mxu0 %v265
  %2104 = vmatpush1.msra.mxu0 %v264
  %2105 = vmatprep.subr.mxu0 %v261
  %2106 = vmatpush1.msra.mxu0 %v260
  %2107 = vmatprep.subr.mxu0 %v257
  %2108 = vmatpush1.msra.mxu0 %v256
  %2109 = vmatprep.subr.mxu0 %v253
  %2110 = vmatpush1.msra.mxu0 %v252
  %2111 = vmatprep.subr.mxu0 %v249
  %2112 = vmatpush1.msra.mxu0 %v248
  %2113 = vmatprep.subr.mxu0 %v245
  %2114 = vmatpush1.msra.mxu0 %v244
  %2115 = vmatprep.subr.mxu0 %v241
  %2116 = vmatpush1.msra.mxu0 %v240
  %2117 = vmatprep.subr.mxu0 %v237
  %2118 = vmatpush1.msra.mxu0 %v236
  %2119 = vmatprep.subr.mxu0 %v233
  %2120 = vmatpush1.msra.mxu0 %v232
  %2121 = vmatprep.subr.mxu0 0.0
  %2122 = vmatpush2.msra.mxu0 0.0
  %2123 = vmatprep.subr.mxu0 0.0
  %2124 = vmatpush2.msra.mxu0 0.0
  %2125 = vmatprep.subr.mxu0 0.0
  %2126 = vmatpush2.msra.mxu0 0.0
  %2127 = vmatprep.subr.mxu0 0.0
  %2128 = vmatpush2.msra.mxu0 0.0
  %2129 = vmatprep.subr.mxu0 0.0
  %2130 = vmatpush2.msra.mxu0 0.0
  %2131 = vmatprep.subr.mxu0 0.0
  %2132 = vmatpush2.msra.mxu0 0.0
  %2133 = vmatprep.subr.mxu0 0.0
  %2134 = vmatpush2.msra.mxu0 0.0
  %2135 = vmatprep.subr.mxu0 0.0
  %2136 = vmatpush2.msra.mxu0 0.0
  %2137 = vmatprep.subr.mxu0 0.0
  %2138 = vmatpush2.msra.mxu0 0.0
  %2139 = vmatprep.subr.mxu0 0.0
  %2140 = vmatpush2.msra.mxu0 0.0
  %2141 = vmatprep.subr.mxu0 0.0
  %2142 = vmatpush2.msra.mxu0 0.0
  %2143 = vmatprep.subr.mxu0 0.0
  %2144 = vmatpush2.msra.mxu0 0.0
  %2145 = vmatprep.subr.mxu0 0.0
  %2146 = vmatpush2.msra.mxu0 0.0
  %2147 = vmatprep.subr.mxu0 0.0
  %2148 = vmatpush2.msra.mxu0 0.0
  %2149 = vmatprep.subr.mxu0 0.0
  %2150 = vmatpush2.msra.mxu0 0.0
  %2151 = vmatprep.subr.mxu0 0.0
  %2152 = vmatpush2.msra.mxu0 0.0
  %2153 = vmatprep.mubr.f32.mxu0 0.0
  %2154 = vmatmul.mubr.f32.gmra.mxu0 %v1705
  %v2155 = vpop.f32.mrf.mxu0
  %v2156 = vadd.f32 0.0, %v2155
  %v2157 = vpop.f32.mrf.mxu0
  %v2158 = vadd.f32 0.0, %v2157
  %2159 = vdwg.mxu0
  %v2160 = vadd.f32 %v1943, %v2085
  %v2161 = vadd.f32 %v1945, %v2087
  %v2162 = vadd.f32 %v2014, %v2156
  %v2163 = vadd.f32 %v2016, %v2158
  %v2164 = vxor.u32 %v2160, 2147483648
  %v2165 = vmul.f32 %v2164, 1.442695
  %v2166 = vpow.pop %v2165
  %v2167 = vadd.f32 %v2166, 1.0
  %v2168 = vrcp.pop %v2167
  %v2169 = vmul.f32 1.0, %v2168
  %v2170 = vxor.u32 %v2161, 2147483648
  %v2171 = vmul.f32 %v2170, 1.442695
  %v2172 = vpow.pop %v2171
  %v2173 = vadd.f32 %v2172, 1.0
  %v2174 = vrcp.pop %v2173
  %v2175 = vmul.f32 1.0, %v2174
  %v2176 = vtanh.pop %v2162
  %v2177 = vxor.u32 %v2163, 2147483648
  %v2178 = vmul.f32 %v2177, 1.442695
  %v2179 = vpow.pop %v2178
  %v2180 = vadd.f32 %v2179, 1.0
  %v2181 = vrcp.pop %v2180
  %v2182 = vmul.f32 1.0, %v2181
  %v2183 = vmul.f32 %v2175, %v1703
  %v2184 = vmul.f32 %v2169, %v2176
  %v2185 = vadd.f32 %v2183, %v2184
  %v2186 = vtanh.pop %v2185
  %v2187 = vmul.f32 %v2182, %v2186
  %2188 = vmatprep.subr.mxu0 %v227
  %2189 = vmatpush1.msra.mxu0 %v226
  %2190 = vmatprep.subr.mxu0 %v223
  %2191 = vmatpush1.msra.mxu0 %v222
  %2192 = vmatprep.subr.mxu0 %v219
  %2193 = vmatpush1.msra.mxu0 %v218
  %2194 = vmatprep.subr.mxu0 %v215
  %2195 = vmatpush1.msra.mxu0 %v214
  %2196 = vmatprep.subr.mxu0 %v211
  %2197 = vmatpush1.msra.mxu0 %v210
  %2198 = vmatprep.subr.mxu0 %v207
  %2199 = vmatpush1.msra.mxu0 %v206
  %2200 = vmatprep.subr.mxu0 %v203
  %2201 = vmatpush1.msra.mxu0 %v202
  %2202 = vmatprep.subr.mxu0 %v199
  %2203 = vmatpush1.msra.mxu0 %v198
  %2204 = vmatprep.subr.mxu0 %v195
  %2205 = vmatpush1.msra.mxu0 %v194
  %2206 = vmatprep.subr.mxu0 %v191
  %2207 = vmatpush1.msra.mxu0 %v190
  %2208 = vmatprep.subr.mxu0 %v187
  %2209 = vmatpush1.msra.mxu0 %v186
  %2210 = vmatprep.subr.mxu0 %v183
  %2211 = vmatpush1.msra.mxu0 %v182
  %2212 = vmatprep.subr.mxu0 %v179
  %2213 = vmatpush1.msra.mxu0 %v178
  %2214 = vmatprep.subr.mxu0 %v175
  %2215 = vmatpush1.msra.mxu0 %v174
  %2216 = vmatprep.subr.mxu0 %v171
  %2217 = vmatpush1.msra.mxu0 %v170
  %2218 = vmatprep.subr.mxu0 %v167
  %2219 = vmatpush1.msra.mxu0 %v166
  %2220 = vmatprep.subr.mxu0 0.0
  %2221 = vmatpush2.msra.mxu0 0.0
  %2222 = vmatprep.subr.mxu0 0.0
  %2223 = vmatpush2.msra.mxu0 0.0
  %2224 = vmatprep.subr.mxu0 0.0
  %2225 = vmatpush2.msra.mxu0 0.0
  %2226 = vmatprep.subr.mxu0 0.0
  %2227 = vmatpush2.msra.mxu0 0.0
  %2228 = vmatprep.subr.mxu0 0.0
  %2229 = vmatpush2.msra.mxu0 0.0
  %2230 = vmatprep.subr.mxu0 0.0
  %2231 = vmatpush2.msra.mxu0 0.0
  %2232 = vmatprep.subr.mxu0 0.0
  %2233 = vmatpush2.msra.mxu0 0.0
  %2234 = vmatprep.subr.mxu0 0.0
  %2235 = vmatpush2.msra.mxu0 0.0
  %2236 = vmatprep.subr.mxu0 0.0
  %2237 = vmatpush2.msra.mxu0 0.0
  %2238 = vmatprep.subr.mxu0 0.0
  %2239 = vmatpush2.msra.mxu0 0.0
  %2240 = vmatprep.subr.mxu0 0.0
  %2241 = vmatpush2.msra.mxu0 0.0
  %2242 = vmatprep.subr.mxu0 0.0
  %2243 = vmatpush2.msra.mxu0 0.0
  %2244 = vmatprep.subr.mxu0 0.0
  %2245 = vmatpush2.msra.mxu0 0.0
  %2246 = vmatprep.subr.mxu0 0.0
  %2247 = vmatpush2.msra.mxu0 0.0
  %2248 = vmatprep.subr.mxu0 0.0
  %2249 = vmatpush2.msra.mxu0 0.0
  %2250 = vmatprep.subr.mxu0 0.0
  %2251 = vmatpush2.msra.mxu0 0.0
  %2252 = vmatprep.mubr.f32.mxu0 0.0
  %2253 = vmatmul.mubr.f32.gmra.mxu0 %v1875
  %v2254 = vpop.f32.mrf.mxu0
  %v2255 = vadd.f32 0.0, %v2254
  %v2256 = vpop.f32.mrf.mxu0
  %v2257 = vadd.f32 0.0, %v2256
  %2258 = vdwg.mxu0
  %2259 = vmatprep.subr.mxu0 %v229
  %2260 = vmatpush1.msra.mxu0 %v228
  %2261 = vmatprep.subr.mxu0 %v225
  %2262 = vmatpush1.msra.mxu0 %v224
  %2263 = vmatprep.subr.mxu0 %v221
  %2264 = vmatpush1.msra.mxu0 %v220
  %2265 = vmatprep.subr.mxu0 %v217
  %2266 = vmatpush1.msra.mxu0 %v216
  %2267 = vmatprep.subr.mxu0 %v213
  %2268 = vmatpush1.msra.mxu0 %v212
  %2269 = vmatprep.subr.mxu0 %v209
  %2270 = vmatpush1.msra.mxu0 %v208
  %2271 = vmatprep.subr.mxu0 %v205
  %2272 = vmatpush1.msra.mxu0 %v204
  %2273 = vmatprep.subr.mxu0 %v201
  %2274 = vmatpush1.msra.mxu0 %v200
  %2275 = vmatprep.subr.mxu0 %v197
  %2276 = vmatpush1.msra.mxu0 %v196
  %2277 = vmatprep.subr.mxu0 %v193
  %2278 = vmatpush1.msra.mxu0 %v192
  %2279 = vmatprep.subr.mxu0 %v189
  %2280 = vmatpush1.msra.mxu0 %v188
  %2281 = vmatprep.subr.mxu0 %v185
  %2282 = vmatpush1.msra.mxu0 %v184
  %2283 = vmatprep.subr.mxu0 %v181
  %2284 = vmatpush1.msra.mxu0 %v180
  %2285 = vmatprep.subr.mxu0 %v177
  %2286 = vmatpush1.msra.mxu0 %v176
  %2287 = vmatprep.subr.mxu0 %v173
  %2288 = vmatpush1.msra.mxu0 %v172
  %2289 = vmatprep.subr.mxu0 %v169
  %2290 = vmatpush1.msra.mxu0 %v168
  %2291 = vmatprep.subr.mxu0 0.0
  %2292 = vmatpush2.msra.mxu0 0.0
  %2293 = vmatprep.subr.mxu0 0.0
  %2294 = vmatpush2.msra.mxu0 0.0
  %2295 = vmatprep.subr.mxu0 0.0
  %2296 = vmatpush2.msra.mxu0 0.0
  %2297 = vmatprep.subr.mxu0 0.0
  %2298 = vmatpush2.msra.mxu0 0.0
  %2299 = vmatprep.subr.mxu0 0.0
  %2300 = vmatpush2.msra.mxu0 0.0
  %2301 = vmatprep.subr.mxu0 0.0
  %2302 = vmatpush2.msra.mxu0 0.0
  %2303 = vmatprep.subr.mxu0 0.0
  %2304 = vmatpush2.msra.mxu0 0.0
  %2305 = vmatprep.subr.mxu0 0.0
  %2306 = vmatpush2.msra.mxu0 0.0
  %2307 = vmatprep.subr.mxu0 0.0
  %2308 = vmatpush2.msra.mxu0 0.0
  %2309 = vmatprep.subr.mxu0 0.0
  %2310 = vmatpush2.msra.mxu0 0.0
  %2311 = vmatprep.subr.mxu0 0.0
  %2312 = vmatpush2.msra.mxu0 0.0
  %2313 = vmatprep.subr.mxu0 0.0
  %2314 = vmatpush2.msra.mxu0 0.0
  %2315 = vmatprep.subr.mxu0 0.0
  %2316 = vmatpush2.msra.mxu0 0.0
  %2317 = vmatprep.subr.mxu0 0.0
  %2318 = vmatpush2.msra.mxu0 0.0
  %2319 = vmatprep.subr.mxu0 0.0
  %2320 = vmatpush2.msra.mxu0 0.0
  %2321 = vmatprep.subr.mxu0 0.0
  %2322 = vmatpush2.msra.mxu0 0.0
  %2323 = vmatprep.mubr.f32.mxu0 0.0
  %2324 = vmatmul.mubr.f32.gmra.mxu0 %v1875
  %v2325 = vpop.f32.mrf.mxu0
  %v2326 = vadd.f32 0.0, %v2325
  %v2327 = vpop.f32.mrf.mxu0
  %v2328 = vadd.f32 0.0, %v2327
  %2329 = vdwg.mxu0
  %v2330 = vadd.f32 %v416, %v2255
  %v2331 = vadd.f32 %v418, %v2257
  %v2332 = vadd.f32 %v529, %v2326
  %v2333 = vadd.f32 %v531, %v2328
  %v2334 = vxor.u32 %v2330, 2147483648
  %v2335 = vmul.f32 %v2334, 1.442695
  %v2336 = vpow.pop %v2335
  %v2337 = vadd.f32 %v2336, 1.0
  %v2338 = vrcp.pop %v2337
  %v2339 = vmul.f32 1.0, %v2338
  %v2340 = vxor.u32 %v2331, 2147483648
  %v2341 = vmul.f32 %v2340, 1.442695
  %v2342 = vpow.pop %v2341
  %v2343 = vadd.f32 %v2342, 1.0
  %v2344 = vrcp.pop %v2343
  %v2345 = vmul.f32 1.0, %v2344
  %v2346 = vtanh.pop %v2332
  %v2347 = vxor.u32 %v2333, 2147483648
  %v2348 = vmul.f32 %v2347, 1.442695
  %v2349 = vpow.pop %v2348
  %v2350 = vadd.f32 %v2349, 1.0
  %v2351 = vrcp.pop %v2350
  %v2352 = vmul.f32 1.0, %v2351
  %v2353 = vmul.f32 %v2345, %v1873
  %v2354 = vmul.f32 %v2339, %v2346
  %v2355 = vadd.f32 %v2353, %v2354
  %v2356 = vtanh.pop %v2355
  %v2357 = vmul.f32 %v2352, %v2356
  %2358 = vmatprep.subr.mxu0 %v163
  %2359 = vmatpush1.msra.mxu0 %v162
  %2360 = vmatprep.subr.mxu0 %v159
  %2361 = vmatpush1.msra.mxu0 %v158
  %2362 = vmatprep.subr.mxu0 %v155
  %2363 = vmatpush1.msra.mxu0 %v154
  %2364 = vmatprep.subr.mxu0 %v151
  %2365 = vmatpush1.msra.mxu0 %v150
  %2366 = vmatprep.subr.mxu0 %v147
  %2367 = vmatpush1.msra.mxu0 %v146
  %2368 = vmatprep.subr.mxu0 %v143
  %2369 = vmatpush1.msra.mxu0 %v142
  %2370 = vmatprep.subr.mxu0 %v139
  %2371 = vmatpush1.msra.mxu0 %v138
  %2372 = vmatprep.subr.mxu0 %v135
  %2373 = vmatpush1.msra.mxu0 %v134
  %2374 = vmatprep.subr.mxu0 %v131
  %2375 = vmatpush1.msra.mxu0 %v130
  %2376 = vmatprep.subr.mxu0 %v127
  %2377 = vmatpush1.msra.mxu0 %v126
  %2378 = vmatprep.subr.mxu0 %v123
  %2379 = vmatpush1.msra.mxu0 %v122
  %2380 = vmatprep.subr.mxu0 %v119
  %2381 = vmatpush1.msra.mxu0 %v118
  %2382 = vmatprep.subr.mxu0 %v115
  %2383 = vmatpush1.msra.mxu0 %v114
  %2384 = vmatprep.subr.mxu0 %v111
  %2385 = vmatpush1.msra.mxu0 %v110
  %2386 = vmatprep.subr.mxu0 %v107
  %2387 = vmatpush1.msra.mxu0 %v106
  %2388 = vmatprep.subr.mxu0 %v103
  %2389 = vmatpush1.msra.mxu0 %v102
  %2390 = vmatprep.subr.mxu0 0.0
  %2391 = vmatpush2.msra.mxu0 0.0
  %2392 = vmatprep.subr.mxu0 0.0
  %2393 = vmatpush2.msra.mxu0 0.0
  %2394 = vmatprep.subr.mxu0 0.0
  %2395 = vmatpush2.msra.mxu0 0.0
  %2396 = vmatprep.subr.mxu0 0.0
  %2397 = vmatpush2.msra.mxu0 0.0
  %2398 = vmatprep.subr.mxu0 0.0
  %2399 = vmatpush2.msra.mxu0 0.0
  %2400 = vmatprep.subr.mxu0 0.0
  %2401 = vmatpush2.msra.mxu0 0.0
  %2402 = vmatprep.subr.mxu0 0.0
  %2403 = vmatpush2.msra.mxu0 0.0
  %2404 = vmatprep.subr.mxu0 0.0
  %2405 = vmatpush2.msra.mxu0 0.0
  %2406 = vmatprep.subr.mxu0 0.0
  %2407 = vmatpush2.msra.mxu0 0.0
  %2408 = vmatprep.subr.mxu0 0.0
  %2409 = vmatpush2.msra.mxu0 0.0
  %2410 = vmatprep.subr.mxu0 0.0
  %2411 = vmatpush2.msra.mxu0 0.0
  %2412 = vmatprep.subr.mxu0 0.0
  %2413 = vmatpush2.msra.mxu0 0.0
  %2414 = vmatprep.subr.mxu0 0.0
  %2415 = vmatpush2.msra.mxu0 0.0
  %2416 = vmatprep.subr.mxu0 0.0
  %2417 = vmatpush2.msra.mxu0 0.0
  %2418 = vmatprep.subr.mxu0 0.0
  %2419 = vmatpush2.msra.mxu0 0.0
  %2420 = vmatprep.subr.mxu0 0.0
  %2421 = vmatpush2.msra.mxu0 0.0
  %2422 = vmatprep.mubr.f32.mxu0 0.0
  %2423 = vmatmul.mubr.f32.gmra.mxu0 %v1875
  %v2424 = vpop.f32.mrf.mxu0
  %v2425 = vadd.f32 %v895, %v2424
  %v2426 = vpop.f32.mrf.mxu0
  %v2427 = vadd.f32 %v899, %v2426
  %2428 = vdwg.mxu0
  %2429 = vmatprep.subr.mxu0 %v165
  %2430 = vmatpush1.msra.mxu0 %v164
  %2431 = vmatprep.subr.mxu0 %v161
  %2432 = vmatpush1.msra.mxu0 %v160
  %2433 = vmatprep.subr.mxu0 %v157
  %2434 = vmatpush1.msra.mxu0 %v156
  %2435 = vmatprep.subr.mxu0 %v153
  %2436 = vmatpush1.msra.mxu0 %v152
  %2437 = vmatprep.subr.mxu0 %v149
  %2438 = vmatpush1.msra.mxu0 %v148
  %2439 = vmatprep.subr.mxu0 %v145
  %2440 = vmatpush1.msra.mxu0 %v144
  %2441 = vmatprep.subr.mxu0 %v141
  %2442 = vmatpush1.msra.mxu0 %v140
  %2443 = vmatprep.subr.mxu0 %v137
  %2444 = vmatpush1.msra.mxu0 %v136
  %2445 = vmatprep.subr.mxu0 %v133
  %2446 = vmatpush1.msra.mxu0 %v132
  %2447 = vmatprep.subr.mxu0 %v129
  %2448 = vmatpush1.msra.mxu0 %v128
  %2449 = vmatprep.subr.mxu0 %v125
  %2450 = vmatpush1.msra.mxu0 %v124
  %2451 = vmatprep.subr.mxu0 %v121
  %2452 = vmatpush1.msra.mxu0 %v120
  %2453 = vmatprep.subr.mxu0 %v117
  %2454 = vmatpush1.msra.mxu0 %v116
  %2455 = vmatprep.subr.mxu0 %v113
  %2456 = vmatpush1.msra.mxu0 %v112
  %2457 = vmatprep.subr.mxu0 %v109
  %2458 = vmatpush1.msra.mxu0 %v108
  %2459 = vmatprep.subr.mxu0 %v105
  %2460 = vmatpush1.msra.mxu0 %v104
  %2461 = vmatprep.subr.mxu0 0.0
  %2462 = vmatpush2.msra.mxu0 0.0
  %2463 = vmatprep.subr.mxu0 0.0
  %2464 = vmatpush2.msra.mxu0 0.0
  %2465 = vmatprep.subr.mxu0 0.0
  %2466 = vmatpush2.msra.mxu0 0.0
  %2467 = vmatprep.subr.mxu0 0.0
  %2468 = vmatpush2.msra.mxu0 0.0
  %2469 = vmatprep.subr.mxu0 0.0
  %2470 = vmatpush2.msra.mxu0 0.0
  %2471 = vmatprep.subr.mxu0 0.0
  %2472 = vmatpush2.msra.mxu0 0.0
  %2473 = vmatprep.subr.mxu0 0.0
  %2474 = vmatpush2.msra.mxu0 0.0
  %2475 = vmatprep.subr.mxu0 0.0
  %2476 = vmatpush2.msra.mxu0 0.0
  %2477 = vmatprep.subr.mxu0 0.0
  %2478 = vmatpush2.msra.mxu0 0.0
  %2479 = vmatprep.subr.mxu0 0.0
  %2480 = vmatpush2.msra.mxu0 0.0
  %2481 = vmatprep.subr.mxu0 0.0
  %2482 = vmatpush2.msra.mxu0 0.0
  %2483 = vmatprep.subr.mxu0 0.0
  %2484 = vmatpush2.msra.mxu0 0.0
  %2485 = vmatprep.subr.mxu0 0.0
  %2486 = vmatpush2.msra.mxu0 0.0
  %2487 = vmatprep.subr.mxu0 0.0
  %2488 = vmatpush2.msra.mxu0 0.0
  %2489 = vmatprep.subr.mxu0 0.0
  %2490 = vmatpush2.msra.mxu0 0.0
  %2491 = vmatprep.subr.mxu0 0.0
  %2492 = vmatpush2.msra.mxu0 0.0
  %2493 = vmatprep.mubr.f32.mxu0 0.0
  %2494 = vmatmul.mubr.f32.gmra.mxu0 %v1875
  %v2495 = vpop.f32.mrf.mxu0
  %v2496 = vadd.f32 %v903, %v2495
  %v2497 = vpop.f32.mrf.mxu0
  %v2498 = vadd.f32 %v907, %v2497
  %2499 = vdwg.mxu0
  %2500 = vmatprep.subr.mxu0 %v291
  %2501 = vmatpush1.msra.mxu0 %v290
  %2502 = vmatprep.subr.mxu0 %v287
  %2503 = vmatpush1.msra.mxu0 %v286
  %2504 = vmatprep.subr.mxu0 %v283
  %2505 = vmatpush1.msra.mxu0 %v282
  %2506 = vmatprep.subr.mxu0 %v279
  %2507 = vmatpush1.msra.mxu0 %v278
  %2508 = vmatprep.subr.mxu0 %v275
  %2509 = vmatpush1.msra.mxu0 %v274
  %2510 = vmatprep.subr.mxu0 %v271
  %2511 = vmatpush1.msra.mxu0 %v270
  %2512 = vmatprep.subr.mxu0 %v267
  %2513 = vmatpush1.msra.mxu0 %v266
  %2514 = vmatprep.subr.mxu0 %v263
  %2515 = vmatpush1.msra.mxu0 %v262
  %2516 = vmatprep.subr.mxu0 %v259
  %2517 = vmatpush1.msra.mxu0 %v258
  %2518 = vmatprep.subr.mxu0 %v255
  %2519 = vmatpush1.msra.mxu0 %v254
  %2520 = vmatprep.subr.mxu0 %v251
  %2521 = vmatpush1.msra.mxu0 %v250
  %2522 = vmatprep.subr.mxu0 %v247
  %2523 = vmatpush1.msra.mxu0 %v246
  %2524 = vmatprep.subr.mxu0 %v243
  %2525 = vmatpush1.msra.mxu0 %v242
  %2526 = vmatprep.subr.mxu0 %v239
  %2527 = vmatpush1.msra.mxu0 %v238
  %2528 = vmatprep.subr.mxu0 %v235
  %2529 = vmatpush1.msra.mxu0 %v234
  %2530 = vmatprep.subr.mxu0 %v231
  %2531 = vmatpush1.msra.mxu0 %v230
  %2532 = vmatprep.subr.mxu0 0.0
  %2533 = vmatpush2.msra.mxu0 0.0
  %2534 = vmatprep.subr.mxu0 0.0
  %2535 = vmatpush2.msra.mxu0 0.0
  %2536 = vmatprep.subr.mxu0 0.0
  %2537 = vmatpush2.msra.mxu0 0.0
  %2538 = vmatprep.subr.mxu0 0.0
  %2539 = vmatpush2.msra.mxu0 0.0
  %2540 = vmatprep.subr.mxu0 0.0
  %2541 = vmatpush2.msra.mxu0 0.0
  %2542 = vmatprep.subr.mxu0 0.0
  %2543 = vmatpush2.msra.mxu0 0.0
  %2544 = vmatprep.subr.mxu0 0.0
  %2545 = vmatpush2.msra.mxu0 0.0
  %2546 = vmatprep.subr.mxu0 0.0
  %2547 = vmatpush2.msra.mxu0 0.0
  %2548 = vmatprep.subr.mxu0 0.0
  %2549 = vmatpush2.msra.mxu0 0.0
  %2550 = vmatprep.subr.mxu0 0.0
  %2551 = vmatpush2.msra.mxu0 0.0
  %2552 = vmatprep.subr.mxu0 0.0
  %2553 = vmatpush2.msra.mxu0 0.0
  %2554 = vmatprep.subr.mxu0 0.0
  %2555 = vmatpush2.msra.mxu0 0.0
  %2556 = vmatprep.subr.mxu0 0.0
  %2557 = vmatpush2.msra.mxu0 0.0
  %2558 = vmatprep.subr.mxu0 0.0
  %2559 = vmatpush2.msra.mxu0 0.0
  %2560 = vmatprep.subr.mxu0 0.0
  %2561 = vmatpush2.msra.mxu0 0.0
  %2562 = vmatprep.subr.mxu0 0.0
  %2563 = vmatpush2.msra.mxu0 0.0
  %2564 = vmatprep.mubr.f32.mxu0 0.0
  %2565 = vmatmul.mubr.f32.gmra.mxu0 %v2187
  %v2566 = vpop.f32.mrf.mxu0
  %v2567 = vadd.f32 0.0, %v2566
  %v2568 = vpop.f32.mrf.mxu0
  %v2569 = vadd.f32 0.0, %v2568
  %2570 = vdwg.mxu0
  %2571 = vmatprep.subr.mxu0 %v293
  %2572 = vmatpush1.msra.mxu0 %v292
  %2573 = vmatprep.subr.mxu0 %v289
  %2574 = vmatpush1.msra.mxu0 %v288
  %2575 = vmatprep.subr.mxu0 %v285
  %2576 = vmatpush1.msra.mxu0 %v284
  %2577 = vmatprep.subr.mxu0 %v281
  %2578 = vmatpush1.msra.mxu0 %v280
  %2579 = vmatprep.subr.mxu0 %v277
  %2580 = vmatpush1.msra.mxu0 %v276
  %2581 = vmatprep.subr.mxu0 %v273
  %2582 = vmatpush1.msra.mxu0 %v272
  %2583 = vmatprep.subr.mxu0 %v269
  %2584 = vmatpush1.msra.mxu0 %v268
  %2585 = vmatprep.subr.mxu0 %v265
  %2586 = vmatpush1.msra.mxu0 %v264
  %2587 = vmatprep.subr.mxu0 %v261
  %2588 = vmatpush1.msra.mxu0 %v260
  %2589 = vmatprep.subr.mxu0 %v257
  %2590 = vmatpush1.msra.mxu0 %v256
  %2591 = vmatprep.subr.mxu0 %v253
  %2592 = vmatpush1.msra.mxu0 %v252
  %2593 = vmatprep.subr.mxu0 %v249
  %2594 = vmatpush1.msra.mxu0 %v248
  %2595 = vmatprep.subr.mxu0 %v245
  %2596 = vmatpush1.msra.mxu0 %v244
  %2597 = vmatprep.subr.mxu0 %v241
  %2598 = vmatpush1.msra.mxu0 %v240
  %2599 = vmatprep.subr.mxu0 %v237
  %2600 = vmatpush1.msra.mxu0 %v236
  %2601 = vmatprep.subr.mxu0 %v233
  %2602 = vmatpush1.msra.mxu0 %v232
  %2603 = vmatprep.subr.mxu0 0.0
  %2604 = vmatpush2.msra.mxu0 0.0
  %2605 = vmatprep.subr.mxu0 0.0
  %2606 = vmatpush2.msra.mxu0 0.0
  %2607 = vmatprep.subr.mxu0 0.0
  %2608 = vmatpush2.msra.mxu0 0.0
  %2609 = vmatprep.subr.mxu0 0.0
  %2610 = vmatpush2.msra.mxu0 0.0
  %2611 = vmatprep.subr.mxu0 0.0
  %2612 = vmatpush2.msra.mxu0 0.0
  %2613 = vmatprep.subr.mxu0 0.0
  %2614 = vmatpush2.msra.mxu0 0.0
  %2615 = vmatprep.subr.mxu0 0.0
  %2616 = vmatpush2.msra.mxu0 0.0
  %2617 = vmatprep.subr.mxu0 0.0
  %2618 = vmatpush2.msra.mxu0 0.0
  %2619 = vmatprep.subr.mxu0 0.0
  %2620 = vmatpush2.msra.mxu0 0.0
  %2621 = vmatprep.subr.mxu0 0.0
  %2622 = vmatpush2.msra.mxu0 0.0
  %2623 = vmatprep.subr.mxu0 0.0
  %2624 = vmatpush2.msra.mxu0 0.0
  %2625 = vmatprep.subr.mxu0 0.0
  %2626 = vmatpush2.msra.mxu0 0.0
  %2627 = vmatprep.subr.mxu0 0.0
  %2628 = vmatpush2.msra.mxu0 0.0
  %2629 = vmatprep.subr.mxu0 0.0
  %2630 = vmatpush2.msra.mxu0 0.0
  %2631 = vmatprep.subr.mxu0 0.0
  %2632 = vmatpush2.msra.mxu0 0.0
  %2633 = vmatprep.subr.mxu0 0.0
  %2634 = vmatpush2.msra.mxu0 0.0
  %2635 = vmatprep.mubr.f32.mxu0 0.0
  %2636 = vmatmul.mubr.f32.gmra.mxu0 %v2187
  %v2637 = vpop.f32.mrf.mxu0
  %v2638 = vadd.f32 0.0, %v2637
  %v2639 = vpop.f32.mrf.mxu0
  %v2640 = vadd.f32 0.0, %v2639
  %2641 = vdwg.mxu0
  %v2642 = vadd.f32 %v2425, %v2567
  %v2643 = vadd.f32 %v2427, %v2569
  %v2644 = vadd.f32 %v2496, %v2638
  %v2645 = vadd.f32 %v2498, %v2640
  %v2646 = vxor.u32 %v2642, 2147483648
  %v2647 = vmul.f32 %v2646, 1.442695
  %v2648 = vpow.pop %v2647
  %v2649 = vadd.f32 %v2648, 1.0
  %v2650 = vrcp.pop %v2649
  %v2651 = vmul.f32 1.0, %v2650
  %v2652 = vxor.u32 %v2643, 2147483648
  %v2653 = vmul.f32 %v2652, 1.442695
  %v2654 = vpow.pop %v2653
  %v2655 = vadd.f32 %v2654, 1.0
  %v2656 = vrcp.pop %v2655
  %v2657 = vmul.f32 1.0, %v2656
  %v2658 = vtanh.pop %v2644
  %v2659 = vxor.u32 %v2645, 2147483648
  %v2660 = vmul.f32 %v2659, 1.442695
  %v2661 = vpow.pop %v2660
  %v2662 = vadd.f32 %v2661, 1.0
  %v2663 = vrcp.pop %v2662
  %v2664 = vmul.f32 1.0, %v2663
  %v2665 = vmul.f32 %v2657, %v2185
  %v2666 = vmul.f32 %v2651, %v2658
  %v2667 = vadd.f32 %v2665, %v2666
  %v2668 = vtanh.pop %v2667
  %v2669 = vmul.f32 %v2664, %v2668
  %2670 = vmatprep.subr.mxu0 %v227
  %2671 = vmatpush1.msra.mxu0 %v226
  %2672 = vmatprep.subr.mxu0 %v223
  %2673 = vmatpush1.msra.mxu0 %v222
  %2674 = vmatprep.subr.mxu0 %v219
  %2675 = vmatpush1.msra.mxu0 %v218
  %2676 = vmatprep.subr.mxu0 %v215
  %2677 = vmatpush1.msra.mxu0 %v214
  %2678 = vmatprep.subr.mxu0 %v211
  %2679 = vmatpush1.msra.mxu0 %v210
  %2680 = vmatprep.subr.mxu0 %v207
  %2681 = vmatpush1.msra.mxu0 %v206
  %2682 = vmatprep.subr.mxu0 %v203
  %2683 = vmatpush1.msra.mxu0 %v202
  %2684 = vmatprep.subr.mxu0 %v199
  %2685 = vmatpush1.msra.mxu0 %v198
  %2686 = vmatprep.subr.mxu0 %v195
  %2687 = vmatpush1.msra.mxu0 %v194
  %2688 = vmatprep.subr.mxu0 %v191
  %2689 = vmatpush1.msra.mxu0 %v190
  %2690 = vmatprep.subr.mxu0 %v187
  %2691 = vmatpush1.msra.mxu0 %v186
  %2692 = vmatprep.subr.mxu0 %v183
  %2693 = vmatpush1.msra.mxu0 %v182
  %2694 = vmatprep.subr.mxu0 %v179
  %2695 = vmatpush1.msra.mxu0 %v178
  %2696 = vmatprep.subr.mxu0 %v175
  %2697 = vmatpush1.msra.mxu0 %v174
  %2698 = vmatprep.subr.mxu0 %v171
  %2699 = vmatpush1.msra.mxu0 %v170
  %2700 = vmatprep.subr.mxu0 %v167
  %2701 = vmatpush1.msra.mxu0 %v166
  %2702 = vmatprep.subr.mxu0 0.0
  %2703 = vmatpush2.msra.mxu0 0.0
  %2704 = vmatprep.subr.mxu0 0.0
  %2705 = vmatpush2.msra.mxu0 0.0
  %2706 = vmatprep.subr.mxu0 0.0
  %2707 = vmatpush2.msra.mxu0 0.0
  %2708 = vmatprep.subr.mxu0 0.0
  %2709 = vmatpush2.msra.mxu0 0.0
  %2710 = vmatprep.subr.mxu0 0.0
  %2711 = vmatpush2.msra.mxu0 0.0
  %2712 = vmatprep.subr.mxu0 0.0
  %2713 = vmatpush2.msra.mxu0 0.0
  %2714 = vmatprep.subr.mxu0 0.0
  %2715 = vmatpush2.msra.mxu0 0.0
  %2716 = vmatprep.subr.mxu0 0.0
  %2717 = vmatpush2.msra.mxu0 0.0
  %2718 = vmatprep.subr.mxu0 0.0
  %2719 = vmatpush2.msra.mxu0 0.0
  %2720 = vmatprep.subr.mxu0 0.0
  %2721 = vmatpush2.msra.mxu0 0.0
  %2722 = vmatprep.subr.mxu0 0.0
  %2723 = vmatpush2.msra.mxu0 0.0
  %2724 = vmatprep.subr.mxu0 0.0
  %2725 = vmatpush2.msra.mxu0 0.0
  %2726 = vmatprep.subr.mxu0 0.0
  %2727 = vmatpush2.msra.mxu0 0.0
  %2728 = vmatprep.subr.mxu0 0.0
  %2729 = vmatpush2.msra.mxu0 0.0
  %2730 = vmatprep.subr.mxu0 0.0
  %2731 = vmatpush2.msra.mxu0 0.0
  %2732 = vmatprep.subr.mxu0 0.0
  %2733 = vmatpush2.msra.mxu0 0.0
  %2734 = vmatprep.mubr.f32.mxu0 0.0
  %2735 = vmatmul.mubr.f32.gmra.mxu0 %v2357
  %v2736 = vpop.f32.mrf.mxu0
  %v2737 = vadd.f32 0.0, %v2736
  %v2738 = vpop.f32.mrf.mxu0
  %v2739 = vadd.f32 0.0, %v2738
  %2740 = vdwg.mxu0
  %2741 = vmatprep.subr.mxu0 %v229
  %2742 = vmatpush1.msra.mxu0 %v228
  %2743 = vmatprep.subr.mxu0 %v225
  %2744 = vmatpush1.msra.mxu0 %v224
  %2745 = vmatprep.subr.mxu0 %v221
  %2746 = vmatpush1.msra.mxu0 %v220
  %2747 = vmatprep.subr.mxu0 %v217
  %2748 = vmatpush1.msra.mxu0 %v216
  %2749 = vmatprep.subr.mxu0 %v213
  %2750 = vmatpush1.msra.mxu0 %v212
  %2751 = vmatprep.subr.mxu0 %v209
  %2752 = vmatpush1.msra.mxu0 %v208
  %2753 = vmatprep.subr.mxu0 %v205
  %2754 = vmatpush1.msra.mxu0 %v204
  %2755 = vmatprep.subr.mxu0 %v201
  %2756 = vmatpush1.msra.mxu0 %v200
  %2757 = vmatprep.subr.mxu0 %v197
  %2758 = vmatpush1.msra.mxu0 %v196
  %2759 = vmatprep.subr.mxu0 %v193
  %2760 = vmatpush1.msra.mxu0 %v192
  %2761 = vmatprep.subr.mxu0 %v189
  %2762 = vmatpush1.msra.mxu0 %v188
  %2763 = vmatprep.subr.mxu0 %v185
  %2764 = vmatpush1.msra.mxu0 %v184
  %2765 = vmatprep.subr.mxu0 %v181
  %2766 = vmatpush1.msra.mxu0 %v180
  %2767 = vmatprep.subr.mxu0 %v177
  %2768 = vmatpush1.msra.mxu0 %v176
  %2769 = vmatprep.subr.mxu0 %v173
  %2770 = vmatpush1.msra.mxu0 %v172
  %2771 = vmatprep.subr.mxu0 %v169
  %2772 = vmatpush1.msra.mxu0 %v168
  %2773 = vmatprep.subr.mxu0 0.0
  %2774 = vmatpush2.msra.mxu0 0.0
  %2775 = vmatprep.subr.mxu0 0.0
  %2776 = vmatpush2.msra.mxu0 0.0
  %2777 = vmatprep.subr.mxu0 0.0
  %2778 = vmatpush2.msra.mxu0 0.0
  %2779 = vmatprep.subr.mxu0 0.0
  %2780 = vmatpush2.msra.mxu0 0.0
  %2781 = vmatprep.subr.mxu0 0.0
  %2782 = vmatpush2.msra.mxu0 0.0
  %2783 = vmatprep.subr.mxu0 0.0
  %2784 = vmatpush2.msra.mxu0 0.0
  %2785 = vmatprep.subr.mxu0 0.0
  %2786 = vmatpush2.msra.mxu0 0.0
  %2787 = vmatprep.subr.mxu0 0.0
  %2788 = vmatpush2.msra.mxu0 0.0
  %2789 = vmatprep.subr.mxu0 0.0
  %2790 = vmatpush2.msra.mxu0 0.0
  %2791 = vmatprep.subr.mxu0 0.0
  %2792 = vmatpush2.msra.mxu0 0.0
  %2793 = vmatprep.subr.mxu0 0.0
  %2794 = vmatpush2.msra.mxu0 0.0
  %2795 = vmatprep.subr.mxu0 0.0
  %2796 = vmatpush2.msra.mxu0 0.0
  %2797 = vmatprep.subr.mxu0 0.0
  %2798 = vmatpush2.msra.mxu0 0.0
  %2799 = vmatprep.subr.mxu0 0.0
  %2800 = vmatpush2.msra.mxu0 0.0
  %2801 = vmatprep.subr.mxu0 0.0
  %2802 = vmatpush2.msra.mxu0 0.0
  %2803 = vmatprep.subr.mxu0 0.0
  %2804 = vmatpush2.msra.mxu0 0.0
  %2805 = vmatprep.mubr.f32.mxu0 0.0
  %2806 = vmatmul.mubr.f32.gmra.mxu0 %v2357
  %v2807 = vpop.f32.mrf.mxu0
  %v2808 = vadd.f32 0.0, %v2807
  %v2809 = vpop.f32.mrf.mxu0
  %v2810 = vadd.f32 0.0, %v2809
  %2811 = vdwg.mxu0
  %v2812 = vadd.f32 %v422, %v2737
  %v2813 = vadd.f32 %v424, %v2739
  %v2814 = vadd.f32 %v535, %v2808
  %v2815 = vadd.f32 %v537, %v2810
  %v2816 = vxor.u32 %v2812, 2147483648
  %v2817 = vmul.f32 %v2816, 1.442695
  %v2818 = vpow.pop %v2817
  %v2819 = vadd.f32 %v2818, 1.0
  %v2820 = vrcp.pop %v2819
  %v2821 = vmul.f32 1.0, %v2820
  %v2822 = vxor.u32 %v2813, 2147483648
  %v2823 = vmul.f32 %v2822, 1.442695
  %v2824 = vpow.pop %v2823
  %v2825 = vadd.f32 %v2824, 1.0
  %v2826 = vrcp.pop %v2825
  %v2827 = vmul.f32 1.0, %v2826
  %v2828 = vtanh.pop %v2814
  %v2829 = vxor.u32 %v2815, 2147483648
  %v2830 = vmul.f32 %v2829, 1.442695
  %v2831 = vpow.pop %v2830
  %v2832 = vadd.f32 %v2831, 1.0
  %v2833 = vrcp.pop %v2832
  %v2834 = vmul.f32 1.0, %v2833
  %v2835 = vmul.f32 %v2827, %v2355
  %v2836 = vmul.f32 %v2821, %v2828
  %v2837 = vadd.f32 %v2835, %v2836
  %v2838 = vtanh.pop %v2837
  %v2839 = vmul.f32 %v2834, %v2838
  %2840 = vmatprep.subr.mxu0 %v163
  %2841 = vmatpush1.msra.mxu0 %v162
  %2842 = vmatprep.subr.mxu0 %v159
  %2843 = vmatpush1.msra.mxu0 %v158
  %2844 = vmatprep.subr.mxu0 %v155
  %2845 = vmatpush1.msra.mxu0 %v154
  %2846 = vmatprep.subr.mxu0 %v151
  %2847 = vmatpush1.msra.mxu0 %v150
  %2848 = vmatprep.subr.mxu0 %v147
  %2849 = vmatpush1.msra.mxu0 %v146
  %2850 = vmatprep.subr.mxu0 %v143
  %2851 = vmatpush1.msra.mxu0 %v142
  %2852 = vmatprep.subr.mxu0 %v139
  %2853 = vmatpush1.msra.mxu0 %v138
  %2854 = vmatprep.subr.mxu0 %v135
  %2855 = vmatpush1.msra.mxu0 %v134
  %2856 = vmatprep.subr.mxu0 %v131
  %2857 = vmatpush1.msra.mxu0 %v130
  %2858 = vmatprep.subr.mxu0 %v127
  %2859 = vmatpush1.msra.mxu0 %v126
  %2860 = vmatprep.subr.mxu0 %v123
  %2861 = vmatpush1.msra.mxu0 %v122
  %2862 = vmatprep.subr.mxu0 %v119
  %2863 = vmatpush1.msra.mxu0 %v118
  %2864 = vmatprep.subr.mxu0 %v115
  %2865 = vmatpush1.msra.mxu0 %v114
  %2866 = vmatprep.subr.mxu0 %v111
  %2867 = vmatpush1.msra.mxu0 %v110
  %2868 = vmatprep.subr.mxu0 %v107
  %2869 = vmatpush1.msra.mxu0 %v106
  %2870 = vmatprep.subr.mxu0 %v103
  %2871 = vmatpush1.msra.mxu0 %v102
  %2872 = vmatprep.subr.mxu0 0.0
  %2873 = vmatpush2.msra.mxu0 0.0
  %2874 = vmatprep.subr.mxu0 0.0
  %2875 = vmatpush2.msra.mxu0 0.0
  %2876 = vmatprep.subr.mxu0 0.0
  %2877 = vmatpush2.msra.mxu0 0.0
  %2878 = vmatprep.subr.mxu0 0.0
  %2879 = vmatpush2.msra.mxu0 0.0
  %2880 = vmatprep.subr.mxu0 0.0
  %2881 = vmatpush2.msra.mxu0 0.0
  %2882 = vmatprep.subr.mxu0 0.0
  %2883 = vmatpush2.msra.mxu0 0.0
  %2884 = vmatprep.subr.mxu0 0.0
  %2885 = vmatpush2.msra.mxu0 0.0
  %2886 = vmatprep.subr.mxu0 0.0
  %2887 = vmatpush2.msra.mxu0 0.0
  %2888 = vmatprep.subr.mxu0 0.0
  %2889 = vmatpush2.msra.mxu0 0.0
  %2890 = vmatprep.subr.mxu0 0.0
  %2891 = vmatpush2.msra.mxu0 0.0
  %2892 = vmatprep.subr.mxu0 0.0
  %2893 = vmatpush2.msra.mxu0 0.0
  %2894 = vmatprep.subr.mxu0 0.0
  %2895 = vmatpush2.msra.mxu0 0.0
  %2896 = vmatprep.subr.mxu0 0.0
  %2897 = vmatpush2.msra.mxu0 0.0
  %2898 = vmatprep.subr.mxu0 0.0
  %2899 = vmatpush2.msra.mxu0 0.0
  %2900 = vmatprep.subr.mxu0 0.0
  %2901 = vmatpush2.msra.mxu0 0.0
  %2902 = vmatprep.subr.mxu0 0.0
  %2903 = vmatpush2.msra.mxu0 0.0
  %2904 = vmatprep.mubr.f32.mxu0 0.0
  %2905 = vmatmul.mubr.f32.gmra.mxu0 %v2357
  %v2906 = vpop.f32.mrf.mxu0
  %v2907 = vadd.f32 %v895, %v2906
  %v2908 = vpop.f32.mrf.mxu0
  %v2909 = vadd.f32 %v899, %v2908
  %2910 = vdwg.mxu0
  %2911 = vmatprep.subr.mxu0 %v165
  %2912 = vmatpush1.msra.mxu0 %v164
  %2913 = vmatprep.subr.mxu0 %v161
  %2914 = vmatpush1.msra.mxu0 %v160
  %2915 = vmatprep.subr.mxu0 %v157
  %2916 = vmatpush1.msra.mxu0 %v156
  %2917 = vmatprep.subr.mxu0 %v153
  %2918 = vmatpush1.msra.mxu0 %v152
  %2919 = vmatprep.subr.mxu0 %v149
  %2920 = vmatpush1.msra.mxu0 %v148
  %2921 = vmatprep.subr.mxu0 %v145
  %2922 = vmatpush1.msra.mxu0 %v144
  %2923 = vmatprep.subr.mxu0 %v141
  %2924 = vmatpush1.msra.mxu0 %v140
  %2925 = vmatprep.subr.mxu0 %v137
  %2926 = vmatpush1.msra.mxu0 %v136
  %2927 = vmatprep.subr.mxu0 %v133
  %2928 = vmatpush1.msra.mxu0 %v132
  %2929 = vmatprep.subr.mxu0 %v129
  %2930 = vmatpush1.msra.mxu0 %v128
  %2931 = vmatprep.subr.mxu0 %v125
  %2932 = vmatpush1.msra.mxu0 %v124
  %2933 = vmatprep.subr.mxu0 %v121
  %2934 = vmatpush1.msra.mxu0 %v120
  %2935 = vmatprep.subr.mxu0 %v117
  %2936 = vmatpush1.msra.mxu0 %v116
  %2937 = vmatprep.subr.mxu0 %v113
  %2938 = vmatpush1.msra.mxu0 %v112
  %2939 = vmatprep.subr.mxu0 %v109
  %2940 = vmatpush1.msra.mxu0 %v108
  %2941 = vmatprep.subr.mxu0 %v105
  %2942 = vmatpush1.msra.mxu0 %v104
  %2943 = vmatprep.subr.mxu0 0.0
  %2944 = vmatpush2.msra.mxu0 0.0
  %2945 = vmatprep.subr.mxu0 0.0
  %2946 = vmatpush2.msra.mxu0 0.0
  %2947 = vmatprep.subr.mxu0 0.0
  %2948 = vmatpush2.msra.mxu0 0.0
  %2949 = vmatprep.subr.mxu0 0.0
  %2950 = vmatpush2.msra.mxu0 0.0
  %2951 = vmatprep.subr.mxu0 0.0
  %2952 = vmatpush2.msra.mxu0 0.0
  %2953 = vmatprep.subr.mxu0 0.0
  %2954 = vmatpush2.msra.mxu0 0.0
  %2955 = vmatprep.subr.mxu0 0.0
  %2956 = vmatpush2.msra.mxu0 0.0
  %2957 = vmatprep.subr.mxu0 0.0
  %2958 = vmatpush2.msra.mxu0 0.0
  %2959 = vmatprep.subr.mxu0 0.0
  %2960 = vmatpush2.msra.mxu0 0.0
  %2961 = vmatprep.subr.mxu0 0.0
  %2962 = vmatpush2.msra.mxu0 0.0
  %2963 = vmatprep.subr.mxu0 0.0
  %2964 = vmatpush2.msra.mxu0 0.0
  %2965 = vmatprep.subr.mxu0 0.0
  %2966 = vmatpush2.msra.mxu0 0.0
  %2967 = vmatprep.subr.mxu0 0.0
  %2968 = vmatpush2.msra.mxu0 0.0
  %2969 = vmatprep.subr.mxu0 0.0
  %2970 = vmatpush2.msra.mxu0 0.0
  %2971 = vmatprep.subr.mxu0 0.0
  %2972 = vmatpush2.msra.mxu0 0.0
  %2973 = vmatprep.subr.mxu0 0.0
  %2974 = vmatpush2.msra.mxu0 0.0
  %2975 = vmatprep.mubr.f32.mxu0 0.0
  %2976 = vmatmul.mubr.f32.gmra.mxu0 %v2357
  %v2977 = vpop.f32.mrf.mxu0
  %v2978 = vadd.f32 %v903, %v2977
  %v2979 = vpop.f32.mrf.mxu0
  %v2980 = vadd.f32 %v907, %v2979
  %2981 = vdwg.mxu0
  %2982 = vmatprep.subr.mxu0 %v291
  %2983 = vmatpush1.msra.mxu0 %v290
  %2984 = vmatprep.subr.mxu0 %v287
  %2985 = vmatpush1.msra.mxu0 %v286
  %2986 = vmatprep.subr.mxu0 %v283
  %2987 = vmatpush1.msra.mxu0 %v282
  %2988 = vmatprep.subr.mxu0 %v279
  %2989 = vmatpush1.msra.mxu0 %v278
  %2990 = vmatprep.subr.mxu0 %v275
  %2991 = vmatpush1.msra.mxu0 %v274
  %2992 = vmatprep.subr.mxu0 %v271
  %2993 = vmatpush1.msra.mxu0 %v270
  %2994 = vmatprep.subr.mxu0 %v267
  %2995 = vmatpush1.msra.mxu0 %v266
  %2996 = vmatprep.subr.mxu0 %v263
  %2997 = vmatpush1.msra.mxu0 %v262
  %2998 = vmatprep.subr.mxu0 %v259
  %2999 = vmatpush1.msra.mxu0 %v258
  %3000 = vmatprep.subr.mxu0 %v255
  %3001 = vmatpush1.msra.mxu0 %v254
  %3002 = vmatprep.subr.mxu0 %v251
  %3003 = vmatpush1.msra.mxu0 %v250
  %3004 = vmatprep.subr.mxu0 %v247
  %3005 = vmatpush1.msra.mxu0 %v246
  %3006 = vmatprep.subr.mxu0 %v243
  %3007 = vmatpush1.msra.mxu0 %v242
  %3008 = vmatprep.subr.mxu0 %v239
  %3009 = vmatpush1.msra.mxu0 %v238
  %3010 = vmatprep.subr.mxu0 %v235
  %3011 = vmatpush1.msra.mxu0 %v234
  %3012 = vmatprep.subr.mxu0 %v231
  %3013 = vmatpush1.msra.mxu0 %v230
  %3014 = vmatprep.subr.mxu0 0.0
  %3015 = vmatpush2.msra.mxu0 0.0
  %3016 = vmatprep.subr.mxu0 0.0
  %3017 = vmatpush2.msra.mxu0 0.0
  %3018 = vmatprep.subr.mxu0 0.0
  %3019 = vmatpush2.msra.mxu0 0.0
  %3020 = vmatprep.subr.mxu0 0.0
  %3021 = vmatpush2.msra.mxu0 0.0
  %3022 = vmatprep.subr.mxu0 0.0
  %3023 = vmatpush2.msra.mxu0 0.0
  %3024 = vmatprep.subr.mxu0 0.0
  %3025 = vmatpush2.msra.mxu0 0.0
  %3026 = vmatprep.subr.mxu0 0.0
  %3027 = vmatpush2.msra.mxu0 0.0
  %3028 = vmatprep.subr.mxu0 0.0
  %3029 = vmatpush2.msra.mxu0 0.0
  %3030 = vmatprep.subr.mxu0 0.0
  %3031 = vmatpush2.msra.mxu0 0.0
  %3032 = vmatprep.subr.mxu0 0.0
  %3033 = vmatpush2.msra.mxu0 0.0
  %3034 = vmatprep.subr.mxu0 0.0
  %3035 = vmatpush2.msra.mxu0 0.0
  %3036 = vmatprep.subr.mxu0 0.0
  %3037 = vmatpush2.msra.mxu0 0.0
  %3038 = vmatprep.subr.mxu0 0.0
  %3039 = vmatpush2.msra.mxu0 0.0
  %3040 = vmatprep.subr.mxu0 0.0
  %3041 = vmatpush2.msra.mxu0 0.0
  %3042 = vmatprep.subr.mxu0 0.0
  %3043 = vmatpush2.msra.mxu0 0.0
  %3044 = vmatprep.subr.mxu0 0.0
  %3045 = vmatpush2.msra.mxu0 0.0
  %3046 = vmatprep.mubr.f32.mxu0 0.0
  %3047 = vmatmul.mubr.f32.gmra.mxu0 %v2669
  %v3048 = vpop.f32.mrf.mxu0
  %v3049 = vadd.f32 0.0, %v3048
  %v3050 = vpop.f32.mrf.mxu0
  %v3051 = vadd.f32 0.0, %v3050
  %3052 = vdwg.mxu0
  %3053 = vmatprep.subr.mxu0 %v293
  %3054 = vmatpush1.msra.mxu0 %v292
  %3055 = vmatprep.subr.mxu0 %v289
  %3056 = vmatpush1.msra.mxu0 %v288
  %3057 = vmatprep.subr.mxu0 %v285
  %3058 = vmatpush1.msra.mxu0 %v284
  %3059 = vmatprep.subr.mxu0 %v281
  %3060 = vmatpush1.msra.mxu0 %v280
  %3061 = vmatprep.subr.mxu0 %v277
  %3062 = vmatpush1.msra.mxu0 %v276
  %3063 = vmatprep.subr.mxu0 %v273
  %3064 = vmatpush1.msra.mxu0 %v272
  %3065 = vmatprep.subr.mxu0 %v269
  %3066 = vmatpush1.msra.mxu0 %v268
  %3067 = vmatprep.subr.mxu0 %v265
  %3068 = vmatpush1.msra.mxu0 %v264
  %3069 = vmatprep.subr.mxu0 %v261
  %3070 = vmatpush1.msra.mxu0 %v260
  %3071 = vmatprep.subr.mxu0 %v257
  %3072 = vmatpush1.msra.mxu0 %v256
  %3073 = vmatprep.subr.mxu0 %v253
  %3074 = vmatpush1.msra.mxu0 %v252
  %3075 = vmatprep.subr.mxu0 %v249
  %3076 = vmatpush1.msra.mxu0 %v248
  %3077 = vmatprep.subr.mxu0 %v245
  %3078 = vmatpush1.msra.mxu0 %v244
  %3079 = vmatprep.subr.mxu0 %v241
  %3080 = vmatpush1.msra.mxu0 %v240
  %3081 = vmatprep.subr.mxu0 %v237
  %3082 = vmatpush1.msra.mxu0 %v236
  %3083 = vmatprep.subr.mxu0 %v233
  %3084 = vmatpush1.msra.mxu0 %v232
  %3085 = vmatprep.subr.mxu0 0.0
  %3086 = vmatpush2.msra.mxu0 0.0
  %3087 = vmatprep.subr.mxu0 0.0
  %3088 = vmatpush2.msra.mxu0 0.0
  %3089 = vmatprep.subr.mxu0 0.0
  %3090 = vmatpush2.msra.mxu0 0.0
  %3091 = vmatprep.subr.mxu0 0.0
  %3092 = vmatpush2.msra.mxu0 0.0
  %3093 = vmatprep.subr.mxu0 0.0
  %3094 = vmatpush2.msra.mxu0 0.0
  %3095 = vmatprep.subr.mxu0 0.0
  %3096 = vmatpush2.msra.mxu0 0.0
  %3097 = vmatprep.subr.mxu0 0.0
  %3098 = vmatpush2.msra.mxu0 0.0
  %3099 = vmatprep.subr.mxu0 0.0
  %3100 = vmatpush2.msra.mxu0 0.0
  %3101 = vmatprep.subr.mxu0 0.0
  %3102 = vmatpush2.msra.mxu0 0.0
  %3103 = vmatprep.subr.mxu0 0.0
  %3104 = vmatpush2.msra.mxu0 0.0
  %3105 = vmatprep.subr.mxu0 0.0
  %3106 = vmatpush2.msra.mxu0 0.0
  %3107 = vmatprep.subr.mxu0 0.0
  %3108 = vmatpush2.msra.mxu0 0.0
  %3109 = vmatprep.subr.mxu0 0.0
  %3110 = vmatpush2.msra.mxu0 0.0
  %3111 = vmatprep.subr.mxu0 0.0
  %3112 = vmatpush2.msra.mxu0 0.0
  %3113 = vmatprep.subr.mxu0 0.0
  %3114 = vmatpush2.msra.mxu0 0.0
  %3115 = vmatprep.subr.mxu0 0.0
  %3116 = vmatpush2.msra.mxu0 0.0
  %3117 = vmatprep.mubr.f32.mxu0 0.0
  %3118 = vmatmul.mubr.f32.gmra.mxu0 %v2669
  %v3119 = vpop.f32.mrf.mxu0
  %v3120 = vadd.f32 0.0, %v3119
  %v3121 = vpop.f32.mrf.mxu0
  %v3122 = vadd.f32 0.0, %v3121
  %3123 = vdwg.mxu0
  %v3124 = vadd.f32 %v2907, %v3049
  %v3125 = vadd.f32 %v2909, %v3051
  %v3126 = vadd.f32 %v2978, %v3120
  %v3127 = vadd.f32 %v2980, %v3122
  %v3128 = vxor.u32 %v3124, 2147483648
  %v3129 = vmul.f32 %v3128, 1.442695
  %v3130 = vpow.pop %v3129
  %v3131 = vadd.f32 %v3130, 1.0
  %v3132 = vrcp.pop %v3131
  %v3133 = vmul.f32 1.0, %v3132
  %v3134 = vxor.u32 %v3125, 2147483648
  %v3135 = vmul.f32 %v3134, 1.442695
  %v3136 = vpow.pop %v3135
  %v3137 = vadd.f32 %v3136, 1.0
  %v3138 = vrcp.pop %v3137
  %v3139 = vmul.f32 1.0, %v3138
  %v3140 = vtanh.pop %v3126
  %v3141 = vxor.u32 %v3127, 2147483648
  %v3142 = vmul.f32 %v3141, 1.442695
  %v3143 = vpow.pop %v3142
  %v3144 = vadd.f32 %v3143, 1.0
  %v3145 = vrcp.pop %v3144
  %v3146 = vmul.f32 1.0, %v3145
  %v3147 = vmul.f32 %v3139, %v2667
  %v3148 = vmul.f32 %v3133, %v3140
  %v3149 = vadd.f32 %v3147, %v3148
  %v3150 = vtanh.pop %v3149
  %v3151 = vmul.f32 %v3146, %v3150
  %3152 = vmatprep.subr.mxu0 %v227
  %3153 = vmatpush1.msra.mxu0 %v226
  %3154 = vmatprep.subr.mxu0 %v223
  %3155 = vmatpush1.msra.mxu0 %v222
  %3156 = vmatprep.subr.mxu0 %v219
  %3157 = vmatpush1.msra.mxu0 %v218
  %3158 = vmatprep.subr.mxu0 %v215
  %3159 = vmatpush1.msra.mxu0 %v214
  %3160 = vmatprep.subr.mxu0 %v211
  %3161 = vmatpush1.msra.mxu0 %v210
  %3162 = vmatprep.subr.mxu0 %v207
  %3163 = vmatpush1.msra.mxu0 %v206
  %3164 = vmatprep.subr.mxu0 %v203
  %3165 = vmatpush1.msra.mxu0 %v202
  %3166 = vmatprep.subr.mxu0 %v199
  %3167 = vmatpush1.msra.mxu0 %v198
  %3168 = vmatprep.subr.mxu0 %v195
  %3169 = vmatpush1.msra.mxu0 %v194
  %3170 = vmatprep.subr.mxu0 %v191
  %3171 = vmatpush1.msra.mxu0 %v190
  %3172 = vmatprep.subr.mxu0 %v187
  %3173 = vmatpush1.msra.mxu0 %v186
  %3174 = vmatprep.subr.mxu0 %v183
  %3175 = vmatpush1.msra.mxu0 %v182
  %3176 = vmatprep.subr.mxu0 %v179
  %3177 = vmatpush1.msra.mxu0 %v178
  %3178 = vmatprep.subr.mxu0 %v175
  %3179 = vmatpush1.msra.mxu0 %v174
  %3180 = vmatprep.subr.mxu0 %v171
  %3181 = vmatpush1.msra.mxu0 %v170
  %3182 = vmatprep.subr.mxu0 %v167
  %3183 = vmatpush1.msra.mxu0 %v166
  %3184 = vmatprep.subr.mxu0 0.0
  %3185 = vmatpush2.msra.mxu0 0.0
  %3186 = vmatprep.subr.mxu0 0.0
  %3187 = vmatpush2.msra.mxu0 0.0
  %3188 = vmatprep.subr.mxu0 0.0
  %3189 = vmatpush2.msra.mxu0 0.0
  %3190 = vmatprep.subr.mxu0 0.0
  %3191 = vmatpush2.msra.mxu0 0.0
  %3192 = vmatprep.subr.mxu0 0.0
  %3193 = vmatpush2.msra.mxu0 0.0
  %3194 = vmatprep.subr.mxu0 0.0
  %3195 = vmatpush2.msra.mxu0 0.0
  %3196 = vmatprep.subr.mxu0 0.0
  %3197 = vmatpush2.msra.mxu0 0.0
  %3198 = vmatprep.subr.mxu0 0.0
  %3199 = vmatpush2.msra.mxu0 0.0
  %3200 = vmatprep.subr.mxu0 0.0
  %3201 = vmatpush2.msra.mxu0 0.0
  %3202 = vmatprep.subr.mxu0 0.0
  %3203 = vmatpush2.msra.mxu0 0.0
  %3204 = vmatprep.subr.mxu0 0.0
  %3205 = vmatpush2.msra.mxu0 0.0
  %3206 = vmatprep.subr.mxu0 0.0
  %3207 = vmatpush2.msra.mxu0 0.0
  %3208 = vmatprep.subr.mxu0 0.0
  %3209 = vmatpush2.msra.mxu0 0.0
  %3210 = vmatprep.subr.mxu0 0.0
  %3211 = vmatpush2.msra.mxu0 0.0
  %3212 = vmatprep.subr.mxu0 0.0
  %3213 = vmatpush2.msra.mxu0 0.0
  %3214 = vmatprep.subr.mxu0 0.0
  %3215 = vmatpush2.msra.mxu0 0.0
  %3216 = vmatprep.mubr.f32.mxu0 0.0
  %3217 = vmatmul.mubr.f32.gmra.mxu0 %v2839
  %v3218 = vpop.f32.mrf.mxu0
  %v3219 = vadd.f32 0.0, %v3218
  %v3220 = vpop.f32.mrf.mxu0
  %v3221 = vadd.f32 0.0, %v3220
  %3222 = vdwg.mxu0
  %3223 = vmatprep.subr.mxu0 %v229
  %3224 = vmatpush1.msra.mxu0 %v228
  %3225 = vmatprep.subr.mxu0 %v225
  %3226 = vmatpush1.msra.mxu0 %v224
  %3227 = vmatprep.subr.mxu0 %v221
  %3228 = vmatpush1.msra.mxu0 %v220
  %3229 = vmatprep.subr.mxu0 %v217
  %3230 = vmatpush1.msra.mxu0 %v216
  %3231 = vmatprep.subr.mxu0 %v213
  %3232 = vmatpush1.msra.mxu0 %v212
  %3233 = vmatprep.subr.mxu0 %v209
  %3234 = vmatpush1.msra.mxu0 %v208
  %3235 = vmatprep.subr.mxu0 %v205
  %3236 = vmatpush1.msra.mxu0 %v204
  %3237 = vmatprep.subr.mxu0 %v201
  %3238 = vmatpush1.msra.mxu0 %v200
  %3239 = vmatprep.subr.mxu0 %v197
  %3240 = vmatpush1.msra.mxu0 %v196
  %3241 = vmatprep.subr.mxu0 %v193
  %3242 = vmatpush1.msra.mxu0 %v192
  %3243 = vmatprep.subr.mxu0 %v189
  %3244 = vmatpush1.msra.mxu0 %v188
  %3245 = vmatprep.subr.mxu0 %v185
  %3246 = vmatpush1.msra.mxu0 %v184
  %3247 = vmatprep.subr.mxu0 %v181
  %3248 = vmatpush1.msra.mxu0 %v180
  %3249 = vmatprep.subr.mxu0 %v177
  %3250 = vmatpush1.msra.mxu0 %v176
  %3251 = vmatprep.subr.mxu0 %v173
  %3252 = vmatpush1.msra.mxu0 %v172
  %3253 = vmatprep.subr.mxu0 %v169
  %3254 = vmatpush1.msra.mxu0 %v168
  %3255 = vmatprep.subr.mxu0 0.0
  %3256 = vmatpush2.msra.mxu0 0.0
  %3257 = vmatprep.subr.mxu0 0.0
  %3258 = vmatpush2.msra.mxu0 0.0
  %3259 = vmatprep.subr.mxu0 0.0
  %3260 = vmatpush2.msra.mxu0 0.0
  %3261 = vmatprep.subr.mxu0 0.0
  %3262 = vmatpush2.msra.mxu0 0.0
  %3263 = vmatprep.subr.mxu0 0.0
  %3264 = vmatpush2.msra.mxu0 0.0
  %3265 = vmatprep.subr.mxu0 0.0
  %3266 = vmatpush2.msra.mxu0 0.0
  %3267 = vmatprep.subr.mxu0 0.0
  %3268 = vmatpush2.msra.mxu0 0.0
  %3269 = vmatprep.subr.mxu0 0.0
  %3270 = vmatpush2.msra.mxu0 0.0
  %3271 = vmatprep.subr.mxu0 0.0
  %3272 = vmatpush2.msra.mxu0 0.0
  %3273 = vmatprep.subr.mxu0 0.0
  %3274 = vmatpush2.msra.mxu0 0.0
  %3275 = vmatprep.subr.mxu0 0.0
  %3276 = vmatpush2.msra.mxu0 0.0
  %3277 = vmatprep.subr.mxu0 0.0
  %3278 = vmatpush2.msra.mxu0 0.0
  %3279 = vmatprep.subr.mxu0 0.0
  %3280 = vmatpush2.msra.mxu0 0.0
  %3281 = vmatprep.subr.mxu0 0.0
  %3282 = vmatpush2.msra.mxu0 0.0
  %3283 = vmatprep.subr.mxu0 0.0
  %3284 = vmatpush2.msra.mxu0 0.0
  %3285 = vmatprep.subr.mxu0 0.0
  %3286 = vmatpush2.msra.mxu0 0.0
  %3287 = vmatprep.mubr.f32.mxu0 0.0
  %3288 = vmatmul.mubr.f32.gmra.mxu0 %v2839
  %v3289 = vpop.f32.mrf.mxu0
  %v3290 = vadd.f32 0.0, %v3289
  %v3291 = vpop.f32.mrf.mxu0
  %v3292 = vadd.f32 0.0, %v3291
  %3293 = vdwg.mxu0
  %v3294 = vadd.f32 %v428, %v3219
  %v3295 = vadd.f32 %v430, %v3221
  %v3296 = vadd.f32 %v541, %v3290
  %v3297 = vadd.f32 %v543, %v3292
  %v3298 = vxor.u32 %v3294, 2147483648
  %v3299 = vmul.f32 %v3298, 1.442695
  %v3300 = vpow.pop %v3299
  %v3301 = vadd.f32 %v3300, 1.0
  %v3302 = vrcp.pop %v3301
  %v3303 = vmul.f32 1.0, %v3302
  %v3304 = vxor.u32 %v3295, 2147483648
  %v3305 = vmul.f32 %v3304, 1.442695
  %v3306 = vpow.pop %v3305
  %v3307 = vadd.f32 %v3306, 1.0
  %v3308 = vrcp.pop %v3307
  %v3309 = vmul.f32 1.0, %v3308
  %v3310 = vtanh.pop %v3296
  %v3311 = vxor.u32 %v3297, 2147483648
  %v3312 = vmul.f32 %v3311, 1.442695
  %v3313 = vpow.pop %v3312
  %v3314 = vadd.f32 %v3313, 1.0
  %v3315 = vrcp.pop %v3314
  %v3316 = vmul.f32 1.0, %v3315
  %v3317 = vmul.f32 %v3309, %v2837
  %v3318 = vmul.f32 %v3303, %v3310
  %v3319 = vadd.f32 %v3317, %v3318
  %v3320 = vtanh.pop %v3319
  %v3321 = vmul.f32 %v3316, %v3320
  %3322 = vmatprep.subr.mxu0 %v163
  %3323 = vmatpush1.msra.mxu0 %v162
  %3324 = vmatprep.subr.mxu0 %v159
  %3325 = vmatpush1.msra.mxu0 %v158
  %3326 = vmatprep.subr.mxu0 %v155
  %3327 = vmatpush1.msra.mxu0 %v154
  %3328 = vmatprep.subr.mxu0 %v151
  %3329 = vmatpush1.msra.mxu0 %v150
  %3330 = vmatprep.subr.mxu0 %v147
  %3331 = vmatpush1.msra.mxu0 %v146
  %3332 = vmatprep.subr.mxu0 %v143
  %3333 = vmatpush1.msra.mxu0 %v142
  %3334 = vmatprep.subr.mxu0 %v139
  %3335 = vmatpush1.msra.mxu0 %v138
  %3336 = vmatprep.subr.mxu0 %v135
  %3337 = vmatpush1.msra.mxu0 %v134
  %3338 = vmatprep.subr.mxu0 %v131
  %3339 = vmatpush1.msra.mxu0 %v130
  %3340 = vmatprep.subr.mxu0 %v127
  %3341 = vmatpush1.msra.mxu0 %v126
  %3342 = vmatprep.subr.mxu0 %v123
  %3343 = vmatpush1.msra.mxu0 %v122
  %3344 = vmatprep.subr.mxu0 %v119
  %3345 = vmatpush1.msra.mxu0 %v118
  %3346 = vmatprep.subr.mxu0 %v115
  %3347 = vmatpush1.msra.mxu0 %v114
  %3348 = vmatprep.subr.mxu0 %v111
  %3349 = vmatpush1.msra.mxu0 %v110
  %3350 = vmatprep.subr.mxu0 %v107
  %3351 = vmatpush1.msra.mxu0 %v106
  %3352 = vmatprep.subr.mxu0 %v103
  %3353 = vmatpush1.msra.mxu0 %v102
  %3354 = vmatprep.subr.mxu0 0.0
  %3355 = vmatpush2.msra.mxu0 0.0
  %3356 = vmatprep.subr.mxu0 0.0
  %3357 = vmatpush2.msra.mxu0 0.0
  %3358 = vmatprep.subr.mxu0 0.0
  %3359 = vmatpush2.msra.mxu0 0.0
  %3360 = vmatprep.subr.mxu0 0.0
  %3361 = vmatpush2.msra.mxu0 0.0
  %3362 = vmatprep.subr.mxu0 0.0
  %3363 = vmatpush2.msra.mxu0 0.0
  %3364 = vmatprep.subr.mxu0 0.0
  %3365 = vmatpush2.msra.mxu0 0.0
  %3366 = vmatprep.subr.mxu0 0.0
  %3367 = vmatpush2.msra.mxu0 0.0
  %3368 = vmatprep.subr.mxu0 0.0
  %3369 = vmatpush2.msra.mxu0 0.0
  %3370 = vmatprep.subr.mxu0 0.0
  %3371 = vmatpush2.msra.mxu0 0.0
  %3372 = vmatprep.subr.mxu0 0.0
  %3373 = vmatpush2.msra.mxu0 0.0
  %3374 = vmatprep.subr.mxu0 0.0
  %3375 = vmatpush2.msra.mxu0 0.0
  %3376 = vmatprep.subr.mxu0 0.0
  %3377 = vmatpush2.msra.mxu0 0.0
  %3378 = vmatprep.subr.mxu0 0.0
  %3379 = vmatpush2.msra.mxu0 0.0
  %3380 = vmatprep.subr.mxu0 0.0
  %3381 = vmatpush2.msra.mxu0 0.0
  %3382 = vmatprep.subr.mxu0 0.0
  %3383 = vmatpush2.msra.mxu0 0.0
  %3384 = vmatprep.subr.mxu0 0.0
  %3385 = vmatpush2.msra.mxu0 0.0
  %3386 = vmatprep.mubr.f32.mxu0 0.0
  %3387 = vmatmul.mubr.f32.gmra.mxu0 %v2839
  %v3388 = vpop.f32.mrf.mxu0
  %v3389 = vadd.f32 %v895, %v3388
  %v3390 = vpop.f32.mrf.mxu0
  %v3391 = vadd.f32 %v899, %v3390
  %3392 = vdwg.mxu0
  %3393 = vmatprep.subr.mxu0 %v165
  %3394 = vmatpush1.msra.mxu0 %v164
  %3395 = vmatprep.subr.mxu0 %v161
  %3396 = vmatpush1.msra.mxu0 %v160
  %3397 = vmatprep.subr.mxu0 %v157
  %3398 = vmatpush1.msra.mxu0 %v156
  %3399 = vmatprep.subr.mxu0 %v153
  %3400 = vmatpush1.msra.mxu0 %v152
  %3401 = vmatprep.subr.mxu0 %v149
  %3402 = vmatpush1.msra.mxu0 %v148
  %3403 = vmatprep.subr.mxu0 %v145
  %3404 = vmatpush1.msra.mxu0 %v144
  %3405 = vmatprep.subr.mxu0 %v141
  %3406 = vmatpush1.msra.mxu0 %v140
  %3407 = vmatprep.subr.mxu0 %v137
  %3408 = vmatpush1.msra.mxu0 %v136
  %3409 = vmatprep.subr.mxu0 %v133
  %3410 = vmatpush1.msra.mxu0 %v132
  %3411 = vmatprep.subr.mxu0 %v129
  %3412 = vmatpush1.msra.mxu0 %v128
  %3413 = vmatprep.subr.mxu0 %v125
  %3414 = vmatpush1.msra.mxu0 %v124
  %3415 = vmatprep.subr.mxu0 %v121
  %3416 = vmatpush1.msra.mxu0 %v120
  %3417 = vmatprep.subr.mxu0 %v117
  %3418 = vmatpush1.msra.mxu0 %v116
  %3419 = vmatprep.subr.mxu0 %v113
  %3420 = vmatpush1.msra.mxu0 %v112
  %3421 = vmatprep.subr.mxu0 %v109
  %3422 = vmatpush1.msra.mxu0 %v108
  %3423 = vmatprep.subr.mxu0 %v105
  %3424 = vmatpush1.msra.mxu0 %v104
  %3425 = vmatprep.subr.mxu0 0.0
  %3426 = vmatpush2.msra.mxu0 0.0
  %3427 = vmatprep.subr.mxu0 0.0
  %3428 = vmatpush2.msra.mxu0 0.0
  %3429 = vmatprep.subr.mxu0 0.0
  %3430 = vmatpush2.msra.mxu0 0.0
  %3431 = vmatprep.subr.mxu0 0.0
  %3432 = vmatpush2.msra.mxu0 0.0
  %3433 = vmatprep.subr.mxu0 0.0
  %3434 = vmatpush2.msra.mxu0 0.0
  %3435 = vmatprep.subr.mxu0 0.0
  %3436 = vmatpush2.msra.mxu0 0.0
  %3437 = vmatprep.subr.mxu0 0.0
  %3438 = vmatpush2.msra.mxu0 0.0
  %3439 = vmatprep.subr.mxu0 0.0
  %3440 = vmatpush2.msra.mxu0 0.0
  %3441 = vmatprep.subr.mxu0 0.0
  %3442 = vmatpush2.msra.mxu0 0.0
  %3443 = vmatprep.subr.mxu0 0.0
  %3444 = vmatpush2.msra.mxu0 0.0
  %3445 = vmatprep.subr.mxu0 0.0
  %3446 = vmatpush2.msra.mxu0 0.0
  %3447 = vmatprep.subr.mxu0 0.0
  %3448 = vmatpush2.msra.mxu0 0.0
  %3449 = vmatprep.subr.mxu0 0.0
  %3450 = vmatpush2.msra.mxu0 0.0
  %3451 = vmatprep.subr.mxu0 0.0
  %3452 = vmatpush2.msra.mxu0 0.0
  %3453 = vmatprep.subr.mxu0 0.0
  %3454 = vmatpush2.msra.mxu0 0.0
  %3455 = vmatprep.subr.mxu0 0.0
  %3456 = vmatpush2.msra.mxu0 0.0
  %3457 = vmatprep.mubr.f32.mxu0 0.0
  %3458 = vmatmul.mubr.f32.gmra.mxu0 %v2839
  %v3459 = vpop.f32.mrf.mxu0
  %v3460 = vadd.f32 %v903, %v3459
  %v3461 = vpop.f32.mrf.mxu0
  %v3462 = vadd.f32 %v907, %v3461
  %3463 = vdwg.mxu0
  %3464 = vmatprep.subr.mxu0 %v291
  %3465 = vmatpush1.msra.mxu0 %v290
  %3466 = vmatprep.subr.mxu0 %v287
  %3467 = vmatpush1.msra.mxu0 %v286
  %3468 = vmatprep.subr.mxu0 %v283
  %3469 = vmatpush1.msra.mxu0 %v282
  %3470 = vmatprep.subr.mxu0 %v279
  %3471 = vmatpush1.msra.mxu0 %v278
  %3472 = vmatprep.subr.mxu0 %v275
  %3473 = vmatpush1.msra.mxu0 %v274
  %3474 = vmatprep.subr.mxu0 %v271
  %3475 = vmatpush1.msra.mxu0 %v270
  %3476 = vmatprep.subr.mxu0 %v267
  %3477 = vmatpush1.msra.mxu0 %v266
  %3478 = vmatprep.subr.mxu0 %v263
  %3479 = vmatpush1.msra.mxu0 %v262
  %3480 = vmatprep.subr.mxu0 %v259
  %3481 = vmatpush1.msra.mxu0 %v258
  %3482 = vmatprep.subr.mxu0 %v255
  %3483 = vmatpush1.msra.mxu0 %v254
  %3484 = vmatprep.subr.mxu0 %v251
  %3485 = vmatpush1.msra.mxu0 %v250
  %3486 = vmatprep.subr.mxu0 %v247
  %3487 = vmatpush1.msra.mxu0 %v246
  %3488 = vmatprep.subr.mxu0 %v243
  %3489 = vmatpush1.msra.mxu0 %v242
  %3490 = vmatprep.subr.mxu0 %v239
  %3491 = vmatpush1.msra.mxu0 %v238
  %3492 = vmatprep.subr.mxu0 %v235
  %3493 = vmatpush1.msra.mxu0 %v234
  %3494 = vmatprep.subr.mxu0 %v231
  %3495 = vmatpush1.msra.mxu0 %v230
  %3496 = vmatprep.subr.mxu0 0.0
  %3497 = vmatpush2.msra.mxu0 0.0
  %3498 = vmatprep.subr.mxu0 0.0
  %3499 = vmatpush2.msra.mxu0 0.0
  %3500 = vmatprep.subr.mxu0 0.0
  %3501 = vmatpush2.msra.mxu0 0.0
  %3502 = vmatprep.subr.mxu0 0.0
  %3503 = vmatpush2.msra.mxu0 0.0
  %3504 = vmatprep.subr.mxu0 0.0
  %3505 = vmatpush2.msra.mxu0 0.0
  %3506 = vmatprep.subr.mxu0 0.0
  %3507 = vmatpush2.msra.mxu0 0.0
  %3508 = vmatprep.subr.mxu0 0.0
  %3509 = vmatpush2.msra.mxu0 0.0
  %3510 = vmatprep.subr.mxu0 0.0
  %3511 = vmatpush2.msra.mxu0 0.0
  %3512 = vmatprep.subr.mxu0 0.0
  %3513 = vmatpush2.msra.mxu0 0.0
  %3514 = vmatprep.subr.mxu0 0.0
  %3515 = vmatpush2.msra.mxu0 0.0
  %3516 = vmatprep.subr.mxu0 0.0
  %3517 = vmatpush2.msra.mxu0 0.0
  %3518 = vmatprep.subr.mxu0 0.0
  %3519 = vmatpush2.msra.mxu0 0.0
  %3520 = vmatprep.subr.mxu0 0.0
  %3521 = vmatpush2.msra.mxu0 0.0
  %3522 = vmatprep.subr.mxu0 0.0
  %3523 = vmatpush2.msra.mxu0 0.0
  %3524 = vmatprep.subr.mxu0 0.0
  %3525 = vmatpush2.msra.mxu0 0.0
  %3526 = vmatprep.subr.mxu0 0.0
  %3527 = vmatpush2.msra.mxu0 0.0
  %3528 = vmatprep.mubr.f32.mxu0 0.0
  %3529 = vmatmul.mubr.f32.gmra.mxu0 %v3151
  %v3530 = vpop.f32.mrf.mxu0
  %v3531 = vadd.f32 0.0, %v3530
  %v3532 = vpop.f32.mrf.mxu0
  %v3533 = vadd.f32 0.0, %v3532
  %3534 = vdwg.mxu0
  %3535 = vmatprep.subr.mxu0 %v293
  %3536 = vmatpush1.msra.mxu0 %v292
  %3537 = vmatprep.subr.mxu0 %v289
  %3538 = vmatpush1.msra.mxu0 %v288
  %3539 = vmatprep.subr.mxu0 %v285
  %3540 = vmatpush1.msra.mxu0 %v284
  %3541 = vmatprep.subr.mxu0 %v281
  %3542 = vmatpush1.msra.mxu0 %v280
  %3543 = vmatprep.subr.mxu0 %v277
  %3544 = vmatpush1.msra.mxu0 %v276
  %3545 = vmatprep.subr.mxu0 %v273
  %3546 = vmatpush1.msra.mxu0 %v272
  %3547 = vmatprep.subr.mxu0 %v269
  %3548 = vmatpush1.msra.mxu0 %v268
  %3549 = vmatprep.subr.mxu0 %v265
  %3550 = vmatpush1.msra.mxu0 %v264
  %3551 = vmatprep.subr.mxu0 %v261
  %3552 = vmatpush1.msra.mxu0 %v260
  %3553 = vmatprep.subr.mxu0 %v257
  %3554 = vmatpush1.msra.mxu0 %v256
  %3555 = vmatprep.subr.mxu0 %v253
  %3556 = vmatpush1.msra.mxu0 %v252
  %3557 = vmatprep.subr.mxu0 %v249
  %3558 = vmatpush1.msra.mxu0 %v248
  %3559 = vmatprep.subr.mxu0 %v245
  %3560 = vmatpush1.msra.mxu0 %v244
  %3561 = vmatprep.subr.mxu0 %v241
  %3562 = vmatpush1.msra.mxu0 %v240
  %3563 = vmatprep.subr.mxu0 %v237
  %3564 = vmatpush1.msra.mxu0 %v236
  %3565 = vmatprep.subr.mxu0 %v233
  %3566 = vmatpush1.msra.mxu0 %v232
  %3567 = vmatprep.subr.mxu0 0.0
  %3568 = vmatpush2.msra.mxu0 0.0
  %3569 = vmatprep.subr.mxu0 0.0
  %3570 = vmatpush2.msra.mxu0 0.0
  %3571 = vmatprep.subr.mxu0 0.0
  %3572 = vmatpush2.msra.mxu0 0.0
  %3573 = vmatprep.subr.mxu0 0.0
  %3574 = vmatpush2.msra.mxu0 0.0
  %3575 = vmatprep.subr.mxu0 0.0
  %3576 = vmatpush2.msra.mxu0 0.0
  %3577 = vmatprep.subr.mxu0 0.0
  %3578 = vmatpush2.msra.mxu0 0.0
  %3579 = vmatprep.subr.mxu0 0.0
  %3580 = vmatpush2.msra.mxu0 0.0
  %3581 = vmatprep.subr.mxu0 0.0
  %3582 = vmatpush2.msra.mxu0 0.0
  %3583 = vmatprep.subr.mxu0 0.0
  %3584 = vmatpush2.msra.mxu0 0.0
  %3585 = vmatprep.subr.mxu0 0.0
  %3586 = vmatpush2.msra.mxu0 0.0
  %3587 = vmatprep.subr.mxu0 0.0
  %3588 = vmatpush2.msra.mxu0 0.0
  %3589 = vmatprep.subr.mxu0 0.0
  %3590 = vmatpush2.msra.mxu0 0.0
  %3591 = vmatprep.subr.mxu0 0.0
  %3592 = vmatpush2.msra.mxu0 0.0
  %3593 = vmatprep.subr.mxu0 0.0
  %3594 = vmatpush2.msra.mxu0 0.0
  %3595 = vmatprep.subr.mxu0 0.0
  %3596 = vmatpush2.msra.mxu0 0.0
  %3597 = vmatprep.subr.mxu0 0.0
  %3598 = vmatpush2.msra.mxu0 0.0
  %3599 = vmatprep.mubr.f32.mxu0 0.0
  %3600 = vmatmul.mubr.f32.gmra.mxu0 %v3151
  %v3601 = vpop.f32.mrf.mxu0
  %v3602 = vadd.f32 0.0, %v3601
  %v3603 = vpop.f32.mrf.mxu0
  %v3604 = vadd.f32 0.0, %v3603
  %3605 = vdwg.mxu0
  %v3606 = vadd.f32 %v3389, %v3531
  %v3607 = vadd.f32 %v3391, %v3533
  %v3608 = vadd.f32 %v3460, %v3602
  %v3609 = vadd.f32 %v3462, %v3604
  %v3610 = vxor.u32 %v3606, 2147483648
  %v3611 = vmul.f32 %v3610, 1.442695
  %v3612 = vpow.pop %v3611
  %v3613 = vadd.f32 %v3612, 1.0
  %v3614 = vrcp.pop %v3613
  %v3615 = vmul.f32 1.0, %v3614
  %v3616 = vxor.u32 %v3607, 2147483648
  %v3617 = vmul.f32 %v3616, 1.442695
  %v3618 = vpow.pop %v3617
  %v3619 = vadd.f32 %v3618, 1.0
  %v3620 = vrcp.pop %v3619
  %v3621 = vmul.f32 1.0, %v3620
  %v3622 = vtanh.pop %v3608
  %v3623 = vxor.u32 %v3609, 2147483648
  %v3624 = vmul.f32 %v3623, 1.442695
  %v3625 = vpow.pop %v3624
  %v3626 = vadd.f32 %v3625, 1.0
  %v3627 = vrcp.pop %v3626
  %v3628 = vmul.f32 1.0, %v3627
  %v3629 = vmul.f32 %v3621, %v3149
  %v3630 = vmul.f32 %v3615, %v3622
  %v3631 = vadd.f32 %v3629, %v3630
  %v3632 = vtanh.pop %v3631
  %v3633 = vmul.f32 %v3628, %v3632
  %3634 = vmatprep.subr.mxu0 %v227
  %3635 = vmatpush1.msra.mxu0 %v226
  %3636 = vmatprep.subr.mxu0 %v223
  %3637 = vmatpush1.msra.mxu0 %v222
  %3638 = vmatprep.subr.mxu0 %v219
  %3639 = vmatpush1.msra.mxu0 %v218
  %3640 = vmatprep.subr.mxu0 %v215
  %3641 = vmatpush1.msra.mxu0 %v214
  %3642 = vmatprep.subr.mxu0 %v211
  %3643 = vmatpush1.msra.mxu0 %v210
  %3644 = vmatprep.subr.mxu0 %v207
  %3645 = vmatpush1.msra.mxu0 %v206
  %3646 = vmatprep.subr.mxu0 %v203
  %3647 = vmatpush1.msra.mxu0 %v202
  %3648 = vmatprep.subr.mxu0 %v199
  %3649 = vmatpush1.msra.mxu0 %v198
  %3650 = vmatprep.subr.mxu0 %v195
  %3651 = vmatpush1.msra.mxu0 %v194
  %3652 = vmatprep.subr.mxu0 %v191
  %3653 = vmatpush1.msra.mxu0 %v190
  %3654 = vmatprep.subr.mxu0 %v187
  %3655 = vmatpush1.msra.mxu0 %v186
  %3656 = vmatprep.subr.mxu0 %v183
  %3657 = vmatpush1.msra.mxu0 %v182
  %3658 = vmatprep.subr.mxu0 %v179
  %3659 = vmatpush1.msra.mxu0 %v178
  %3660 = vmatprep.subr.mxu0 %v175
  %3661 = vmatpush1.msra.mxu0 %v174
  %3662 = vmatprep.subr.mxu0 %v171
  %3663 = vmatpush1.msra.mxu0 %v170
  %3664 = vmatprep.subr.mxu0 %v167
  %3665 = vmatpush1.msra.mxu0 %v166
  %3666 = vmatprep.subr.mxu0 0.0
  %3667 = vmatpush2.msra.mxu0 0.0
  %3668 = vmatprep.subr.mxu0 0.0
  %3669 = vmatpush2.msra.mxu0 0.0
  %3670 = vmatprep.subr.mxu0 0.0
  %3671 = vmatpush2.msra.mxu0 0.0
  %3672 = vmatprep.subr.mxu0 0.0
  %3673 = vmatpush2.msra.mxu0 0.0
  %3674 = vmatprep.subr.mxu0 0.0
  %3675 = vmatpush2.msra.mxu0 0.0
  %3676 = vmatprep.subr.mxu0 0.0
  %3677 = vmatpush2.msra.mxu0 0.0
  %3678 = vmatprep.subr.mxu0 0.0
  %3679 = vmatpush2.msra.mxu0 0.0
  %3680 = vmatprep.subr.mxu0 0.0
  %3681 = vmatpush2.msra.mxu0 0.0
  %3682 = vmatprep.subr.mxu0 0.0
  %3683 = vmatpush2.msra.mxu0 0.0
  %3684 = vmatprep.subr.mxu0 0.0
  %3685 = vmatpush2.msra.mxu0 0.0
  %3686 = vmatprep.subr.mxu0 0.0
  %3687 = vmatpush2.msra.mxu0 0.0
  %3688 = vmatprep.subr.mxu0 0.0
  %3689 = vmatpush2.msra.mxu0 0.0
  %3690 = vmatprep.subr.mxu0 0.0
  %3691 = vmatpush2.msra.mxu0 0.0
  %3692 = vmatprep.subr.mxu0 0.0
  %3693 = vmatpush2.msra.mxu0 0.0
  %3694 = vmatprep.subr.mxu0 0.0
  %3695 = vmatpush2.msra.mxu0 0.0
  %3696 = vmatprep.subr.mxu0 0.0
  %3697 = vmatpush2.msra.mxu0 0.0
  %3698 = vmatprep.mubr.f32.mxu0 0.0
  %3699 = vmatmul.mubr.f32.gmra.mxu0 %v3321
  %v3700 = vpop.f32.mrf.mxu0
  %v3701 = vadd.f32 0.0, %v3700
  %v3702 = vpop.f32.mrf.mxu0
  %v3703 = vadd.f32 0.0, %v3702
  %3704 = vdwg.mxu0
  %3705 = vmatprep.subr.mxu0 %v229
  %3706 = vmatpush1.msra.mxu0 %v228
  %3707 = vmatprep.subr.mxu0 %v225
  %3708 = vmatpush1.msra.mxu0 %v224
  %3709 = vmatprep.subr.mxu0 %v221
  %3710 = vmatpush1.msra.mxu0 %v220
  %3711 = vmatprep.subr.mxu0 %v217
  %3712 = vmatpush1.msra.mxu0 %v216
  %3713 = vmatprep.subr.mxu0 %v213
  %3714 = vmatpush1.msra.mxu0 %v212
  %3715 = vmatprep.subr.mxu0 %v209
  %3716 = vmatpush1.msra.mxu0 %v208
  %3717 = vmatprep.subr.mxu0 %v205
  %3718 = vmatpush1.msra.mxu0 %v204
  %3719 = vmatprep.subr.mxu0 %v201
  %3720 = vmatpush1.msra.mxu0 %v200
  %3721 = vmatprep.subr.mxu0 %v197
  %3722 = vmatpush1.msra.mxu0 %v196
  %3723 = vmatprep.subr.mxu0 %v193
  %3724 = vmatpush1.msra.mxu0 %v192
  %3725 = vmatprep.subr.mxu0 %v189
  %3726 = vmatpush1.msra.mxu0 %v188
  %3727 = vmatprep.subr.mxu0 %v185
  %3728 = vmatpush1.msra.mxu0 %v184
  %3729 = vmatprep.subr.mxu0 %v181
  %3730 = vmatpush1.msra.mxu0 %v180
  %3731 = vmatprep.subr.mxu0 %v177
  %3732 = vmatpush1.msra.mxu0 %v176
  %3733 = vmatprep.subr.mxu0 %v173
  %3734 = vmatpush1.msra.mxu0 %v172
  %3735 = vmatprep.subr.mxu0 %v169
  %3736 = vmatpush1.msra.mxu0 %v168
  %3737 = vmatprep.subr.mxu0 0.0
  %3738 = vmatpush2.msra.mxu0 0.0
  %3739 = vmatprep.subr.mxu0 0.0
  %3740 = vmatpush2.msra.mxu0 0.0
  %3741 = vmatprep.subr.mxu0 0.0
  %3742 = vmatpush2.msra.mxu0 0.0
  %3743 = vmatprep.subr.mxu0 0.0
  %3744 = vmatpush2.msra.mxu0 0.0
  %3745 = vmatprep.subr.mxu0 0.0
  %3746 = vmatpush2.msra.mxu0 0.0
  %3747 = vmatprep.subr.mxu0 0.0
  %3748 = vmatpush2.msra.mxu0 0.0
  %3749 = vmatprep.subr.mxu0 0.0
  %3750 = vmatpush2.msra.mxu0 0.0
  %3751 = vmatprep.subr.mxu0 0.0
  %3752 = vmatpush2.msra.mxu0 0.0
  %3753 = vmatprep.subr.mxu0 0.0
  %3754 = vmatpush2.msra.mxu0 0.0
  %3755 = vmatprep.subr.mxu0 0.0
  %3756 = vmatpush2.msra.mxu0 0.0
  %3757 = vmatprep.subr.mxu0 0.0
  %3758 = vmatpush2.msra.mxu0 0.0
  %3759 = vmatprep.subr.mxu0 0.0
  %3760 = vmatpush2.msra.mxu0 0.0
  %3761 = vmatprep.subr.mxu0 0.0
  %3762 = vmatpush2.msra.mxu0 0.0
  %3763 = vmatprep.subr.mxu0 0.0
  %3764 = vmatpush2.msra.mxu0 0.0
  %3765 = vmatprep.subr.mxu0 0.0
  %3766 = vmatpush2.msra.mxu0 0.0
  %3767 = vmatprep.subr.mxu0 0.0
  %3768 = vmatpush2.msra.mxu0 0.0
  %3769 = vmatprep.mubr.f32.mxu0 0.0
  %3770 = vmatmul.mubr.f32.gmra.mxu0 %v3321
  %v3771 = vpop.f32.mrf.mxu0
  %v3772 = vadd.f32 0.0, %v3771
  %v3773 = vpop.f32.mrf.mxu0
  %v3774 = vadd.f32 0.0, %v3773
  %3775 = vdwg.mxu0
  %v3776 = vadd.f32 %v434, %v3701
  %v3777 = vadd.f32 %v436, %v3703
  %v3778 = vadd.f32 %v547, %v3772
  %v3779 = vadd.f32 %v549, %v3774
  %v3780 = vxor.u32 %v3776, 2147483648
  %v3781 = vmul.f32 %v3780, 1.442695
  %v3782 = vpow.pop %v3781
  %v3783 = vadd.f32 %v3782, 1.0
  %v3784 = vrcp.pop %v3783
  %v3785 = vmul.f32 1.0, %v3784
  %v3786 = vxor.u32 %v3777, 2147483648
  %v3787 = vmul.f32 %v3786, 1.442695
  %v3788 = vpow.pop %v3787
  %v3789 = vadd.f32 %v3788, 1.0
  %v3790 = vrcp.pop %v3789
  %v3791 = vmul.f32 1.0, %v3790
  %v3792 = vtanh.pop %v3778
  %v3793 = vxor.u32 %v3779, 2147483648
  %v3794 = vmul.f32 %v3793, 1.442695
  %v3795 = vpow.pop %v3794
  %v3796 = vadd.f32 %v3795, 1.0
  %v3797 = vrcp.pop %v3796
  %v3798 = vmul.f32 1.0, %v3797
  %v3799 = vmul.f32 %v3791, %v3319
  %v3800 = vmul.f32 %v3785, %v3792
  %v3801 = vadd.f32 %v3799, %v3800
  %v3802 = vtanh.pop %v3801
  %v3803 = vmul.f32 %v3798, %v3802
  %3804 = vmatprep.subr.mxu0 %v163
  %3805 = vmatpush1.msra.mxu0 %v162
  %3806 = vmatprep.subr.mxu0 %v159
  %3807 = vmatpush1.msra.mxu0 %v158
  %3808 = vmatprep.subr.mxu0 %v155
  %3809 = vmatpush1.msra.mxu0 %v154
  %3810 = vmatprep.subr.mxu0 %v151
  %3811 = vmatpush1.msra.mxu0 %v150
  %3812 = vmatprep.subr.mxu0 %v147
  %3813 = vmatpush1.msra.mxu0 %v146
  %3814 = vmatprep.subr.mxu0 %v143
  %3815 = vmatpush1.msra.mxu0 %v142
  %3816 = vmatprep.subr.mxu0 %v139
  %3817 = vmatpush1.msra.mxu0 %v138
  %3818 = vmatprep.subr.mxu0 %v135
  %3819 = vmatpush1.msra.mxu0 %v134
  %3820 = vmatprep.subr.mxu0 %v131
  %3821 = vmatpush1.msra.mxu0 %v130
  %3822 = vmatprep.subr.mxu0 %v127
  %3823 = vmatpush1.msra.mxu0 %v126
  %3824 = vmatprep.subr.mxu0 %v123
  %3825 = vmatpush1.msra.mxu0 %v122
  %3826 = vmatprep.subr.mxu0 %v119
  %3827 = vmatpush1.msra.mxu0 %v118
  %3828 = vmatprep.subr.mxu0 %v115
  %3829 = vmatpush1.msra.mxu0 %v114
  %3830 = vmatprep.subr.mxu0 %v111
  %3831 = vmatpush1.msra.mxu0 %v110
  %3832 = vmatprep.subr.mxu0 %v107
  %3833 = vmatpush1.msra.mxu0 %v106
  %3834 = vmatprep.subr.mxu0 %v103
  %3835 = vmatpush1.msra.mxu0 %v102
  %3836 = vmatprep.subr.mxu0 0.0
  %3837 = vmatpush2.msra.mxu0 0.0
  %3838 = vmatprep.subr.mxu0 0.0
  %3839 = vmatpush2.msra.mxu0 0.0
  %3840 = vmatprep.subr.mxu0 0.0
  %3841 = vmatpush2.msra.mxu0 0.0
  %3842 = vmatprep.subr.mxu0 0.0
  %3843 = vmatpush2.msra.mxu0 0.0
  %3844 = vmatprep.subr.mxu0 0.0
  %3845 = vmatpush2.msra.mxu0 0.0
  %3846 = vmatprep.subr.mxu0 0.0
  %3847 = vmatpush2.msra.mxu0 0.0
  %3848 = vmatprep.subr.mxu0 0.0
  %3849 = vmatpush2.msra.mxu0 0.0
  %3850 = vmatprep.subr.mxu0 0.0
  %3851 = vmatpush2.msra.mxu0 0.0
  %3852 = vmatprep.subr.mxu0 0.0
  %3853 = vmatpush2.msra.mxu0 0.0
  %3854 = vmatprep.subr.mxu0 0.0
  %3855 = vmatpush2.msra.mxu0 0.0
  %3856 = vmatprep.subr.mxu0 0.0
  %3857 = vmatpush2.msra.mxu0 0.0
  %3858 = vmatprep.subr.mxu0 0.0
  %3859 = vmatpush2.msra.mxu0 0.0
  %3860 = vmatprep.subr.mxu0 0.0
  %3861 = vmatpush2.msra.mxu0 0.0
  %3862 = vmatprep.subr.mxu0 0.0
  %3863 = vmatpush2.msra.mxu0 0.0
  %3864 = vmatprep.subr.mxu0 0.0
  %3865 = vmatpush2.msra.mxu0 0.0
  %3866 = vmatprep.subr.mxu0 0.0
  %3867 = vmatpush2.msra.mxu0 0.0
  %3868 = vmatprep.mubr.f32.mxu0 0.0
  %3869 = vmatmul.mubr.f32.gmra.mxu0 %v3321
  %v3870 = vpop.f32.mrf.mxu0
  %v3871 = vadd.f32 %v895, %v3870
  %v3872 = vpop.f32.mrf.mxu0
  %v3873 = vadd.f32 %v899, %v3872
  %3874 = vdwg.mxu0
  %3875 = vmatprep.subr.mxu0 %v165
  %3876 = vmatpush1.msra.mxu0 %v164
  %3877 = vmatprep.subr.mxu0 %v161
  %3878 = vmatpush1.msra.mxu0 %v160
  %3879 = vmatprep.subr.mxu0 %v157
  %3880 = vmatpush1.msra.mxu0 %v156
  %3881 = vmatprep.subr.mxu0 %v153
  %3882 = vmatpush1.msra.mxu0 %v152
  %3883 = vmatprep.subr.mxu0 %v149
  %3884 = vmatpush1.msra.mxu0 %v148
  %3885 = vmatprep.subr.mxu0 %v145
  %3886 = vmatpush1.msra.mxu0 %v144
  %3887 = vmatprep.subr.mxu0 %v141
  %3888 = vmatpush1.msra.mxu0 %v140
  %3889 = vmatprep.subr.mxu0 %v137
  %3890 = vmatpush1.msra.mxu0 %v136
  %3891 = vmatprep.subr.mxu0 %v133
  %3892 = vmatpush1.msra.mxu0 %v132
  %3893 = vmatprep.subr.mxu0 %v129
  %3894 = vmatpush1.msra.mxu0 %v128
  %3895 = vmatprep.subr.mxu0 %v125
  %3896 = vmatpush1.msra.mxu0 %v124
  %3897 = vmatprep.subr.mxu0 %v121
  %3898 = vmatpush1.msra.mxu0 %v120
  %3899 = vmatprep.subr.mxu0 %v117
  %3900 = vmatpush1.msra.mxu0 %v116
  %3901 = vmatprep.subr.mxu0 %v113
  %3902 = vmatpush1.msra.mxu0 %v112
  %3903 = vmatprep.subr.mxu0 %v109
  %3904 = vmatpush1.msra.mxu0 %v108
  %3905 = vmatprep.subr.mxu0 %v105
  %3906 = vmatpush1.msra.mxu0 %v104
  %3907 = vmatprep.subr.mxu0 0.0
  %3908 = vmatpush2.msra.mxu0 0.0
  %3909 = vmatprep.subr.mxu0 0.0
  %3910 = vmatpush2.msra.mxu0 0.0
  %3911 = vmatprep.subr.mxu0 0.0
  %3912 = vmatpush2.msra.mxu0 0.0
  %3913 = vmatprep.subr.mxu0 0.0
  %3914 = vmatpush2.msra.mxu0 0.0
  %3915 = vmatprep.subr.mxu0 0.0
  %3916 = vmatpush2.msra.mxu0 0.0
  %3917 = vmatprep.subr.mxu0 0.0
  %3918 = vmatpush2.msra.mxu0 0.0
  %3919 = vmatprep.subr.mxu0 0.0
  %3920 = vmatpush2.msra.mxu0 0.0
  %3921 = vmatprep.subr.mxu0 0.0
  %3922 = vmatpush2.msra.mxu0 0.0
  %3923 = vmatprep.subr.mxu0 0.0
  %3924 = vmatpush2.msra.mxu0 0.0
  %3925 = vmatprep.subr.mxu0 0.0
  %3926 = vmatpush2.msra.mxu0 0.0
  %3927 = vmatprep.subr.mxu0 0.0
  %3928 = vmatpush2.msra.mxu0 0.0
  %3929 = vmatprep.subr.mxu0 0.0
  %3930 = vmatpush2.msra.mxu0 0.0
  %3931 = vmatprep.subr.mxu0 0.0
  %3932 = vmatpush2.msra.mxu0 0.0
  %3933 = vmatprep.subr.mxu0 0.0
  %3934 = vmatpush2.msra.mxu0 0.0
  %3935 = vmatprep.subr.mxu0 0.0
  %3936 = vmatpush2.msra.mxu0 0.0
  %3937 = vmatprep.subr.mxu0 0.0
  %3938 = vmatpush2.msra.mxu0 0.0
  %3939 = vmatprep.mubr.f32.mxu0 0.0
  %3940 = vmatmul.mubr.f32.gmra.mxu0 %v3321
  %v3941 = vpop.f32.mrf.mxu0
  %v3942 = vadd.f32 %v903, %v3941
  %v3943 = vpop.f32.mrf.mxu0
  %v3944 = vadd.f32 %v907, %v3943
  %3945 = vdwg.mxu0
  %3946 = vmatprep.subr.mxu0 %v291
  %3947 = vmatpush1.msra.mxu0 %v290
  %3948 = vmatprep.subr.mxu0 %v287
  %3949 = vmatpush1.msra.mxu0 %v286
  %3950 = vmatprep.subr.mxu0 %v283
  %3951 = vmatpush1.msra.mxu0 %v282
  %3952 = vmatprep.subr.mxu0 %v279
  %3953 = vmatpush1.msra.mxu0 %v278
  %3954 = vmatprep.subr.mxu0 %v275
  %3955 = vmatpush1.msra.mxu0 %v274
  %3956 = vmatprep.subr.mxu0 %v271
  %3957 = vmatpush1.msra.mxu0 %v270
  %3958 = vmatprep.subr.mxu0 %v267
  %3959 = vmatpush1.msra.mxu0 %v266
  %3960 = vmatprep.subr.mxu0 %v263
  %3961 = vmatpush1.msra.mxu0 %v262
  %3962 = vmatprep.subr.mxu0 %v259
  %3963 = vmatpush1.msra.mxu0 %v258
  %3964 = vmatprep.subr.mxu0 %v255
  %3965 = vmatpush1.msra.mxu0 %v254
  %3966 = vmatprep.subr.mxu0 %v251
  %3967 = vmatpush1.msra.mxu0 %v250
  %3968 = vmatprep.subr.mxu0 %v247
  %3969 = vmatpush1.msra.mxu0 %v246
  %3970 = vmatprep.subr.mxu0 %v243
  %3971 = vmatpush1.msra.mxu0 %v242
  %3972 = vmatprep.subr.mxu0 %v239
  %3973 = vmatpush1.msra.mxu0 %v238
  %3974 = vmatprep.subr.mxu0 %v235
  %3975 = vmatpush1.msra.mxu0 %v234
  %3976 = vmatprep.subr.mxu0 %v231
  %3977 = vmatpush1.msra.mxu0 %v230
  %3978 = vmatprep.subr.mxu0 0.0
  %3979 = vmatpush2.msra.mxu0 0.0
  %3980 = vmatprep.subr.mxu0 0.0
  %3981 = vmatpush2.msra.mxu0 0.0
  %3982 = vmatprep.subr.mxu0 0.0
  %3983 = vmatpush2.msra.mxu0 0.0
  %3984 = vmatprep.subr.mxu0 0.0
  %3985 = vmatpush2.msra.mxu0 0.0
  %3986 = vmatprep.subr.mxu0 0.0
  %3987 = vmatpush2.msra.mxu0 0.0
  %3988 = vmatprep.subr.mxu0 0.0
  %3989 = vmatpush2.msra.mxu0 0.0
  %3990 = vmatprep.subr.mxu0 0.0
  %3991 = vmatpush2.msra.mxu0 0.0
  %3992 = vmatprep.subr.mxu0 0.0
  %3993 = vmatpush2.msra.mxu0 0.0
  %3994 = vmatprep.subr.mxu0 0.0
  %3995 = vmatpush2.msra.mxu0 0.0
  %3996 = vmatprep.subr.mxu0 0.0
  %3997 = vmatpush2.msra.mxu0 0.0
  %3998 = vmatprep.subr.mxu0 0.0
  %3999 = vmatpush2.msra.mxu0 0.0
  %4000 = vmatprep.subr.mxu0 0.0
  %4001 = vmatpush2.msra.mxu0 0.0
  %4002 = vmatprep.subr.mxu0 0.0
  %4003 = vmatpush2.msra.mxu0 0.0
  %4004 = vmatprep.subr.mxu0 0.0
  %4005 = vmatpush2.msra.mxu0 0.0
  %4006 = vmatprep.subr.mxu0 0.0
  %4007 = vmatpush2.msra.mxu0 0.0
  %4008 = vmatprep.subr.mxu0 0.0
  %4009 = vmatpush2.msra.mxu0 0.0
  %4010 = vmatprep.mubr.f32.mxu0 0.0
  %4011 = vmatmul.mubr.f32.gmra.mxu0 %v3633
  %v4012 = vpop.f32.mrf.mxu0
  %v4013 = vadd.f32 0.0, %v4012
  %v4014 = vpop.f32.mrf.mxu0
  %v4015 = vadd.f32 0.0, %v4014
  %4016 = vdwg.mxu0
  %4017 = vmatprep.subr.mxu0 %v293
  %4018 = vmatpush1.msra.mxu0 %v292
  %4019 = vmatprep.subr.mxu0 %v289
  %4020 = vmatpush1.msra.mxu0 %v288
  %4021 = vmatprep.subr.mxu0 %v285
  %4022 = vmatpush1.msra.mxu0 %v284
  %4023 = vmatprep.subr.mxu0 %v281
  %4024 = vmatpush1.msra.mxu0 %v280
  %4025 = vmatprep.subr.mxu0 %v277
  %4026 = vmatpush1.msra.mxu0 %v276
  %4027 = vmatprep.subr.mxu0 %v273
  %4028 = vmatpush1.msra.mxu0 %v272
  %4029 = vmatprep.subr.mxu0 %v269
  %4030 = vmatpush1.msra.mxu0 %v268
  %4031 = vmatprep.subr.mxu0 %v265
  %4032 = vmatpush1.msra.mxu0 %v264
  %4033 = vmatprep.subr.mxu0 %v261
  %4034 = vmatpush1.msra.mxu0 %v260
  %4035 = vmatprep.subr.mxu0 %v257
  %4036 = vmatpush1.msra.mxu0 %v256
  %4037 = vmatprep.subr.mxu0 %v253
  %4038 = vmatpush1.msra.mxu0 %v252
  %4039 = vmatprep.subr.mxu0 %v249
  %4040 = vmatpush1.msra.mxu0 %v248
  %4041 = vmatprep.subr.mxu0 %v245
  %4042 = vmatpush1.msra.mxu0 %v244
  %4043 = vmatprep.subr.mxu0 %v241
  %4044 = vmatpush1.msra.mxu0 %v240
  %4045 = vmatprep.subr.mxu0 %v237
  %4046 = vmatpush1.msra.mxu0 %v236
  %4047 = vmatprep.subr.mxu0 %v233
  %4048 = vmatpush1.msra.mxu0 %v232
  %4049 = vmatprep.subr.mxu0 0.0
  %4050 = vmatpush2.msra.mxu0 0.0
  %4051 = vmatprep.subr.mxu0 0.0
  %4052 = vmatpush2.msra.mxu0 0.0
  %4053 = vmatprep.subr.mxu0 0.0
  %4054 = vmatpush2.msra.mxu0 0.0
  %4055 = vmatprep.subr.mxu0 0.0
  %4056 = vmatpush2.msra.mxu0 0.0
  %4057 = vmatprep.subr.mxu0 0.0
  %4058 = vmatpush2.msra.mxu0 0.0
  %4059 = vmatprep.subr.mxu0 0.0
  %4060 = vmatpush2.msra.mxu0 0.0
  %4061 = vmatprep.subr.mxu0 0.0
  %4062 = vmatpush2.msra.mxu0 0.0
  %4063 = vmatprep.subr.mxu0 0.0
  %4064 = vmatpush2.msra.mxu0 0.0
  %4065 = vmatprep.subr.mxu0 0.0
  %4066 = vmatpush2.msra.mxu0 0.0
  %4067 = vmatprep.subr.mxu0 0.0
  %4068 = vmatpush2.msra.mxu0 0.0
  %4069 = vmatprep.subr.mxu0 0.0
  %4070 = vmatpush2.msra.mxu0 0.0
  %4071 = vmatprep.subr.mxu0 0.0
  %4072 = vmatpush2.msra.mxu0 0.0
  %4073 = vmatprep.subr.mxu0 0.0
  %4074 = vmatpush2.msra.mxu0 0.0
  %4075 = vmatprep.subr.mxu0 0.0
  %4076 = vmatpush2.msra.mxu0 0.0
  %4077 = vmatprep.subr.mxu0 0.0
  %4078 = vmatpush2.msra.mxu0 0.0
  %4079 = vmatprep.subr.mxu0 0.0
  %4080 = vmatpush2.msra.mxu0 0.0
  %4081 = vmatprep.mubr.f32.mxu0 0.0
  %4082 = vmatmul.mubr.f32.gmra.mxu0 %v3633
  %v4083 = vpop.f32.mrf.mxu0
  %v4084 = vadd.f32 0.0, %v4083
  %v4085 = vpop.f32.mrf.mxu0
  %v4086 = vadd.f32 0.0, %v4085
  %4087 = vdwg.mxu0
  %v4088 = vadd.f32 %v3871, %v4013
  %v4089 = vadd.f32 %v3873, %v4015
  %v4090 = vadd.f32 %v3942, %v4084
  %v4091 = vadd.f32 %v3944, %v4086
  %v4092 = vxor.u32 %v4088, 2147483648
  %v4093 = vmul.f32 %v4092, 1.442695
  %v4094 = vpow.pop %v4093
  %v4095 = vadd.f32 %v4094, 1.0
  %v4096 = vrcp.pop %v4095
  %v4097 = vmul.f32 1.0, %v4096
  %v4098 = vxor.u32 %v4089, 2147483648
  %v4099 = vmul.f32 %v4098, 1.442695
  %v4100 = vpow.pop %v4099
  %v4101 = vadd.f32 %v4100, 1.0
  %v4102 = vrcp.pop %v4101
  %v4103 = vmul.f32 1.0, %v4102
  %v4104 = vtanh.pop %v4090
  %v4105 = vxor.u32 %v4091, 2147483648
  %v4106 = vmul.f32 %v4105, 1.442695
  %v4107 = vpow.pop %v4106
  %v4108 = vadd.f32 %v4107, 1.0
  %v4109 = vrcp.pop %v4108
  %v4110 = vmul.f32 1.0, %v4109
  %v4111 = vmul.f32 %v4103, %v3631
  %v4112 = vmul.f32 %v4097, %v4104
  %v4113 = vadd.f32 %v4111, %v4112
  %v4114 = vtanh.pop %v4113
  %v4115 = vmul.f32 %v4110, %v4114
  %4116 = vmatprep.subr.mxu0 %v163
  %4117 = vmatpush1.msra.mxu0 %v162
  %4118 = vmatprep.subr.mxu0 %v159
  %4119 = vmatpush1.msra.mxu0 %v158
  %4120 = vmatprep.subr.mxu0 %v155
  %4121 = vmatpush1.msra.mxu0 %v154
  %4122 = vmatprep.subr.mxu0 %v151
  %4123 = vmatpush1.msra.mxu0 %v150
  %4124 = vmatprep.subr.mxu0 %v147
  %4125 = vmatpush1.msra.mxu0 %v146
  %4126 = vmatprep.subr.mxu0 %v143
  %4127 = vmatpush1.msra.mxu0 %v142
  %4128 = vmatprep.subr.mxu0 %v139
  %4129 = vmatpush1.msra.mxu0 %v138
  %4130 = vmatprep.subr.mxu0 %v135
  %4131 = vmatpush1.msra.mxu0 %v134
  %4132 = vmatprep.subr.mxu0 %v131
  %4133 = vmatpush1.msra.mxu0 %v130
  %4134 = vmatprep.subr.mxu0 %v127
  %4135 = vmatpush1.msra.mxu0 %v126
  %4136 = vmatprep.subr.mxu0 %v123
  %4137 = vmatpush1.msra.mxu0 %v122
  %4138 = vmatprep.subr.mxu0 %v119
  %4139 = vmatpush1.msra.mxu0 %v118
  %4140 = vmatprep.subr.mxu0 %v115
  %4141 = vmatpush1.msra.mxu0 %v114
  %4142 = vmatprep.subr.mxu0 %v111
  %4143 = vmatpush1.msra.mxu0 %v110
  %4144 = vmatprep.subr.mxu0 %v107
  %4145 = vmatpush1.msra.mxu0 %v106
  %4146 = vmatprep.subr.mxu0 %v103
  %4147 = vmatpush1.msra.mxu0 %v102
  %4148 = vmatprep.subr.mxu0 0.0
  %4149 = vmatpush2.msra.mxu0 0.0
  %4150 = vmatprep.subr.mxu0 0.0
  %4151 = vmatpush2.msra.mxu0 0.0
  %4152 = vmatprep.subr.mxu0 0.0
  %4153 = vmatpush2.msra.mxu0 0.0
  %4154 = vmatprep.subr.mxu0 0.0
  %4155 = vmatpush2.msra.mxu0 0.0
  %4156 = vmatprep.subr.mxu0 0.0
  %4157 = vmatpush2.msra.mxu0 0.0
  %4158 = vmatprep.subr.mxu0 0.0
  %4159 = vmatpush2.msra.mxu0 0.0
  %4160 = vmatprep.subr.mxu0 0.0
  %4161 = vmatpush2.msra.mxu0 0.0
  %4162 = vmatprep.subr.mxu0 0.0
  %4163 = vmatpush2.msra.mxu0 0.0
  %4164 = vmatprep.subr.mxu0 0.0
  %4165 = vmatpush2.msra.mxu0 0.0
  %4166 = vmatprep.subr.mxu0 0.0
  %4167 = vmatpush2.msra.mxu0 0.0
  %4168 = vmatprep.subr.mxu0 0.0
  %4169 = vmatpush2.msra.mxu0 0.0
  %4170 = vmatprep.subr.mxu0 0.0
  %4171 = vmatpush2.msra.mxu0 0.0
  %4172 = vmatprep.subr.mxu0 0.0
  %4173 = vmatpush2.msra.mxu0 0.0
  %4174 = vmatprep.subr.mxu0 0.0
  %4175 = vmatpush2.msra.mxu0 0.0
  %4176 = vmatprep.subr.mxu0 0.0
  %4177 = vmatpush2.msra.mxu0 0.0
  %4178 = vmatprep.subr.mxu0 0.0
  %4179 = vmatpush2.msra.mxu0 0.0
  %4180 = vmatprep.mubr.f32.mxu0 0.0
  %4181 = vmatmul.mubr.f32.gmra.mxu0 %v3803
  %v4182 = vpop.f32.mrf.mxu0
  %v4183 = vadd.f32 %v895, %v4182
  %v4184 = vpop.f32.mrf.mxu0
  %v4185 = vadd.f32 %v899, %v4184
  %4186 = vdwg.mxu0
  %4187 = vmatprep.subr.mxu0 %v165
  %4188 = vmatpush1.msra.mxu0 %v164
  %4189 = vmatprep.subr.mxu0 %v161
  %4190 = vmatpush1.msra.mxu0 %v160
  %4191 = vmatprep.subr.mxu0 %v157
  %4192 = vmatpush1.msra.mxu0 %v156
  %4193 = vmatprep.subr.mxu0 %v153
  %4194 = vmatpush1.msra.mxu0 %v152
  %4195 = vmatprep.subr.mxu0 %v149
  %4196 = vmatpush1.msra.mxu0 %v148
  %4197 = vmatprep.subr.mxu0 %v145
  %4198 = vmatpush1.msra.mxu0 %v144
  %4199 = vmatprep.subr.mxu0 %v141
  %4200 = vmatpush1.msra.mxu0 %v140
  %4201 = vmatprep.subr.mxu0 %v137
  %4202 = vmatpush1.msra.mxu0 %v136
  %4203 = vmatprep.subr.mxu0 %v133
  %4204 = vmatpush1.msra.mxu0 %v132
  %4205 = vmatprep.subr.mxu0 %v129
  %4206 = vmatpush1.msra.mxu0 %v128
  %4207 = vmatprep.subr.mxu0 %v125
  %4208 = vmatpush1.msra.mxu0 %v124
  %4209 = vmatprep.subr.mxu0 %v121
  %4210 = vmatpush1.msra.mxu0 %v120
  %4211 = vmatprep.subr.mxu0 %v117
  %4212 = vmatpush1.msra.mxu0 %v116
  %4213 = vmatprep.subr.mxu0 %v113
  %4214 = vmatpush1.msra.mxu0 %v112
  %4215 = vmatprep.subr.mxu0 %v109
  %4216 = vmatpush1.msra.mxu0 %v108
  %4217 = vmatprep.subr.mxu0 %v105
  %4218 = vmatpush1.msra.mxu0 %v104
  %4219 = vmatprep.subr.mxu0 0.0
  %4220 = vmatpush2.msra.mxu0 0.0
  %4221 = vmatprep.subr.mxu0 0.0
  %4222 = vmatpush2.msra.mxu0 0.0
  %4223 = vmatprep.subr.mxu0 0.0
  %4224 = vmatpush2.msra.mxu0 0.0
  %4225 = vmatprep.subr.mxu0 0.0
  %4226 = vmatpush2.msra.mxu0 0.0
  %4227 = vmatprep.subr.mxu0 0.0
  %4228 = vmatpush2.msra.mxu0 0.0
  %4229 = vmatprep.subr.mxu0 0.0
  %4230 = vmatpush2.msra.mxu0 0.0
  %4231 = vmatprep.subr.mxu0 0.0
  %4232 = vmatpush2.msra.mxu0 0.0
  %4233 = vmatprep.subr.mxu0 0.0
  %4234 = vmatpush2.msra.mxu0 0.0
  %4235 = vmatprep.subr.mxu0 0.0
  %4236 = vmatpush2.msra.mxu0 0.0
  %4237 = vmatprep.subr.mxu0 0.0
  %4238 = vmatpush2.msra.mxu0 0.0
  %4239 = vmatprep.subr.mxu0 0.0
  %4240 = vmatpush2.msra.mxu0 0.0
  %4241 = vmatprep.subr.mxu0 0.0
  %4242 = vmatpush2.msra.mxu0 0.0
  %4243 = vmatprep.subr.mxu0 0.0
  %4244 = vmatpush2.msra.mxu0 0.0
  %4245 = vmatprep.subr.mxu0 0.0
  %4246 = vmatpush2.msra.mxu0 0.0
  %4247 = vmatprep.subr.mxu0 0.0
  %4248 = vmatpush2.msra.mxu0 0.0
  %4249 = vmatprep.subr.mxu0 0.0
  %4250 = vmatpush2.msra.mxu0 0.0
  %4251 = vmatprep.mubr.f32.mxu0 0.0
  %4252 = vmatmul.mubr.f32.gmra.mxu0 %v3803
  %v4253 = vpop.f32.mrf.mxu0
  %v4254 = vadd.f32 %v903, %v4253
  %v4255 = vpop.f32.mrf.mxu0
  %v4256 = vadd.f32 %v907, %v4255
  %4257 = vdwg.mxu0
  %4258 = vmatprep.subr.mxu0 %v291
  %4259 = vmatpush1.msra.mxu0 %v290
  %4260 = vmatprep.subr.mxu0 %v287
  %4261 = vmatpush1.msra.mxu0 %v286
  %4262 = vmatprep.subr.mxu0 %v283
  %4263 = vmatpush1.msra.mxu0 %v282
  %4264 = vmatprep.subr.mxu0 %v279
  %4265 = vmatpush1.msra.mxu0 %v278
  %4266 = vmatprep.subr.mxu0 %v275
  %4267 = vmatpush1.msra.mxu0 %v274
  %4268 = vmatprep.subr.mxu0 %v271
  %4269 = vmatpush1.msra.mxu0 %v270
  %4270 = vmatprep.subr.mxu0 %v267
  %4271 = vmatpush1.msra.mxu0 %v266
  %4272 = vmatprep.subr.mxu0 %v263
  %4273 = vmatpush1.msra.mxu0 %v262
  %4274 = vmatprep.subr.mxu0 %v259
  %4275 = vmatpush1.msra.mxu0 %v258
  %4276 = vmatprep.subr.mxu0 %v255
  %4277 = vmatpush1.msra.mxu0 %v254
  %4278 = vmatprep.subr.mxu0 %v251
  %4279 = vmatpush1.msra.mxu0 %v250
  %4280 = vmatprep.subr.mxu0 %v247
  %4281 = vmatpush1.msra.mxu0 %v246
  %4282 = vmatprep.subr.mxu0 %v243
  %4283 = vmatpush1.msra.mxu0 %v242
  %4284 = vmatprep.subr.mxu0 %v239
  %4285 = vmatpush1.msra.mxu0 %v238
  %4286 = vmatprep.subr.mxu0 %v235
  %4287 = vmatpush1.msra.mxu0 %v234
  %4288 = vmatprep.subr.mxu0 %v231
  %4289 = vmatpush1.msra.mxu0 %v230
  %4290 = vmatprep.subr.mxu0 0.0
  %4291 = vmatpush2.msra.mxu0 0.0
  %4292 = vmatprep.subr.mxu0 0.0
  %4293 = vmatpush2.msra.mxu0 0.0
  %4294 = vmatprep.subr.mxu0 0.0
  %4295 = vmatpush2.msra.mxu0 0.0
  %4296 = vmatprep.subr.mxu0 0.0
  %4297 = vmatpush2.msra.mxu0 0.0
  %4298 = vmatprep.subr.mxu0 0.0
  %4299 = vmatpush2.msra.mxu0 0.0
  %4300 = vmatprep.subr.mxu0 0.0
  %4301 = vmatpush2.msra.mxu0 0.0
  %4302 = vmatprep.subr.mxu0 0.0
  %4303 = vmatpush2.msra.mxu0 0.0
  %4304 = vmatprep.subr.mxu0 0.0
  %4305 = vmatpush2.msra.mxu0 0.0
  %4306 = vmatprep.subr.mxu0 0.0
  %4307 = vmatpush2.msra.mxu0 0.0
  %4308 = vmatprep.subr.mxu0 0.0
  %4309 = vmatpush2.msra.mxu0 0.0
  %4310 = vmatprep.subr.mxu0 0.0
  %4311 = vmatpush2.msra.mxu0 0.0
  %4312 = vmatprep.subr.mxu0 0.0
  %4313 = vmatpush2.msra.mxu0 0.0
  %4314 = vmatprep.subr.mxu0 0.0
  %4315 = vmatpush2.msra.mxu0 0.0
  %4316 = vmatprep.subr.mxu0 0.0
  %4317 = vmatpush2.msra.mxu0 0.0
  %4318 = vmatprep.subr.mxu0 0.0
  %4319 = vmatpush2.msra.mxu0 0.0
  %4320 = vmatprep.subr.mxu0 0.0
  %4321 = vmatpush2.msra.mxu0 0.0
  %4322 = vmatprep.mubr.f32.mxu0 0.0
  %4323 = vmatmul.mubr.f32.gmra.mxu0 %v4115
  %v4324 = vpop.f32.mrf.mxu0
  %v4325 = vadd.f32 0.0, %v4324
  %v4326 = vpop.f32.mrf.mxu0
  %v4327 = vadd.f32 0.0, %v4326
  %4328 = vdwg.mxu0
  %4329 = vmatprep.subr.mxu0 %v293
  %4330 = vmatpush1.msra.mxu0 %v292
  %4331 = vmatprep.subr.mxu0 %v289
  %4332 = vmatpush1.msra.mxu0 %v288
  %4333 = vmatprep.subr.mxu0 %v285
  %4334 = vmatpush1.msra.mxu0 %v284
  %4335 = vmatprep.subr.mxu0 %v281
  %4336 = vmatpush1.msra.mxu0 %v280
  %4337 = vmatprep.subr.mxu0 %v277
  %4338 = vmatpush1.msra.mxu0 %v276
  %4339 = vmatprep.subr.mxu0 %v273
  %4340 = vmatpush1.msra.mxu0 %v272
  %4341 = vmatprep.subr.mxu0 %v269
  %4342 = vmatpush1.msra.mxu0 %v268
  %4343 = vmatprep.subr.mxu0 %v265
  %4344 = vmatpush1.msra.mxu0 %v264
  %4345 = vmatprep.subr.mxu0 %v261
  %4346 = vmatpush1.msra.mxu0 %v260
  %4347 = vmatprep.subr.mxu0 %v257
  %4348 = vmatpush1.msra.mxu0 %v256
  %4349 = vmatprep.subr.mxu0 %v253
  %4350 = vmatpush1.msra.mxu0 %v252
  %4351 = vmatprep.subr.mxu0 %v249
  %4352 = vmatpush1.msra.mxu0 %v248
  %4353 = vmatprep.subr.mxu0 %v245
  %4354 = vmatpush1.msra.mxu0 %v244
  %4355 = vmatprep.subr.mxu0 %v241
  %4356 = vmatpush1.msra.mxu0 %v240
  %4357 = vmatprep.subr.mxu0 %v237
  %4358 = vmatpush1.msra.mxu0 %v236
  %4359 = vmatprep.subr.mxu0 %v233
  %4360 = vmatpush1.msra.mxu0 %v232
  %4361 = vmatprep.subr.mxu0 0.0
  %4362 = vmatpush2.msra.mxu0 0.0
  %4363 = vmatprep.subr.mxu0 0.0
  %4364 = vmatpush2.msra.mxu0 0.0
  %4365 = vmatprep.subr.mxu0 0.0
  %4366 = vmatpush2.msra.mxu0 0.0
  %4367 = vmatprep.subr.mxu0 0.0
  %4368 = vmatpush2.msra.mxu0 0.0
  %4369 = vmatprep.subr.mxu0 0.0
  %4370 = vmatpush2.msra.mxu0 0.0
  %4371 = vmatprep.subr.mxu0 0.0
  %4372 = vmatpush2.msra.mxu0 0.0
  %4373 = vmatprep.subr.mxu0 0.0
  %4374 = vmatpush2.msra.mxu0 0.0
  %4375 = vmatprep.subr.mxu0 0.0
  %4376 = vmatpush2.msra.mxu0 0.0
  %4377 = vmatprep.subr.mxu0 0.0
  %4378 = vmatpush2.msra.mxu0 0.0
  %4379 = vmatprep.subr.mxu0 0.0
  %4380 = vmatpush2.msra.mxu0 0.0
  %4381 = vmatprep.subr.mxu0 0.0
  %4382 = vmatpush2.msra.mxu0 0.0
  %4383 = vmatprep.subr.mxu0 0.0
  %4384 = vmatpush2.msra.mxu0 0.0
  %4385 = vmatprep.subr.mxu0 0.0
  %4386 = vmatpush2.msra.mxu0 0.0
  %4387 = vmatprep.subr.mxu0 0.0
  %4388 = vmatpush2.msra.mxu0 0.0
  %4389 = vmatprep.subr.mxu0 0.0
  %4390 = vmatpush2.msra.mxu0 0.0
  %4391 = vmatprep.subr.mxu0 0.0
  %4392 = vmatpush2.msra.mxu0 0.0
  %4393 = vmatprep.mubr.f32.mxu0 0.0
  %4394 = vmatmul.mubr.f32.gmra.mxu0 %v4115
  %v4395 = vpop.f32.mrf.mxu0
  %v4396 = vadd.f32 0.0, %v4395
  %v4397 = vpop.f32.mrf.mxu0
  %v4398 = vadd.f32 0.0, %v4397
  %4399 = vdwg.mxu0
  %v4400 = vadd.f32 %v4183, %v4325
  %v4401 = vadd.f32 %v4185, %v4327
  %v4402 = vadd.f32 %v4254, %v4396
  %v4403 = vadd.f32 %v4256, %v4398
  %v4404 = vxor.u32 %v4400, 2147483648
  %v4405 = vmul.f32 %v4404, 1.442695
  %v4406 = vpow.pop %v4405
  %v4407 = vadd.f32 %v4406, 1.0
  %v4408 = vrcp.pop %v4407
  %v4409 = vmul.f32 1.0, %v4408
  %v4410 = vxor.u32 %v4401, 2147483648
  %v4411 = vmul.f32 %v4410, 1.442695
  %v4412 = vpow.pop %v4411
  %v4413 = vadd.f32 %v4412, 1.0
  %v4414 = vrcp.pop %v4413
  %v4415 = vmul.f32 1.0, %v4414
  %v4416 = vtanh.pop %v4402
  %v4417 = vxor.u32 %v4403, 2147483648
  %v4418 = vmul.f32 %v4417, 1.442695
  %v4419 = vpow.pop %v4418
  %v4420 = vadd.f32 %v4419, 1.0
  %v4421 = vrcp.pop %v4420
  %v4422 = vmul.f32 1.0, %v4421
  %v4423 = vmul.f32 %v4415, %v4113
  %v4424 = vmul.f32 %v4409, %v4416
  %v4425 = vadd.f32 %v4423, %v4424
  %v4426 = vtanh.pop %v4425
  %v4427 = vmul.f32 %v4422, %v4426
  %v4428 = vmax.f32 %v3803, 0.0
  %v4429 = vmax.f32 %v4427, 0.0
  %v4430 = vld [vmem:[%s7] sm:$0xff]
  %v4431 = vld [vmem:[%s7 + $0x8] sm:$0xff]
  %v4432 = vld [vmem:[%s7 + $0x10] sm:$0xff]
  %v4433 = vld [vmem:[%s7 + $0x18] sm:$0xff]
  %v4434 = vld [vmem:[%s7 + $0x20] sm:$0xff]
  %v4435 = vld [vmem:[%s7 + $0x28] sm:$0xff]
  %v4436 = vld [vmem:[%s7 + $0x30] sm:$0xff]
  %v4437 = vld [vmem:[%s7 + $0x38] sm:$0xff]
  %v4438 = vld [vmem:[%s7 + $0x40] sm:$0xff]
  %v4439 = vld [vmem:[%s7 + $0x48] sm:$0xff]
  %v4440 = vld [vmem:[%s7 + $0x50] sm:$0xff]
  %v4441 = vld [vmem:[%s7 + $0x58] sm:$0xff]
  %v4442 = vld [vmem:[%s7 + $0x60] sm:$0xff]
  %v4443 = vld [vmem:[%s7 + $0x68] sm:$0xff]
  %v4444 = vld [vmem:[%s7 + $0x70] sm:$0xff]
  %v4445 = vld [vmem:[%s7 + $0x78] sm:$0xff]
  %v4446 = vld [vmem:[%s8] sm:$0x1]
  %v4448 = vlaneseq
  %v4449 = vshrl.u32 %v4448, 7
  %v4450 = vsub.s32 0, %v4449
  %v4451 = vrot.slane %v4446, %v4450
  %4453 = vmatprep.subr.mxu0 0.0
  %4454 = vmatpush1.msra.mxu0 %v4445
  %4455 = vmatprep.subr.mxu0 0.0
  %4456 = vmatpush1.msra.mxu0 %v4444
  %4457 = vmatprep.subr.mxu0 0.0
  %4458 = vmatpush1.msra.mxu0 %v4443
  %4459 = vmatprep.subr.mxu0 0.0
  %4460 = vmatpush1.msra.mxu0 %v4442
  %4461 = vmatprep.subr.mxu0 0.0
  %4462 = vmatpush1.msra.mxu0 %v4441
  %4463 = vmatprep.subr.mxu0 0.0
  %4464 = vmatpush1.msra.mxu0 %v4440
  %4465 = vmatprep.subr.mxu0 0.0
  %4466 = vmatpush1.msra.mxu0 %v4439
  %4467 = vmatprep.subr.mxu0 0.0
  %4468 = vmatpush1.msra.mxu0 %v4438
  %4469 = vmatprep.subr.mxu0 0.0
  %4470 = vmatpush1.msra.mxu0 %v4437
  %4471 = vmatprep.subr.mxu0 0.0
  %4472 = vmatpush1.msra.mxu0 %v4436
  %4473 = vmatprep.subr.mxu0 0.0
  %4474 = vmatpush1.msra.mxu0 %v4435
  %4475 = vmatprep.subr.mxu0 0.0
  %4476 = vmatpush1.msra.mxu0 %v4434
  %4477 = vmatprep.subr.mxu0 0.0
  %4478 = vmatpush1.msra.mxu0 %v4433
  %4479 = vmatprep.subr.mxu0 0.0
  %4480 = vmatpush1.msra.mxu0 %v4432
  %4481 = vmatprep.subr.mxu0 0.0
  %4482 = vmatpush1.msra.mxu0 %v4431
  %4483 = vmatprep.subr.mxu0 0.0
  %4484 = vmatpush1.msra.mxu0 %v4430
  %4485 = vmatprep.subr.mxu0 0.0
  %4486 = vmatpush2.msra.mxu0 0.0
  %4487 = vmatprep.subr.mxu0 0.0
  %4488 = vmatpush2.msra.mxu0 0.0
  %4489 = vmatprep.subr.mxu0 0.0
  %4490 = vmatpush2.msra.mxu0 0.0
  %4491 = vmatprep.subr.mxu0 0.0
  %4492 = vmatpush2.msra.mxu0 0.0
  %4493 = vmatprep.subr.mxu0 0.0
  %4494 = vmatpush2.msra.mxu0 0.0
  %4495 = vmatprep.subr.mxu0 0.0
  %4496 = vmatpush2.msra.mxu0 0.0
  %4497 = vmatprep.subr.mxu0 0.0
  %4498 = vmatpush2.msra.mxu0 0.0
  %4499 = vmatprep.subr.mxu0 0.0
  %4500 = vmatpush2.msra.mxu0 0.0
  %4501 = vmatprep.subr.mxu0 0.0
  %4502 = vmatpush2.msra.mxu0 0.0
  %4503 = vmatprep.subr.mxu0 0.0
  %4504 = vmatpush2.msra.mxu0 0.0
  %4505 = vmatprep.subr.mxu0 0.0
  %4506 = vmatpush2.msra.mxu0 0.0
  %4507 = vmatprep.subr.mxu0 0.0
  %4508 = vmatpush2.msra.mxu0 0.0
  %4509 = vmatprep.subr.mxu0 0.0
  %4510 = vmatpush2.msra.mxu0 0.0
  %4511 = vmatprep.subr.mxu0 0.0
  %4512 = vmatpush2.msra.mxu0 0.0
  %4513 = vmatprep.subr.mxu0 0.0
  %4514 = vmatpush2.msra.mxu0 0.0
  %4515 = vmatprep.subr.mxu0 0.0
  %4516 = vmatpush2.msra.mxu0 0.0
  %4517 = vmatprep.mubr.f32.mxu0 0.0
  %4518 = vmatmul.mubr.f32.gmra.mxu0 %v4428
  %v4519 = vpop.f32.mrf.mxu0
  %v4520 = vadd.f32 %v4451, %v4519
  %v4521 = vpop.f32.mrf.mxu0
  %4522 = vmatprep.mubr.f32.mxu0 0.0
  %4523 = vmatmul.mubr.f32.gmra.mxu0 %v4429
  %v4524 = vpop.f32.mrf.mxu0
  %v4525 = vadd.f32 %v4451, %v4524
  %v4526 = vpop.f32.mrf.mxu0
  %4527 = vdwg.mxu0
  %v4528 = vmax.f32 %v4520, 0.0
  %v4529 = vmax.f32 %v4525, 0.0
  %v4530 = vld [vmem:[%s9] sm:$0xff]
  %v4531 = vld [vmem:[%s9 + $0x8] sm:$0xff]
  %v4532 = vld [vmem:[%s9 + $0x10] sm:$0xff]
  %v4533 = vld [vmem:[%s9 + $0x18] sm:$0xff]
  %v4534 = vld [vmem:[%s9 + $0x20] sm:$0xff]
  %v4535 = vld [vmem:[%s9 + $0x28] sm:$0xff]
  %v4536 = vld [vmem:[%s9 + $0x30] sm:$0xff]
  %v4537 = vld [vmem:[%s9 + $0x38] sm:$0xff]
  %v4538 = vld [vmem:[%s9 + $0x40] sm:$0xff]
  %v4539 = vld [vmem:[%s9 + $0x48] sm:$0xff]
  %v4540 = vld [vmem:[%s9 + $0x50] sm:$0xff]
  %v4541 = vld [vmem:[%s9 + $0x58] sm:$0xff]
  %v4542 = vld [vmem:[%s9 + $0x60] sm:$0xff]
  %v4543 = vld [vmem:[%s9 + $0x68] sm:$0xff]
  %v4544 = vld [vmem:[%s9 + $0x70] sm:$0xff]
  %v4545 = vld [vmem:[%s9 + $0x78] sm:$0xff]
  %v4546 = vld [vmem:[%s10] sm:$0x1]
  %v4548 = vlaneseq
  %v4549 = vshrl.u32 %v4548, 7
  %v4550 = vsub.s32 0, %v4549
  %v4551 = vrot.slane %v4546, %v4550
  %4553 = vmatprep.subr.mxu0 0.0
  %4554 = vmatpush1.msra.mxu0 %v4545
  %4555 = vmatprep.subr.mxu0 0.0
  %4556 = vmatpush1.msra.mxu0 %v4544
  %4557 = vmatprep.subr.mxu0 0.0
  %4558 = vmatpush1.msra.mxu0 %v4543
  %4559 = vmatprep.subr.mxu0 0.0
  %4560 = vmatpush1.msra.mxu0 %v4542
  %4561 = vmatprep.subr.mxu0 0.0
  %4562 = vmatpush1.msra.mxu0 %v4541
  %4563 = vmatprep.subr.mxu0 0.0
  %4564 = vmatpush1.msra.mxu0 %v4540
  %4565 = vmatprep.subr.mxu0 0.0
  %4566 = vmatpush1.msra.mxu0 %v4539
  %4567 = vmatprep.subr.mxu0 0.0
  %4568 = vmatpush1.msra.mxu0 %v4538
  %4569 = vmatprep.subr.mxu0 0.0
  %4570 = vmatpush1.msra.mxu0 %v4537
  %4571 = vmatprep.subr.mxu0 0.0
  %4572 = vmatpush1.msra.mxu0 %v4536
  %4573 = vmatprep.subr.mxu0 0.0
  %4574 = vmatpush1.msra.mxu0 %v4535
  %4575 = vmatprep.subr.mxu0 0.0
  %4576 = vmatpush1.msra.mxu0 %v4534
  %4577 = vmatprep.subr.mxu0 0.0
  %4578 = vmatpush1.msra.mxu0 %v4533
  %4579 = vmatprep.subr.mxu0 0.0
  %4580 = vmatpush1.msra.mxu0 %v4532
  %4581 = vmatprep.subr.mxu0 0.0
  %4582 = vmatpush1.msra.mxu0 %v4531
  %4583 = vmatprep.subr.mxu0 0.0
  %4584 = vmatpush1.msra.mxu0 %v4530
  %4585 = vmatprep.subr.mxu0 0.0
  %4586 = vmatpush2.msra.mxu0 0.0
  %4587 = vmatprep.subr.mxu0 0.0
  %4588 = vmatpush2.msra.mxu0 0.0
  %4589 = vmatprep.subr.mxu0 0.0
  %4590 = vmatpush2.msra.mxu0 0.0
  %4591 = vmatprep.subr.mxu0 0.0
  %4592 = vmatpush2.msra.mxu0 0.0
  %4593 = vmatprep.subr.mxu0 0.0
  %4594 = vmatpush2.msra.mxu0 0.0
  %4595 = vmatprep.subr.mxu0 0.0
  %4596 = vmatpush2.msra.mxu0 0.0
  %4597 = vmatprep.subr.mxu0 0.0
  %4598 = vmatpush2.msra.mxu0 0.0
  %4599 = vmatprep.subr.mxu0 0.0
  %4600 = vmatpush2.msra.mxu0 0.0
  %4601 = vmatprep.subr.mxu0 0.0
  %4602 = vmatpush2.msra.mxu0 0.0
  %4603 = vmatprep.subr.mxu0 0.0
  %4604 = vmatpush2.msra.mxu0 0.0
  %4605 = vmatprep.subr.mxu0 0.0
  %4606 = vmatpush2.msra.mxu0 0.0
  %4607 = vmatprep.subr.mxu0 0.0
  %4608 = vmatpush2.msra.mxu0 0.0
  %4609 = vmatprep.subr.mxu0 0.0
  %4610 = vmatpush2.msra.mxu0 0.0
  %4611 = vmatprep.subr.mxu0 0.0
  %4612 = vmatpush2.msra.mxu0 0.0
  %4613 = vmatprep.subr.mxu0 0.0
  %4614 = vmatpush2.msra.mxu0 0.0
  %4615 = vmatprep.subr.mxu0 0.0
  %4616 = vmatpush2.msra.mxu0 0.0
  %4617 = vmatprep.mubr.f32.mxu0 0.0
  %4618 = vmatmul.mubr.f32.gmra.mxu0 %v4528
  %v4619 = vpop.f32.mrf.mxu0
  %v4620 = vadd.f32 %v4551, %v4619
  %v4621 = vpop.f32.mrf.mxu0
  %4622 = vmatprep.mubr.f32.mxu0 0.0
  %4623 = vmatmul.mubr.f32.gmra.mxu0 %v4529
  %v4624 = vpop.f32.mrf.mxu0
  %v4625 = vadd.f32 %v4551, %v4624
  %v4626 = vpop.f32.mrf.mxu0
  %4627 = vdwg.mxu0
  %4628 = vst [vmem:[%s11] sm:$0xff] %v4620
  %4629 = vst [vmem:[%s11 + $0x8] sm:$0xff] %v4625
  // Predicated region
  $region46: #{lstm1_forward.1} parent=0 // pred_check
    _
  $region47: #{lstm1_forward.1} parent=0 // pred_check_branch
    %4631 = sbr.rel (0) target = $region49
  $region48: #{lstm1_forward.1} parent=0 // pred_region
    _
  $region49: #{lstm1_forward.1} parent=0 // pred_fallthru
    _
  // Predicated region
  $region50: #{lstm1_forward.1} parent=0 // pred_check
    _
  $region51: #{lstm1_forward.1} parent=0 // pred_check_branch
    %4633 = sbr.rel (0) target = $region53
  $region52: #{lstm1_forward.1} parent=0 // pred_region
    _
  $region53: #{lstm1_forward.1} parent=0 // pred_fallthru
    _

</llo_original>
